<compile_context>
chip_gen: v5e
topology: v5e:2x2
jax: 0.10.0
libtpu: 0.0.40
codegen_flags: <defaults>
</compile_context>

<pallas_src>
import numpy as np
import jax
import jax.numpy as jnp
from jax.experimental import pallas as pl
from jax.experimental.pallas import tpu as pltpu

# Hyper-parameters from Net.__init__ defaults.
N_ACTIONS = 6
EMB_SIZE = 3
N_NODES = 6
N_LAYERS = 2
INITRANGE = 0.5

LANE = 128          # one 128-lane block per gate / per hidden vector


def _net_kernel(xp_ref,           # (S, B, 4*LANE)  gathered (embedding @ Wih0 + b0), gate-padded
                wcomb_ref,        # (2*LANE, 8*LANE) block weight [[Whh0 | Wih1], [0 | Whh1]]
                b1_ref,           # (1, 4*LANE)      layer-1 bias, gate-padded
                wdec_ref,         # (LANE, LANE)     decoder weight, zero-padded
                bdec_ref,         # (1, LANE)        decoder bias, zero-padded
                h0_ref, c0_ref,   # (L, B, LANE)     initial state, zero-padded
                dec_ref,          # (S*B, LANE)      decoder output (padded lanes)
                hN_ref, cN_ref):  # (L, B, LANE)     final state (padded lanes)
    S = xp_ref.shape[0]
    G = 4 * LANE

    b1 = b1_ref[...]                                   # tiny (4 vregs); keep live

    def lstm_elem(g, c):
        # PyTorch gate order i, f, g, o; each gate in its own 128-lane block so every
        # slice below is vreg-aligned (no XLU rotates on the per-wave critical path).
        i = jax.nn.sigmoid(g[:, 0 * LANE:1 * LANE])
        f = jax.nn.sigmoid(g[:, 1 * LANE:2 * LANE])
        gg = jnp.tanh(g[:, 2 * LANE:3 * LANE])
        o = jax.nn.sigmoid(g[:, 3 * LANE:4 * LANE])
        c_new = f * c + i * gg                         # padded lanes stay exactly 0
        h_new = o * jnp.tanh(c_new)
        return h_new, c_new

    h0l = h0_ref[0]
    c0l = c0_ref[0]
    h1l = h0_ref[1]
    c1l = c0_ref[1]

    outs = []
    # Wavefront: wave t computes layer-0 step t and layer-1 step t-1 (both only need
    # h0(t-1), h1(t-2)), shrinking the serial matmul chain to S+1.
    # TODO(synk): for production-size S switch to lax.fori_loop(..., unroll=k) to bound
    # code size / VMEM (re-derive against the 64 MiB v7x limit); S=8 here, so static unroll.
    for wave in range(S + 1):                          # fully unrolled, static
        inp = jnp.concatenate([h0l, h1l], axis=-1)     # (B, 2*LANE), 128-aligned lane concat
        # Single block-diagonal matmul for both layers.  Weight is streamed from VMEM on
        # every wave (do NOT hoist the 1 MiB load out of the loop -- it would just spill).
        g_all = jnp.dot(inp, wcomb_ref[...],
                        preferred_element_type=jnp.float32)    # (B, 8*LANE)
        if wave > 0:                                   # layer-1 step (wave - 1)
            h1l, c1l = lstm_elem(g_all[:, G:] + b1, c1l)
            outs.append(h1l)
        if wave < S:                                   # layer-0 step (wave); dropout = identity
            h0l, c0l = lstm_elem(g_all[:, :G] + xp_ref[wave], c0l)

    # Final (h_n, c_n).
    hN_ref[0] = h0l
    hN_ref[1] = h1l
    cN_ref[0] = c0l
    cN_ref[1] = c1l

    # Decoder applied once over all timesteps kept in vregs: one matmul, one lane-dense
    # full-block store (output dropout = identity at inference).
    hseq = jnp.concatenate(outs, axis=0)               # (S*B, LANE)
    dec_ref[...] = (jnp.dot(hseq, wdec_ref[...], preferred_element_type=jnp.float32)
                    + bdec_ref[...])


def _scatter_gates(w, H):
    """(rows, 4H) fused-gate matrix -> (rows, 4*LANE) with gate g in lanes [g*LANE, g*LANE+H)."""
    rows = w.shape[0]
    out = jnp.zeros((rows, 4 * LANE), jnp.float32)
    for g in range(4):
        out = out.at[:, g * LANE:g * LANE + H].set(w[:, g * H:(g + 1) * H])
    return out


def net_forward(params, idx_sb, h0, c0):
    """idx_sb: (seq, batch) int indices; h0, c0: (n_layers, batch, n_nodes) f32.
    Returns (decoded (seq, batch, n_actions), (h_n, c_n))."""
    S, B = idx_sb.shape
    L, _, H = h0.shape
    A = params["wdec"].shape[1]
    assert L == 2, "kernel is specialized for the module's n_layers=2"
    assert H <= LANE and A <= LANE

    f32 = jnp.float32

    # ---- Build padded / fused kernel operands (one-time wrapper-side XLA work) ----
    # Fold the layer-0 input projection AND its bias into the embedding table.  The
    # padding_idx=0 row (zero embedding) correctly maps to b0, identical to the reference.
    emb_proj = params["embedding"].astype(f32) @ params["wih0"] + params["b0"]   # (V, 4H)
    emb_proj_p = _scatter_gates(emb_proj, H)                                     # (V, 4*LANE)

    idx_sb = jnp.asarray(idx_sb, jnp.int32)
    xp = emb_proj_p[idx_sb]                                                      # (S, B, 4*LANE)

    # Block weight for the wavefront matmul:
    #   rows [0:H)          (h0 lanes): [ Whh0 | Wih1 ]
    #   rows [LANE:LANE+H)  (h1 lanes): [  0   | Whh1 ]
    whh0_p = _scatter_gates(params["whh0"], H)
    wih1_p = _scatter_gates(params["wih1"], H)
    whh1_p = _scatter_gates(params["whh1"], H)
    wcomb = jnp.zeros((2 * LANE, 8 * LANE), f32)
    wcomb = wcomb.at[:H, :4 * LANE].set(whh0_p)
    wcomb = wcomb.at[:H, 4 * LANE:].set(wih1_p)
    wcomb = wcomb.at[LANE:LANE + H, 4 * LANE:].set(whh1_p)

    b1_p = _scatter_gates(params["b1"], H)                                       # (1, 4*LANE)

    wdec_p = jnp.zeros((LANE, LANE), f32).at[:H, :A].set(params["wdec"])
    bdec_p = jnp.zeros((1, LANE), f32).at[:, :A].set(params["bdec"])

    h0_p = jnp.zeros((L, B, LANE), f32).at[:, :, :H].set(h0.astype(f32))
    c0_p = jnp.zeros((L, B, LANE), f32).at[:, :, :H].set(c0.astype(f32))

    vmem = pl.BlockSpec(memory_space=pltpu.MemorySpace.VMEM)
    in_arrays = (xp, wcomb, b1_p, wdec_p, bdec_p, h0_p, c0_p)

    out_shape = (jax.ShapeDtypeStruct((S * B, LANE), f32),
                 jax.ShapeDtypeStruct((L, B, LANE), f32),
                 jax.ShapeDtypeStruct((L, B, LANE), f32))

    # Single kernel invocation, no grid: nothing to pipeline at these shapes, and a dummy
    # grid only adds double-buffer allocation and step bookkeeping.
    # TODO(synk): for large batch on v7x, add a leading "parallel" grid axis over batch
    # tiles so both TensorCores are used; pointless at B=2.
    dec_p, hN_p, cN_p = pl.pallas_call(
        _net_kernel,
        out_shape=out_shape,
        in_specs=[vmem] * len(in_arrays),
        out_specs=(vmem, vmem, vmem),
    )(*in_arrays)

    decoded = dec_p[:, :A].reshape(S, B, A)
    return decoded, (hN_p[:, :, :H], cN_p[:, :, :H])


def init_params(key):
    """Deterministic, PyTorch-equivalent parameter init (see Net.init_weights), with
    LSTM weights stored fused: (in_dim, 4H), gate order i,f,g,o; bias = b_ih + b_hh as (1,4H)."""
    ks = jax.random.split(key, 12)

    def U(k, shape, scale):
        return jax.random.uniform(k, shape, jnp.float32, -scale, scale)

    emb = U(ks[0], (N_ACTIONS, EMB_SIZE), INITRANGE)
    emb = emb.at[0, :].set(0.0)                                           # padding_idx = 0

    stdv = 1.0 / np.sqrt(N_NODES)

    def lstm_w(k, in_dim):
        # PyTorch layout (4H, in_dim), gate order i,f,g,o -> fused kernel layout (in_dim, 4H).
        w = U(k, (4 * N_NODES, in_dim), stdv)
        return jnp.transpose(w)

    def lstm_b(k1, k2):
        b_ih = U(k1, (4 * N_NODES,), stdv)
        b_hh = U(k2, (4 * N_NODES,), stdv)
        return (b_ih + b_hh).reshape(1, 4 * N_NODES)

    wih0 = lstm_w(ks[1], EMB_SIZE)
    whh0 = lstm_w(ks[2], N_NODES)
    b0 = lstm_b(ks[3], ks[4])
    wih1 = lstm_w(ks[5], N_NODES)
    whh1 = lstm_w(ks[6], N_NODES)
    b1 = lstm_b(ks[7], ks[8])

    wdec = U(ks[9], (N_ACTIONS, N_NODES), INITRANGE).T                    # (H, A)
    bdec = jnp.zeros((1, N_ACTIONS), jnp.float32)                         # decoder.bias zeroed

    return dict(embedding=emb, wih0=wih0, whh0=whh0, b0=b0,
                wih1=wih1, whh1=whh1, b1=b1, wdec=wdec, bdec=bdec)


def net_forward_ref(params, idx_sb, h0, c0):
    """Pure-JAX reference of the PyTorch forward (inference mode), fused-gate layout."""
    S, B = idx_sb.shape
    H = h0.shape[2]
    x_seq = params["embedding"][idx_sb]                                   # (S, B, E)

    def cell(x, h, c, wih, whh, b):
        g = x @ wih + h @ whh + b                                         # (B, 4H)
        i = jax.nn.sigmoid(g[:, 0 * H:1 * H])
        f = jax.nn.sigmoid(g[:, 1 * H:2 * H])
        gg = jnp.tanh(g[:, 2 * H:3 * H])
        o = jax.nn.sigmoid(g[:, 3 * H:4 * H])
        c = f * c + i * gg
        h = o * jnp.tanh(c)
        return h, c

    h = [h0[0], h0[1]]
    c = [c0[0], c0[1]]
    outs = []
    for t in range(S):
        h[0], c[0] = cell(x_seq[t], h[0], c[0], params["wih0"], params["whh0"], params["b0"])
        h[1], c[1] = cell(h[0], h[1], c[1], params["wih1"], params["whh1"], params["b1"])
        outs.append(h[1])
    out = jnp.stack(outs)                                                 # (S, B, H)
    decoded = out.reshape(S * B, -1) @ params["wdec"] + params["bdec"]
    return decoded.reshape(S, B, -1), (jnp.stack(h), jnp.stack(c))


if __name__ == "__main__":
    key = jax.random.PRNGKey(0)
    k_param, k_idx = jax.random.split(key)
    params = init_params(k_param)

    S, B = 8, 2
    idx = jax.random.randint(k_idx, (S, B), 0, N_ACTIONS, dtype=jnp.int32)
    h0 = jnp.zeros((N_LAYERS, B, N_NODES), jnp.float32)
    c0 = jnp.zeros((N_LAYERS, B, N_NODES), jnp.float32)

    decoded, (hN, cN) = net_forward(params, idx, h0, c0)
    jax.block_until_ready((decoded, hN, cN))

    ref_dec, (ref_h, ref_c) = net_forward_ref(params, idx, h0, c0)
    np.testing.assert_allclose(np.asarray(decoded), np.asarray(ref_dec), atol=1e-4, rtol=1e-4)
    np.testing.assert_allclose(np.asarray(hN), np.asarray(ref_h), atol=1e-4, rtol=1e-4)
    np.testing.assert_allclose(np.asarray(cN), np.asarray(ref_c), atol=1e-4, rtol=1e-4)

    print("KERNEL_OK")
</pallas_src>

<mosaic_0001>
module attributes {stable_mosaic.version = 11 : i64} {
  func.func @_net_kernel(%arg0: memref<8x2x512xf32, #tpu.memory_space<vmem>>, %arg1: memref<256x1024xf32, #tpu.memory_space<vmem>>, %arg2: memref<1x512xf32, #tpu.memory_space<vmem>>, %arg3: memref<128x128xf32, #tpu.memory_space<vmem>>, %arg4: memref<1x128xf32, #tpu.memory_space<vmem>>, %arg5: memref<2x2x128xf32, #tpu.memory_space<vmem>>, %arg6: memref<2x2x128xf32, #tpu.memory_space<vmem>>, %arg7: memref<16x128xf32, #tpu.memory_space<vmem>>, %arg8: memref<2x2x128xf32, #tpu.memory_space<vmem>>, %arg9: memref<2x2x128xf32, #tpu.memory_space<vmem>>) attributes {dimension_semantics = [], scalar_prefetch = 0 : i64, scratch_operands = 0 : i64, tpu.core_type = #tpu.core_type<tc>} {
    %c0 = arith.constant 0 : index
    %c0_0 = arith.constant 0 : index
    %0 = vector.load %arg2[%c0, %c0_0] : memref<1x512xf32, #tpu.memory_space<vmem>>, vector<1x512xf32>
    %c0_1 = arith.constant 0 : index
    %c0_2 = arith.constant 0 : index
    %c0_3 = arith.constant 0 : index
    %1 = vector.load %arg5[%c0_1, %c0_2, %c0_3] : memref<2x2x128xf32, #tpu.memory_space<vmem>>, vector<1x2x128xf32>
    %2 = vector.shape_cast %1 : vector<1x2x128xf32> to vector<2x128xf32>
    %c0_4 = arith.constant 0 : index
    %c0_5 = arith.constant 0 : index
    %c0_6 = arith.constant 0 : index
    %3 = vector.load %arg6[%c0_4, %c0_5, %c0_6] : memref<2x2x128xf32, #tpu.memory_space<vmem>>, vector<1x2x128xf32>
    %4 = vector.shape_cast %3 : vector<1x2x128xf32> to vector<2x128xf32>
    %c1 = arith.constant 1 : index
    %c0_7 = arith.constant 0 : index
    %c0_8 = arith.constant 0 : index
    %5 = vector.load %arg5[%c1, %c0_7, %c0_8] : memref<2x2x128xf32, #tpu.memory_space<vmem>>, vector<1x2x128xf32>
    %6 = vector.shape_cast %5 : vector<1x2x128xf32> to vector<2x128xf32>
    %c1_9 = arith.constant 1 : index
    %c0_10 = arith.constant 0 : index
    %c0_11 = arith.constant 0 : index
    %7 = vector.load %arg6[%c1_9, %c0_10, %c0_11] : memref<2x2x128xf32, #tpu.memory_space<vmem>>, vector<1x2x128xf32>
    %8 = vector.shape_cast %7 : vector<1x2x128xf32> to vector<2x128xf32>
    %9 = tpu.concatenate %2, %6 in 1 : vector<2x128xf32>, vector<2x128xf32> -> vector<2x256xf32>
    %c0_12 = arith.constant 0 : index
    %c0_13 = arith.constant 0 : index
    %10 = vector.load %arg1[%c0_12, %c0_13] : memref<256x1024xf32, #tpu.memory_space<vmem>>, vector<256x1024xf32>
    %cst = arith.constant dense<0.000000e+00> : vector<2x1024xf32>
    %11 = tpu.matmul %9, %10, %cst {dimension_numbers = #tpu.dot_dimension_numbers<[1], [0], [0], [1], [0, 0, 1, 1], [], []>} : vector<2x256xf32>, vector<256x1024xf32>, vector<2x1024xf32> -> vector<2x1024xf32>
    %12 = vector.extract_strided_slice %11 {offsets = [0, 0], sizes = [2, 512], strides = [1, 1]} : vector<2x1024xf32> to vector<2x512xf32>
    %c0_14 = arith.constant 0 : index
    %c0_15 = arith.constant 0 : index
    %c0_16 = arith.constant 0 : index
    %13 = vector.load %arg0[%c0_14, %c0_15, %c0_16] : memref<8x2x512xf32, #tpu.memory_space<vmem>>, vector<1x2x512xf32>
    %14 = vector.shape_cast %13 : vector<1x2x512xf32> to vector<2x512xf32>
    %15 = arith.addf %12, %14 : vector<2x512xf32>
    %16 = vector.extract_strided_slice %15 {offsets = [0, 0], sizes = [2, 128], strides = [1, 1]} : vector<2x512xf32> to vector<2x128xf32>
    %17 = arith.negf %16 : vector<2x128xf32>
    %18 = math.exp %17 : vector<2x128xf32>
    %cst_17 = arith.constant 1.000000e+00 : f32
    %19 = vector.broadcast %cst_17 : f32 to vector<2x128xf32>
    %20 = arith.addf %19, %18 : vector<2x128xf32>
    %21 = arith.divf %19, %20 : vector<2x128xf32>
    %22 = vector.extract_strided_slice %15 {offsets = [0, 128], sizes = [2, 128], strides = [1, 1]} : vector<2x512xf32> to vector<2x128xf32>
    %23 = arith.negf %22 : vector<2x128xf32>
    %24 = math.exp %23 : vector<2x128xf32>
    %cst_18 = arith.constant 1.000000e+00 : f32
    %25 = vector.broadcast %cst_18 : f32 to vector<2x128xf32>
    %26 = arith.addf %25, %24 : vector<2x128xf32>
    %27 = arith.divf %25, %26 : vector<2x128xf32>
    %28 = vector.extract_strided_slice %15 {offsets = [0, 256], sizes = [2, 128], strides = [1, 1]} : vector<2x512xf32> to vector<2x128xf32>
    %29 = math.tanh %28 : vector<2x128xf32>
    %30 = vector.extract_strided_slice %15 {offsets = [0, 384], sizes = [2, 128], strides = [1, 1]} : vector<2x512xf32> to vector<2x128xf32>
    %31 = arith.negf %30 : vector<2x128xf32>
    %32 = math.exp %31 : vector<2x128xf32>
    %cst_19 = arith.constant 1.000000e+00 : f32
    %33 = vector.broadcast %cst_19 : f32 to vector<2x128xf32>
    %34 = arith.addf %33, %32 : vector<2x128xf32>
    %35 = arith.divf %33, %34 : vector<2x128xf32>
    %36 = arith.mulf %27, %4 : vector<2x128xf32>
    %37 = arith.mulf %21, %29 : vector<2x128xf32>
    %38 = arith.addf %36, %37 : vector<2x128xf32>
    %39 = math.tanh %38 : vector<2x128xf32>
    %40 = arith.mulf %35, %39 : vector<2x128xf32>
    %41 = tpu.concatenate %40, %6 in 1 : vector<2x128xf32>, vector<2x128xf32> -> vector<2x256xf32>
    %c0_20 = arith.constant 0 : index
    %c0_21 = arith.constant 0 : index
    %42 = vector.load %arg1[%c0_20, %c0_21] : memref<256x1024xf32, #tpu.memory_space<vmem>>, vector<256x1024xf32>
    %cst_22 = arith.constant dense<0.000000e+00> : vector<2x1024xf32>
    %43 = tpu.matmul %41, %42, %cst_22 {dimension_numbers = #tpu.dot_dimension_numbers<[1], [0], [0], [1], [0, 0, 1, 1], [], []>} : vector<2x256xf32>, vector<256x1024xf32>, vector<2x1024xf32> -> vector<2x1024xf32>
    %44 = vector.extract_strided_slice %43 {offsets = [0, 512], sizes = [2, 512], strides = [1, 1]} : vector<2x1024xf32> to vector<2x512xf32>
    %45 = vector.broadcast %0 : vector<1x512xf32> to vector<2x512xf32>
    %46 = arith.addf %44, %45 : vector<2x512xf32>
    %47 = vector.extract_strided_slice %46 {offsets = [0, 0], sizes = [2, 128], strides = [1, 1]} : vector<2x512xf32> to vector<2x128xf32>
    %48 = arith.negf %47 : vector<2x128xf32>
    %49 = math.exp %48 : vector<2x128xf32>
    %cst_23 = arith.constant 1.000000e+00 : f32
    %50 = vector.broadcast %cst_23 : f32 to vector<2x128xf32>
    %51 = arith.addf %50, %49 : vector<2x128xf32>
    %52 = arith.divf %50, %51 : vector<2x128xf32>
    %53 = vector.extract_strided_slice %46 {offsets = [0, 128], sizes = [2, 128], strides = [1, 1]} : vector<2x512xf32> to vector<2x128xf32>
    %54 = arith.negf %53 : vector<2x128xf32>
    %55 = math.exp %54 : vector<2x128xf32>
    %cst_24 = arith.constant 1.000000e+00 : f32
    %56 = vector.broadcast %cst_24 : f32 to vector<2x128xf32>
    %57 = arith.addf %56, %55 : vector<2x128xf32>
    %58 = arith.divf %56, %57 : vector<2x128xf32>
    %59 = vector.extract_strided_slice %46 {offsets = [0, 256], sizes = [2, 128], strides = [1, 1]} : vector<2x512xf32> to vector<2x128xf32>
    %60 = math.tanh %59 : vector<2x128xf32>
    %61 = vector.extract_strided_slice %46 {offsets = [0, 384], sizes = [2, 128], strides = [1, 1]} : vector<2x512xf32> to vector<2x128xf32>
    %62 = arith.negf %61 : vector<2x128xf32>
    %63 = math.exp %62 : vector<2x128xf32>
    %cst_25 = arith.constant 1.000000e+00 : f32
    %64 = vector.broadcast %cst_25 : f32 to vector<2x128xf32>
    %65 = arith.addf %64, %63 : vector<2x128xf32>
    %66 = arith.divf %64, %65 : vector<2x128xf32>
    %67 = arith.mulf %58, %8 : vector<2x128xf32>
    %68 = arith.mulf %52, %60 : vector<2x128xf32>
    %69 = arith.addf %67, %68 : vector<2x128xf32>
    %70 = math.tanh %69 : vector<2x128xf32>
    %71 = arith.mulf %66, %70 : vector<2x128xf32>
    %72 = vector.extract_strided_slice %43 {offsets = [0, 0], sizes = [2, 512], strides = [1, 1]} : vector<2x1024xf32> to vector<2x512xf32>
    %c1_26 = arith.constant 1 : index
    %c0_27 = arith.constant 0 : index
    %c0_28 = arith.constant 0 : index
    %73 = vector.load %arg0[%c1_26, %c0_27, %c0_28] : memref<8x2x512xf32, #tpu.memory_space<vmem>>, vector<1x2x512xf32>
    %74 = vector.shape_cast %73 : vector<1x2x512xf32> to vector<2x512xf32>
    %75 = arith.addf %72, %74 : vector<2x512xf32>
    %76 = vector.extract_strided_slice %75 {offsets = [0, 0], sizes = [2, 128], strides = [1, 1]} : vector<2x512xf32> to vector<2x128xf32>
    %77 = arith.negf %76 : vector<2x128xf32>
    %78 = math.exp %77 : vector<2x128xf32>
    %cst_29 = arith.constant 1.000000e+00 : f32
    %79 = vector.broadcast %cst_29 : f32 to vector<2x128xf32>
    %80 = arith.addf %79, %78 : vector<2x128xf32>
    %81 = arith.divf %79, %80 : vector<2x128xf32>
    %82 = vector.extract_strided_slice %75 {offsets = [0, 128], sizes = [2, 128], strides = [1, 1]} : vector<2x512xf32> to vector<2x128xf32>
    %83 = arith.negf %82 : vector<2x128xf32>
    %84 = math.exp %83 : vector<2x128xf32>
    %cst_30 = arith.constant 1.000000e+00 : f32
    %85 = vector.broadcast %cst_30 : f32 to vector<2x128xf32>
    %86 = arith.addf %85, %84 : vector<2x128xf32>
    %87 = arith.divf %85, %86 : vector<2x128xf32>
    %88 = vector.extract_strided_slice %75 {offsets = [0, 256], sizes = [2, 128], strides = [1, 1]} : vector<2x512xf32> to vector<2x128xf32>
    %89 = math.tanh %88 : vector<2x128xf32>
    %90 = vector.extract_strided_slice %75 {offsets = [0, 384], sizes = [2, 128], strides = [1, 1]} : vector<2x512xf32> to vector<2x128xf32>
    %91 = arith.negf %90 : vector<2x128xf32>
    %92 = math.exp %91 : vector<2x128xf32>
    %cst_31 = arith.constant 1.000000e+00 : f32
    %93 = vector.broadcast %cst_31 : f32 to vector<2x128xf32>
    %94 = arith.addf %93, %92 : vector<2x128xf32>
    %95 = arith.divf %93, %94 : vector<2x128xf32>
    %96 = arith.mulf %87, %38 : vector<2x128xf32>
    %97 = arith.mulf %81, %89 : vector<2x128xf32>
    %98 = arith.addf %96, %97 : vector<2x128xf32>
    %99 = math.tanh %98 : vector<2x128xf32>
    %100 = arith.mulf %95, %99 : vector<2x128xf32>
    %101 = tpu.concatenate %100, %71 in 1 : vector<2x128xf32>, vector<2x128xf32> -> vector<2x256xf32>
    %c0_32 = arith.constant 0 : index
    %c0_33 = arith.constant 0 : index
    %102 = vector.load %arg1[%c0_32, %c0_33] : memref<256x1024xf32, #tpu.memory_space<vmem>>, vector<256x1024xf32>
    %cst_34 = arith.constant dense<0.000000e+00> : vector<2x1024xf32>
    %103 = tpu.matmul %101, %102, %cst_34 {dimension_numbers = #tpu.dot_dimension_numbers<[1], [0], [0], [1], [0, 0, 1, 1], [], []>} : vector<2x256xf32>, vector<256x1024xf32>, vector<2x1024xf32> -> vector<2x1024xf32>
    %104 = vector.extract_strided_slice %103 {offsets = [0, 512], sizes = [2, 512], strides = [1, 1]} : vector<2x1024xf32> to vector<2x512xf32>
    %105 = vector.broadcast %0 : vector<1x512xf32> to vector<2x512xf32>
    %106 = arith.addf %104, %105 : vector<2x512xf32>
    %107 = vector.extract_strided_slice %106 {offsets = [0, 0], sizes = [2, 128], strides = [1, 1]} : vector<2x512xf32> to vector<2x128xf32>
    %108 = arith.negf %107 : vector<2x128xf32>
    %109 = math.exp %108 : vector<2x128xf32>
    %cst_35 = arith.constant 1.000000e+00 : f32
    %110 = vector.broadcast %cst_35 : f32 to vector<2x128xf32>
    %111 = arith.addf %110, %109 : vector<2x128xf32>
    %112 = arith.divf %110, %111 : vector<2x128xf32>
    %113 = vector.extract_strided_slice %106 {offsets = [0, 128], sizes = [2, 128], strides = [1, 1]} : vector<2x512xf32> to vector<2x128xf32>
    %114 = arith.negf %113 : vector<2x128xf32>
    %115 = math.exp %114 : vector<2x128xf32>
    %cst_36 = arith.constant 1.000000e+00 : f32
    %116 = vector.broadcast %cst_36 : f32 to vector<2x128xf32>
    %117 = arith.addf %116, %115 : vector<2x128xf32>
    %118 = arith.divf %116, %117 : vector<2x128xf32>
    %119 = vector.extract_strided_slice %106 {offsets = [0, 256], sizes = [2, 128], strides = [1, 1]} : vector<2x512xf32> to vector<2x128xf32>
    %120 = math.tanh %119 : vector<2x128xf32>
    %121 = vector.extract_strided_slice %106 {offsets = [0, 384], sizes = [2, 128], strides = [1, 1]} : vector<2x512xf32> to vector<2x128xf32>
    %122 = arith.negf %121 : vector<2x128xf32>
    %123 = math.exp %122 : vector<2x128xf32>
    %cst_37 = arith.constant 1.000000e+00 : f32
    %124 = vector.broadcast %cst_37 : f32 to vector<2x128xf32>
    %125 = arith.addf %124, %123 : vector<2x128xf32>
    %126 = arith.divf %124, %125 : vector<2x128xf32>
    %127 = arith.mulf %118, %69 : vector<2x128xf32>
    %128 = arith.mulf %112, %120 : vector<2x128xf32>
    %129 = arith.addf %127, %128 : vector<2x128xf32>
    %130 = math.tanh %129 : vector<2x128xf32>
    %131 = arith.mulf %126, %130 : vector<2x128xf32>
    %132 = vector.extract_strided_slice %103 {offsets = [0, 0], sizes = [2, 512], strides = [1, 1]} : vector<2x1024xf32> to vector<2x512xf32>
    %c2 = arith.constant 2 : index
    %c0_38 = arith.constant 0 : index
    %c0_39 = arith.constant 0 : index
    %133 = vector.load %arg0[%c2, %c0_38, %c0_39] : memref<8x2x512xf32, #tpu.memory_space<vmem>>, vector<1x2x512xf32>
    %134 = vector.shape_cast %133 : vector<1x2x512xf32> to vector<2x512xf32>
    %135 = arith.addf %132, %134 : vector<2x512xf32>
    %136 = vector.extract_strided_slice %135 {offsets = [0, 0], sizes = [2, 128], strides = [1, 1]} : vector<2x512xf32> to vector<2x128xf32>
    %137 = arith.negf %136 : vector<2x128xf32>
    %138 = math.exp %137 : vector<2x128xf32>
    %cst_40 = arith.constant 1.000000e+00 : f32
    %139 = vector.broadcast %cst_40 : f32 to vector<2x128xf32>
    %140 = arith.addf %139, %138 : vector<2x128xf32>
    %141 = arith.divf %139, %140 : vector<2x128xf32>
    %142 = vector.extract_strided_slice %135 {offsets = [0, 128], sizes = [2, 128], strides = [1, 1]} : vector<2x512xf32> to vector<2x128xf32>
    %143 = arith.negf %142 : vector<2x128xf32>
    %144 = math.exp %143 : vector<2x128xf32>
    %cst_41 = arith.constant 1.000000e+00 : f32
    %145 = vector.broadcast %cst_41 : f32 to vector<2x128xf32>
    %146 = arith.addf %145, %144 : vector<2x128xf32>
    %147 = arith.divf %145, %146 : vector<2x128xf32>
    %148 = vector.extract_strided_slice %135 {offsets = [0, 256], sizes = [2, 128], strides = [1, 1]} : vector<2x512xf32> to vector<2x128xf32>
    %149 = math.tanh %148 : vector<2x128xf32>
    %150 = vector.extract_strided_slice %135 {offsets = [0, 384], sizes = [2, 128], strides = [1, 1]} : vector<2x512xf32> to vector<2x128xf32>
    %151 = arith.negf %150 : vector<2x128xf32>
    %152 = math.exp %151 : vector<2x128xf32>
    %cst_42 = arith.constant 1.000000e+00 : f32
    %153 = vector.broadcast %cst_42 : f32 to vector<2x128xf32>
    %154 = arith.addf %153, %152 : vector<2x128xf32>
    %155 = arith.divf %153, %154 : vector<2x128xf32>
    %156 = arith.mulf %147, %98 : vector<2x128xf32>
    %157 = arith.mulf %141, %149 : vector<2x128xf32>
    %158 = arith.addf %156, %157 : vector<2x128xf32>
    %159 = math.tanh %158 : vector<2x128xf32>
    %160 = arith.mulf %155, %159 : vector<2x128xf32>
    %161 = tpu.concatenate %160, %131 in 1 : vector<2x128xf32>, vector<2x128xf32> -> vector<2x256xf32>
    %c0_43 = arith.constant 0 : index
    %c0_44 = arith.constant 0 : index
    %162 = vector.load %arg1[%c0_43, %c0_44] : memref<256x1024xf32, #tpu.memory_space<vmem>>, vector<256x1024xf32>
    %cst_45 = arith.constant dense<0.000000e+00> : vector<2x1024xf32>
    %163 = tpu.matmul %161, %162, %cst_45 {dimension_numbers = #tpu.dot_dimension_numbers<[1], [0], [0], [1], [0, 0, 1, 1], [], []>} : vector<2x256xf32>, vector<256x1024xf32>, vector<2x1024xf32> -> vector<2x1024xf32>
    %164 = vector.extract_strided_slice %163 {offsets = [0, 512], sizes = [2, 512], strides = [1, 1]} : vector<2x1024xf32> to vector<2x512xf32>
    %165 = vector.broadcast %0 : vector<1x512xf32> to vector<2x512xf32>
    %166 = arith.addf %164, %165 : vector<2x512xf32>
    %167 = vector.extract_strided_slice %166 {offsets = [0, 0], sizes = [2, 128], strides = [1, 1]} : vector<2x512xf32> to vector<2x128xf32>
    %168 = arith.negf %167 : vector<2x128xf32>
    %169 = math.exp %168 : vector<2x128xf32>
    %cst_46 = arith.constant 1.000000e+00 : f32
    %170 = vector.broadcast %cst_46 : f32 to vector<2x128xf32>
    %171 = arith.addf %170, %169 : vector<2x128xf32>
    %172 = arith.divf %170, %171 : vector<2x128xf32>
    %173 = vector.extract_strided_slice %166 {offsets = [0, 128], sizes = [2, 128], strides = [1, 1]} : vector<2x512xf32> to vector<2x128xf32>
    %174 = arith.negf %173 : vector<2x128xf32>
    %175 = math.exp %174 : vector<2x128xf32>
    %cst_47 = arith.constant 1.000000e+00 : f32
    %176 = vector.broadcast %cst_47 : f32 to vector<2x128xf32>
    %177 = arith.addf %176, %175 : vector<2x128xf32>
    %178 = arith.divf %176, %177 : vector<2x128xf32>
    %179 = vector.extract_strided_slice %166 {offsets = [0, 256], sizes = [2, 128], strides = [1, 1]} : vector<2x512xf32> to vector<2x128xf32>
    %180 = math.tanh %179 : vector<2x128xf32>
    %181 = vector.extract_strided_slice %166 {offsets = [0, 384], sizes = [2, 128], strides = [1, 1]} : vector<2x512xf32> to vector<2x128xf32>
    %182 = arith.negf %181 : vector<2x128xf32>
    %183 = math.exp %182 : vector<2x128xf32>
    %cst_48 = arith.constant 1.000000e+00 : f32
    %184 = vector.broadcast %cst_48 : f32 to vector<2x128xf32>
    %185 = arith.addf %184, %183 : vector<2x128xf32>
    %186 = arith.divf %184, %185 : vector<2x128xf32>
    %187 = arith.mulf %178, %129 : vector<2x128xf32>
    %188 = arith.mulf %172, %180 : vector<2x128xf32>
    %189 = arith.addf %187, %188 : vector<2x128xf32>
    %190 = math.tanh %189 : vector<2x128xf32>
    %191 = arith.mulf %186, %190 : vector<2x128xf32>
    %192 = vector.extract_strided_slice %163 {offsets = [0, 0], sizes = [2, 512], strides = [1, 1]} : vector<2x1024xf32> to vector<2x512xf32>
    %c3 = arith.constant 3 : index
    %c0_49 = arith.constant 0 : index
    %c0_50 = arith.constant 0 : index
    %193 = vector.load %arg0[%c3, %c0_49, %c0_50] : memref<8x2x512xf32, #tpu.memory_space<vmem>>, vector<1x2x512xf32>
    %194 = vector.shape_cast %193 : vector<1x2x512xf32> to vector<2x512xf32>
    %195 = arith.addf %192, %194 : vector<2x512xf32>
    %196 = vector.extract_strided_slice %195 {offsets = [0, 0], sizes = [2, 128], strides = [1, 1]} : vector<2x512xf32> to vector<2x128xf32>
    %197 = arith.negf %196 : vector<2x128xf32>
    %198 = math.exp %197 : vector<2x128xf32>
    %cst_51 = arith.constant 1.000000e+00 : f32
    %199 = vector.broadcast %cst_51 : f32 to vector<2x128xf32>
    %200 = arith.addf %199, %198 : vector<2x128xf32>
    %201 = arith.divf %199, %200 : vector<2x128xf32>
    %202 = vector.extract_strided_slice %195 {offsets = [0, 128], sizes = [2, 128], strides = [1, 1]} : vector<2x512xf32> to vector<2x128xf32>
    %203 = arith.negf %202 : vector<2x128xf32>
    %204 = math.exp %203 : vector<2x128xf32>
    %cst_52 = arith.constant 1.000000e+00 : f32
    %205 = vector.broadcast %cst_52 : f32 to vector<2x128xf32>
    %206 = arith.addf %205, %204 : vector<2x128xf32>
    %207 = arith.divf %205, %206 : vector<2x128xf32>
    %208 = vector.extract_strided_slice %195 {offsets = [0, 256], sizes = [2, 128], strides = [1, 1]} : vector<2x512xf32> to vector<2x128xf32>
    %209 = math.tanh %208 : vector<2x128xf32>
    %210 = vector.extract_strided_slice %195 {offsets = [0, 384], sizes = [2, 128], strides = [1, 1]} : vector<2x512xf32> to vector<2x128xf32>
    %211 = arith.negf %210 : vector<2x128xf32>
    %212 = math.exp %211 : vector<2x128xf32>
    %cst_53 = arith.constant 1.000000e+00 : f32
    %213 = vector.broadcast %cst_53 : f32 to vector<2x128xf32>
    %214 = arith.addf %213, %212 : vector<2x128xf32>
    %215 = arith.divf %213, %214 : vector<2x128xf32>
    %216 = arith.mulf %207, %158 : vector<2x128xf32>
    %217 = arith.mulf %201, %209 : vector<2x128xf32>
    %218 = arith.addf %216, %217 : vector<2x128xf32>
    %219 = math.tanh %218 : vector<2x128xf32>
    %220 = arith.mulf %215, %219 : vector<2x128xf32>
    %221 = tpu.concatenate %220, %191 in 1 : vector<2x128xf32>, vector<2x128xf32> -> vector<2x256xf32>
    %c0_54 = arith.constant 0 : index
    %c0_55 = arith.constant 0 : index
    %222 = vector.load %arg1[%c0_54, %c0_55] : memref<256x1024xf32, #tpu.memory_space<vmem>>, vector<256x1024xf32>
    %cst_56 = arith.constant dense<0.000000e+00> : vector<2x1024xf32>
    %223 = tpu.matmul %221, %222, %cst_56 {dimension_numbers = #tpu.dot_dimension_numbers<[1], [0], [0], [1], [0, 0, 1, 1], [], []>} : vector<2x256xf32>, vector<256x1024xf32>, vector<2x1024xf32> -> vector<2x1024xf32>
    %224 = vector.extract_strided_slice %223 {offsets = [0, 512], sizes = [2, 512], strides = [1, 1]} : vector<2x1024xf32> to vector<2x512xf32>
    %225 = vector.broadcast %0 : vector<1x512xf32> to vector<2x512xf32>
    %226 = arith.addf %224, %225 : vector<2x512xf32>
    %227 = vector.extract_strided_slice %226 {offsets = [0, 0], sizes = [2, 128], strides = [1, 1]} : vector<2x512xf32> to vector<2x128xf32>
    %228 = arith.negf %227 : vector<2x128xf32>
    %229 = math.exp %228 : vector<2x128xf32>
    %cst_57 = arith.constant 1.000000e+00 : f32
    %230 = vector.broadcast %cst_57 : f32 to vector<2x128xf32>
    %231 = arith.addf %230, %229 : vector<2x128xf32>
    %232 = arith.divf %230, %231 : vector<2x128xf32>
    %233 = vector.extract_strided_slice %226 {offsets = [0, 128], sizes = [2, 128], strides = [1, 1]} : vector<2x512xf32> to vector<2x128xf32>
    %234 = arith.negf %233 : vector<2x128xf32>
    %235 = math.exp %234 : vector<2x128xf32>
    %cst_58 = arith.constant 1.000000e+00 : f32
    %236 = vector.broadcast %cst_58 : f32 to vector<2x128xf32>
    %237 = arith.addf %236, %235 : vector<2x128xf32>
    %238 = arith.divf %236, %237 : vector<2x128xf32>
    %239 = vector.extract_strided_slice %226 {offsets = [0, 256], sizes = [2, 128], strides = [1, 1]} : vector<2x512xf32> to vector<2x128xf32>
    %240 = math.tanh %239 : vector<2x128xf32>
    %241 = vector.extract_strided_slice %226 {offsets = [0, 384], sizes = [2, 128], strides = [1, 1]} : vector<2x512xf32> to vector<2x128xf32>
    %242 = arith.negf %241 : vector<2x128xf32>
    %243 = math.exp %242 : vector<2x128xf32>
    %cst_59 = arith.constant 1.000000e+00 : f32
    %244 = vector.broadcast %cst_59 : f32 to vector<2x128xf32>
    %245 = arith.addf %244, %243 : vector<2x128xf32>
    %246 = arith.divf %244, %245 : vector<2x128xf32>
    %247 = arith.mulf %238, %189 : vector<2x128xf32>
    %248 = arith.mulf %232, %240 : vector<2x128xf32>
    %249 = arith.addf %247, %248 : vector<2x128xf32>
    %250 = math.tanh %249 : vector<2x128xf32>
    %251 = arith.mulf %246, %250 : vector<2x128xf32>
    %252 = vector.extract_strided_slice %223 {offsets = [0, 0], sizes = [2, 512], strides = [1, 1]} : vector<2x1024xf32> to vector<2x512xf32>
    %c4 = arith.constant 4 : index
    %c0_60 = arith.constant 0 : index
    %c0_61 = arith.constant 0 : index
    %253 = vector.load %arg0[%c4, %c0_60, %c0_61] : memref<8x2x512xf32, #tpu.memory_space<vmem>>, vector<1x2x512xf32>
    %254 = vector.shape_cast %253 : vector<1x2x512xf32> to vector<2x512xf32>
    %255 = arith.addf %252, %254 : vector<2x512xf32>
    %256 = vector.extract_strided_slice %255 {offsets = [0, 0], sizes = [2, 128], strides = [1, 1]} : vector<2x512xf32> to vector<2x128xf32>
    %257 = arith.negf %256 : vector<2x128xf32>
    %258 = math.exp %257 : vector<2x128xf32>
    %cst_62 = arith.constant 1.000000e+00 : f32
    %259 = vector.broadcast %cst_62 : f32 to vector<2x128xf32>
    %260 = arith.addf %259, %258 : vector<2x128xf32>
    %261 = arith.divf %259, %260 : vector<2x128xf32>
    %262 = vector.extract_strided_slice %255 {offsets = [0, 128], sizes = [2, 128], strides = [1, 1]} : vector<2x512xf32> to vector<2x128xf32>
    %263 = arith.negf %262 : vector<2x128xf32>
    %264 = math.exp %263 : vector<2x128xf32>
    %cst_63 = arith.constant 1.000000e+00 : f32
    %265 = vector.broadcast %cst_63 : f32 to vector<2x128xf32>
    %266 = arith.addf %265, %264 : vector<2x128xf32>
    %267 = arith.divf %265, %266 : vector<2x128xf32>
    %268 = vector.extract_strided_slice %255 {offsets = [0, 256], sizes = [2, 128], strides = [1, 1]} : vector<2x512xf32> to vector<2x128xf32>
    %269 = math.tanh %268 : vector<2x128xf32>
    %270 = vector.extract_strided_slice %255 {offsets = [0, 384], sizes = [2, 128], strides = [1, 1]} : vector<2x512xf32> to vector<2x128xf32>
    %271 = arith.negf %270 : vector<2x128xf32>
    %272 = math.exp %271 : vector<2x128xf32>
    %cst_64 = arith.constant 1.000000e+00 : f32
    %273 = vector.broadcast %cst_64 : f32 to vector<2x128xf32>
    %274 = arith.addf %273, %272 : vector<2x128xf32>
    %275 = arith.divf %273, %274 : vector<2x128xf32>
    %276 = arith.mulf %267, %218 : vector<2x128xf32>
    %277 = arith.mulf %261, %269 : vector<2x128xf32>
    %278 = arith.addf %276, %277 : vector<2x128xf32>
    %279 = math.tanh %278 : vector<2x128xf32>
    %280 = arith.mulf %275, %279 : vector<2x128xf32>
    %281 = tpu.concatenate %280, %251 in 1 : vector<2x128xf32>, vector<2x128xf32> -> vector<2x256xf32>
    %c0_65 = arith.constant 0 : index
    %c0_66 = arith.constant 0 : index
    %282 = vector.load %arg1[%c0_65, %c0_66] : memref<256x1024xf32, #tpu.memory_space<vmem>>, vector<256x1024xf32>
    %cst_67 = arith.constant dense<0.000000e+00> : vector<2x1024xf32>
    %283 = tpu.matmul %281, %282, %cst_67 {dimension_numbers = #tpu.dot_dimension_numbers<[1], [0], [0], [1], [0, 0, 1, 1], [], []>} : vector<2x256xf32>, vector<256x1024xf32>, vector<2x1024xf32> -> vector<2x1024xf32>
    %284 = vector.extract_strided_slice %283 {offsets = [0, 512], sizes = [2, 512], strides = [1, 1]} : vector<2x1024xf32> to vector<2x512xf32>
    %285 = vector.broadcast %0 : vector<1x512xf32> to vector<2x512xf32>
    %286 = arith.addf %284, %285 : vector<2x512xf32>
    %287 = vector.extract_strided_slice %286 {offsets = [0, 0], sizes = [2, 128], strides = [1, 1]} : vector<2x512xf32> to vector<2x128xf32>
    %288 = arith.negf %287 : vector<2x128xf32>
    %289 = math.exp %288 : vector<2x128xf32>
    %cst_68 = arith.constant 1.000000e+00 : f32
    %290 = vector.broadcast %cst_68 : f32 to vector<2x128xf32>
    %291 = arith.addf %290, %289 : vector<2x128xf32>
    %292 = arith.divf %290, %291 : vector<2x128xf32>
    %293 = vector.extract_strided_slice %286 {offsets = [0, 128], sizes = [2, 128], strides = [1, 1]} : vector<2x512xf32> to vector<2x128xf32>
    %294 = arith.negf %293 : vector<2x128xf32>
    %295 = math.exp %294 : vector<2x128xf32>
    %cst_69 = arith.constant 1.000000e+00 : f32
    %296 = vector.broadcast %cst_69 : f32 to vector<2x128xf32>
    %297 = arith.addf %296, %295 : vector<2x128xf32>
    %298 = arith.divf %296, %297 : vector<2x128xf32>
    %299 = vector.extract_strided_slice %286 {offsets = [0, 256], sizes = [2, 128], strides = [1, 1]} : vector<2x512xf32> to vector<2x128xf32>
    %300 = math.tanh %299 : vector<2x128xf32>
    %301 = vector.extract_strided_slice %286 {offsets = [0, 384], sizes = [2, 128], strides = [1, 1]} : vector<2x512xf32> to vector<2x128xf32>
    %302 = arith.negf %301 : vector<2x128xf32>
    %303 = math.exp %302 : vector<2x128xf32>
    %cst_70 = arith.constant 1.000000e+00 : f32
    %304 = vector.broadcast %cst_70 : f32 to vector<2x128xf32>
    %305 = arith.addf %304, %303 : vector<2x128xf32>
    %306 = arith.divf %304, %305 : vector<2x128xf32>
    %307 = arith.mulf %298, %249 : vector<2x128xf32>
    %308 = arith.mulf %292, %300 : vector<2x128xf32>
    %309 = arith.addf %307, %308 : vector<2x128xf32>
    %310 = math.tanh %309 : vector<2x128xf32>
    %311 = arith.mulf %306, %310 : vector<2x128xf32>
    %312 = vector.extract_strided_slice %283 {offsets = [0, 0], sizes = [2, 512], strides = [1, 1]} : vector<2x1024xf32> to vector<2x512xf32>
    %c5 = arith.constant 5 : index
    %c0_71 = arith.constant 0 : index
    %c0_72 = arith.constant 0 : index
    %313 = vector.load %arg0[%c5, %c0_71, %c0_72] : memref<8x2x512xf32, #tpu.memory_space<vmem>>, vector<1x2x512xf32>
    %314 = vector.shape_cast %313 : vector<1x2x512xf32> to vector<2x512xf32>
    %315 = arith.addf %312, %314 : vector<2x512xf32>
    %316 = vector.extract_strided_slice %315 {offsets = [0, 0], sizes = [2, 128], strides = [1, 1]} : vector<2x512xf32> to vector<2x128xf32>
    %317 = arith.negf %316 : vector<2x128xf32>
    %318 = math.exp %317 : vector<2x128xf32>
    %cst_73 = arith.constant 1.000000e+00 : f32
    %319 = vector.broadcast %cst_73 : f32 to vector<2x128xf32>
    %320 = arith.addf %319, %318 : vector<2x128xf32>
    %321 = arith.divf %319, %320 : vector<2x128xf32>
    %322 = vector.extract_strided_slice %315 {offsets = [0, 128], sizes = [2, 128], strides = [1, 1]} : vector<2x512xf32> to vector<2x128xf32>
    %323 = arith.negf %322 : vector<2x128xf32>
    %324 = math.exp %323 : vector<2x128xf32>
    %cst_74 = arith.constant 1.000000e+00 : f32
    %325 = vector.broadcast %cst_74 : f32 to vector<2x128xf32>
    %326 = arith.addf %325, %324 : vector<2x128xf32>
    %327 = arith.divf %325, %326 : vector<2x128xf32>
    %328 = vector.extract_strided_slice %315 {offsets = [0, 256], sizes = [2, 128], strides = [1, 1]} : vector<2x512xf32> to vector<2x128xf32>
    %329 = math.tanh %328 : vector<2x128xf32>
    %330 = vector.extract_strided_slice %315 {offsets = [0, 384], sizes = [2, 128], strides = [1, 1]} : vector<2x512xf32> to vector<2x128xf32>
    %331 = arith.negf %330 : vector<2x128xf32>
    %332 = math.exp %331 : vector<2x128xf32>
    %cst_75 = arith.constant 1.000000e+00 : f32
    %333 = vector.broadcast %cst_75 : f32 to vector<2x128xf32>
    %334 = arith.addf %333, %332 : vector<2x128xf32>
    %335 = arith.divf %333, %334 : vector<2x128xf32>
    %336 = arith.mulf %327, %278 : vector<2x128xf32>
    %337 = arith.mulf %321, %329 : vector<2x128xf32>
    %338 = arith.addf %336, %337 : vector<2x128xf32>
    %339 = math.tanh %338 : vector<2x128xf32>
    %340 = arith.mulf %335, %339 : vector<2x128xf32>
    %341 = tpu.concatenate %340, %311 in 1 : vector<2x128xf32>, vector<2x128xf32> -> vector<2x256xf32>
    %c0_76 = arith.constant 0 : index
    %c0_77 = arith.constant 0 : index
    %342 = vector.load %arg1[%c0_76, %c0_77] : memref<256x1024xf32, #tpu.memory_space<vmem>>, vector<256x1024xf32>
    %cst_78 = arith.constant dense<0.000000e+00> : vector<2x1024xf32>
    %343 = tpu.matmul %341, %342, %cst_78 {dimension_numbers = #tpu.dot_dimension_numbers<[1], [0], [0], [1], [0, 0, 1, 1], [], []>} : vector<2x256xf32>, vector<256x1024xf32>, vector<2x1024xf32> -> vector<2x1024xf32>
    %344 = vector.extract_strided_slice %343 {offsets = [0, 512], sizes = [2, 512], strides = [1, 1]} : vector<2x1024xf32> to vector<2x512xf32>
    %345 = vector.broadcast %0 : vector<1x512xf32> to vector<2x512xf32>
    %346 = arith.addf %344, %345 : vector<2x512xf32>
    %347 = vector.extract_strided_slice %346 {offsets = [0, 0], sizes = [2, 128], strides = [1, 1]} : vector<2x512xf32> to vector<2x128xf32>
    %348 = arith.negf %347 : vector<2x128xf32>
    %349 = math.exp %348 : vector<2x128xf32>
    %cst_79 = arith.constant 1.000000e+00 : f32
    %350 = vector.broadcast %cst_79 : f32 to vector<2x128xf32>
    %351 = arith.addf %350, %349 : vector<2x128xf32>
    %352 = arith.divf %350, %351 : vector<2x128xf32>
    %353 = vector.extract_strided_slice %346 {offsets = [0, 128], sizes = [2, 128], strides = [1, 1]} : vector<2x512xf32> to vector<2x128xf32>
    %354 = arith.negf %353 : vector<2x128xf32>
    %355 = math.exp %354 : vector<2x128xf32>
    %cst_80 = arith.constant 1.000000e+00 : f32
    %356 = vector.broadcast %cst_80 : f32 to vector<2x128xf32>
    %357 = arith.addf %356, %355 : vector<2x128xf32>
    %358 = arith.divf %356, %357 : vector<2x128xf32>
    %359 = vector.extract_strided_slice %346 {offsets = [0, 256], sizes = [2, 128], strides = [1, 1]} : vector<2x512xf32> to vector<2x128xf32>
    %360 = math.tanh %359 : vector<2x128xf32>
    %361 = vector.extract_strided_slice %346 {offsets = [0, 384], sizes = [2, 128], strides = [1, 1]} : vector<2x512xf32> to vector<2x128xf32>
    %362 = arith.negf %361 : vector<2x128xf32>
    %363 = math.exp %362 : vector<2x128xf32>
    %cst_81 = arith.constant 1.000000e+00 : f32
    %364 = vector.broadcast %cst_81 : f32 to vector<2x128xf32>
    %365 = arith.addf %364, %363 : vector<2x128xf32>
    %366 = arith.divf %364, %365 : vector<2x128xf32>
    %367 = arith.mulf %358, %309 : vector<2x128xf32>
    %368 = arith.mulf %352, %360 : vector<2x128xf32>
    %369 = arith.addf %367, %368 : vector<2x128xf32>
    %370 = math.tanh %369 : vector<2x128xf32>
    %371 = arith.mulf %366, %370 : vector<2x128xf32>
    %372 = vector.extract_strided_slice %343 {offsets = [0, 0], sizes = [2, 512], strides = [1, 1]} : vector<2x1024xf32> to vector<2x512xf32>
    %c6 = arith.constant 6 : index
    %c0_82 = arith.constant 0 : index
    %c0_83 = arith.constant 0 : index
    %373 = vector.load %arg0[%c6, %c0_82, %c0_83] : memref<8x2x512xf32, #tpu.memory_space<vmem>>, vector<1x2x512xf32>
    %374 = vector.shape_cast %373 : vector<1x2x512xf32> to vector<2x512xf32>
    %375 = arith.addf %372, %374 : vector<2x512xf32>
    %376 = vector.extract_strided_slice %375 {offsets = [0, 0], sizes = [2, 128], strides = [1, 1]} : vector<2x512xf32> to vector<2x128xf32>
    %377 = arith.negf %376 : vector<2x128xf32>
    %378 = math.exp %377 : vector<2x128xf32>
    %cst_84 = arith.constant 1.000000e+00 : f32
    %379 = vector.broadcast %cst_84 : f32 to vector<2x128xf32>
    %380 = arith.addf %379, %378 : vector<2x128xf32>
    %381 = arith.divf %379, %380 : vector<2x128xf32>
    %382 = vector.extract_strided_slice %375 {offsets = [0, 128], sizes = [2, 128], strides = [1, 1]} : vector<2x512xf32> to vector<2x128xf32>
    %383 = arith.negf %382 : vector<2x128xf32>
    %384 = math.exp %383 : vector<2x128xf32>
    %cst_85 = arith.constant 1.000000e+00 : f32
    %385 = vector.broadcast %cst_85 : f32 to vector<2x128xf32>
    %386 = arith.addf %385, %384 : vector<2x128xf32>
    %387 = arith.divf %385, %386 : vector<2x128xf32>
    %388 = vector.extract_strided_slice %375 {offsets = [0, 256], sizes = [2, 128], strides = [1, 1]} : vector<2x512xf32> to vector<2x128xf32>
    %389 = math.tanh %388 : vector<2x128xf32>
    %390 = vector.extract_strided_slice %375 {offsets = [0, 384], sizes = [2, 128], strides = [1, 1]} : vector<2x512xf32> to vector<2x128xf32>
    %391 = arith.negf %390 : vector<2x128xf32>
    %392 = math.exp %391 : vector<2x128xf32>
    %cst_86 = arith.constant 1.000000e+00 : f32
    %393 = vector.broadcast %cst_86 : f32 to vector<2x128xf32>
    %394 = arith.addf %393, %392 : vector<2x128xf32>
    %395 = arith.divf %393, %394 : vector<2x128xf32>
    %396 = arith.mulf %387, %338 : vector<2x128xf32>
    %397 = arith.mulf %381, %389 : vector<2x128xf32>
    %398 = arith.addf %396, %397 : vector<2x128xf32>
    %399 = math.tanh %398 : vector<2x128xf32>
    %400 = arith.mulf %395, %399 : vector<2x128xf32>
    %401 = tpu.concatenate %400, %371 in 1 : vector<2x128xf32>, vector<2x128xf32> -> vector<2x256xf32>
    %c0_87 = arith.constant 0 : index
    %c0_88 = arith.constant 0 : index
    %402 = vector.load %arg1[%c0_87, %c0_88] : memref<256x1024xf32, #tpu.memory_space<vmem>>, vector<256x1024xf32>
    %cst_89 = arith.constant dense<0.000000e+00> : vector<2x1024xf32>
    %403 = tpu.matmul %401, %402, %cst_89 {dimension_numbers = #tpu.dot_dimension_numbers<[1], [0], [0], [1], [0, 0, 1, 1], [], []>} : vector<2x256xf32>, vector<256x1024xf32>, vector<2x1024xf32> -> vector<2x1024xf32>
    %404 = vector.extract_strided_slice %403 {offsets = [0, 512], sizes = [2, 512], strides = [1, 1]} : vector<2x1024xf32> to vector<2x512xf32>
    %405 = vector.broadcast %0 : vector<1x512xf32> to vector<2x512xf32>
    %406 = arith.addf %404, %405 : vector<2x512xf32>
    %407 = vector.extract_strided_slice %406 {offsets = [0, 0], sizes = [2, 128], strides = [1, 1]} : vector<2x512xf32> to vector<2x128xf32>
    %408 = arith.negf %407 : vector<2x128xf32>
    %409 = math.exp %408 : vector<2x128xf32>
    %cst_90 = arith.constant 1.000000e+00 : f32
    %410 = vector.broadcast %cst_90 : f32 to vector<2x128xf32>
    %411 = arith.addf %410, %409 : vector<2x128xf32>
    %412 = arith.divf %410, %411 : vector<2x128xf32>
    %413 = vector.extract_strided_slice %406 {offsets = [0, 128], sizes = [2, 128], strides = [1, 1]} : vector<2x512xf32> to vector<2x128xf32>
    %414 = arith.negf %413 : vector<2x128xf32>
    %415 = math.exp %414 : vector<2x128xf32>
    %cst_91 = arith.constant 1.000000e+00 : f32
    %416 = vector.broadcast %cst_91 : f32 to vector<2x128xf32>
    %417 = arith.addf %416, %415 : vector<2x128xf32>
    %418 = arith.divf %416, %417 : vector<2x128xf32>
    %419 = vector.extract_strided_slice %406 {offsets = [0, 256], sizes = [2, 128], strides = [1, 1]} : vector<2x512xf32> to vector<2x128xf32>
    %420 = math.tanh %419 : vector<2x128xf32>
    %421 = vector.extract_strided_slice %406 {offsets = [0, 384], sizes = [2, 128], strides = [1, 1]} : vector<2x512xf32> to vector<2x128xf32>
    %422 = arith.negf %421 : vector<2x128xf32>
    %423 = math.exp %422 : vector<2x128xf32>
    %cst_92 = arith.constant 1.000000e+00 : f32
    %424 = vector.broadcast %cst_92 : f32 to vector<2x128xf32>
    %425 = arith.addf %424, %423 : vector<2x128xf32>
    %426 = arith.divf %424, %425 : vector<2x128xf32>
    %427 = arith.mulf %418, %369 : vector<2x128xf32>
    %428 = arith.mulf %412, %420 : vector<2x128xf32>
    %429 = arith.addf %427, %428 : vector<2x128xf32>
    %430 = math.tanh %429 : vector<2x128xf32>
    %431 = arith.mulf %426, %430 : vector<2x128xf32>
    %432 = vector.extract_strided_slice %403 {offsets = [0, 0], sizes = [2, 512], strides = [1, 1]} : vector<2x1024xf32> to vector<2x512xf32>
    %c7 = arith.constant 7 : index
    %c0_93 = arith.constant 0 : index
    %c0_94 = arith.constant 0 : index
    %433 = vector.load %arg0[%c7, %c0_93, %c0_94] : memref<8x2x512xf32, #tpu.memory_space<vmem>>, vector<1x2x512xf32>
    %434 = vector.shape_cast %433 : vector<1x2x512xf32> to vector<2x512xf32>
    %435 = arith.addf %432, %434 : vector<2x512xf32>
    %436 = vector.extract_strided_slice %435 {offsets = [0, 0], sizes = [2, 128], strides = [1, 1]} : vector<2x512xf32> to vector<2x128xf32>
    %437 = arith.negf %436 : vector<2x128xf32>
    %438 = math.exp %437 : vector<2x128xf32>
    %cst_95 = arith.constant 1.000000e+00 : f32
    %439 = vector.broadcast %cst_95 : f32 to vector<2x128xf32>
    %440 = arith.addf %439, %438 : vector<2x128xf32>
    %441 = arith.divf %439, %440 : vector<2x128xf32>
    %442 = vector.extract_strided_slice %435 {offsets = [0, 128], sizes = [2, 128], strides = [1, 1]} : vector<2x512xf32> to vector<2x128xf32>
    %443 = arith.negf %442 : vector<2x128xf32>
    %444 = math.exp %443 : vector<2x128xf32>
    %cst_96 = arith.constant 1.000000e+00 : f32
    %445 = vector.broadcast %cst_96 : f32 to vector<2x128xf32>
    %446 = arith.addf %445, %444 : vector<2x128xf32>
    %447 = arith.divf %445, %446 : vector<2x128xf32>
    %448 = vector.extract_strided_slice %435 {offsets = [0, 256], sizes = [2, 128], strides = [1, 1]} : vector<2x512xf32> to vector<2x128xf32>
    %449 = math.tanh %448 : vector<2x128xf32>
    %450 = vector.extract_strided_slice %435 {offsets = [0, 384], sizes = [2, 128], strides = [1, 1]} : vector<2x512xf32> to vector<2x128xf32>
    %451 = arith.negf %450 : vector<2x128xf32>
    %452 = math.exp %451 : vector<2x128xf32>
    %cst_97 = arith.constant 1.000000e+00 : f32
    %453 = vector.broadcast %cst_97 : f32 to vector<2x128xf32>
    %454 = arith.addf %453, %452 : vector<2x128xf32>
    %455 = arith.divf %453, %454 : vector<2x128xf32>
    %456 = arith.mulf %447, %398 : vector<2x128xf32>
    %457 = arith.mulf %441, %449 : vector<2x128xf32>
    %458 = arith.addf %456, %457 : vector<2x128xf32>
    %459 = math.tanh %458 : vector<2x128xf32>
    %460 = arith.mulf %455, %459 : vector<2x128xf32>
    %461 = tpu.concatenate %460, %431 in 1 : vector<2x128xf32>, vector<2x128xf32> -> vector<2x256xf32>
    %c0_98 = arith.constant 0 : index
    %c0_99 = arith.constant 0 : index
    %462 = vector.load %arg1[%c0_98, %c0_99] : memref<256x1024xf32, #tpu.memory_space<vmem>>, vector<256x1024xf32>
    %cst_100 = arith.constant dense<0.000000e+00> : vector<2x1024xf32>
    %463 = tpu.matmul %461, %462, %cst_100 {dimension_numbers = #tpu.dot_dimension_numbers<[1], [0], [0], [1], [0, 0, 1, 1], [], []>} : vector<2x256xf32>, vector<256x1024xf32>, vector<2x1024xf32> -> vector<2x1024xf32>
    %464 = vector.extract_strided_slice %463 {offsets = [0, 512], sizes = [2, 512], strides = [1, 1]} : vector<2x1024xf32> to vector<2x512xf32>
    %465 = vector.broadcast %0 : vector<1x512xf32> to vector<2x512xf32>
    %466 = arith.addf %464, %465 : vector<2x512xf32>
    %467 = vector.extract_strided_slice %466 {offsets = [0, 0], sizes = [2, 128], strides = [1, 1]} : vector<2x512xf32> to vector<2x128xf32>
    %468 = arith.negf %467 : vector<2x128xf32>
    %469 = math.exp %468 : vector<2x128xf32>
    %cst_101 = arith.constant 1.000000e+00 : f32
    %470 = vector.broadcast %cst_101 : f32 to vector<2x128xf32>
    %471 = arith.addf %470, %469 : vector<2x128xf32>
    %472 = arith.divf %470, %471 : vector<2x128xf32>
    %473 = vector.extract_strided_slice %466 {offsets = [0, 128], sizes = [2, 128], strides = [1, 1]} : vector<2x512xf32> to vector<2x128xf32>
    %474 = arith.negf %473 : vector<2x128xf32>
    %475 = math.exp %474 : vector<2x128xf32>
    %cst_102 = arith.constant 1.000000e+00 : f32
    %476 = vector.broadcast %cst_102 : f32 to vector<2x128xf32>
    %477 = arith.addf %476, %475 : vector<2x128xf32>
    %478 = arith.divf %476, %477 : vector<2x128xf32>
    %479 = vector.extract_strided_slice %466 {offsets = [0, 256], sizes = [2, 128], strides = [1, 1]} : vector<2x512xf32> to vector<2x128xf32>
    %480 = math.tanh %479 : vector<2x128xf32>
    %481 = vector.extract_strided_slice %466 {offsets = [0, 384], sizes = [2, 128], strides = [1, 1]} : vector<2x512xf32> to vector<2x128xf32>
    %482 = arith.negf %481 : vector<2x128xf32>
    %483 = math.exp %482 : vector<2x128xf32>
    %cst_103 = arith.constant 1.000000e+00 : f32
    %484 = vector.broadcast %cst_103 : f32 to vector<2x128xf32>
    %485 = arith.addf %484, %483 : vector<2x128xf32>
    %486 = arith.divf %484, %485 : vector<2x128xf32>
    %487 = arith.mulf %478, %429 : vector<2x128xf32>
    %488 = arith.mulf %472, %480 : vector<2x128xf32>
    %489 = arith.addf %487, %488 : vector<2x128xf32>
    %490 = math.tanh %489 : vector<2x128xf32>
    %491 = arith.mulf %486, %490 : vector<2x128xf32>
    %c0_104 = arith.constant 0 : index
    %c0_105 = arith.constant 0 : index
    %c0_106 = arith.constant 0 : index
    %492 = vector.load %arg8[%c0_104, %c0_105, %c0_106] : memref<2x2x128xf32, #tpu.memory_space<vmem>>, vector<1x2x128xf32>
    %493 = vector.shape_cast %492 : vector<1x2x128xf32> to vector<2x128xf32>
    %494 = vector.shape_cast %460 : vector<2x128xf32> to vector<1x2x128xf32>
    tpu.vector_store %arg8[%c0_104, %c0_105, %c0_106], %494 {strides = array<i32>} : memref<2x2x128xf32, #tpu.memory_space<vmem>>, vector<1x2x128xf32>,
    %c1_107 = arith.constant 1 : index
    %c0_108 = arith.constant 0 : index
    %c0_109 = arith.constant 0 : index
    %495 = vector.load %arg8[%c1_107, %c0_108, %c0_109] : memref<2x2x128xf32, #tpu.memory_space<vmem>>, vector<1x2x128xf32>
    %496 = vector.shape_cast %495 : vector<1x2x128xf32> to vector<2x128xf32>
    %497 = vector.shape_cast %491 : vector<2x128xf32> to vector<1x2x128xf32>
    tpu.vector_store %arg8[%c1_107, %c0_108, %c0_109], %497 {strides = array<i32>} : memref<2x2x128xf32, #tpu.memory_space<vmem>>, vector<1x2x128xf32>,
    %c0_110 = arith.constant 0 : index
    %c0_111 = arith.constant 0 : index
    %c0_112 = arith.constant 0 : index
    %498 = vector.load %arg9[%c0_110, %c0_111, %c0_112] : memref<2x2x128xf32, #tpu.memory_space<vmem>>, vector<1x2x128xf32>
    %499 = vector.shape_cast %498 : vector<1x2x128xf32> to vector<2x128xf32>
    %500 = vector.shape_cast %458 : vector<2x128xf32> to vector<1x2x128xf32>
    tpu.vector_store %arg9[%c0_110, %c0_111, %c0_112], %500 {strides = array<i32>} : memref<2x2x128xf32, #tpu.memory_space<vmem>>, vector<1x2x128xf32>,
    %c1_113 = arith.constant 1 : index
    %c0_114 = arith.constant 0 : index
    %c0_115 = arith.constant 0 : index
    %501 = vector.load %arg9[%c1_113, %c0_114, %c0_115] : memref<2x2x128xf32, #tpu.memory_space<vmem>>, vector<1x2x128xf32>
    %502 = vector.shape_cast %501 : vector<1x2x128xf32> to vector<2x128xf32>
    %503 = vector.shape_cast %489 : vector<2x128xf32> to vector<1x2x128xf32>
    tpu.vector_store %arg9[%c1_113, %c0_114, %c0_115], %503 {strides = array<i32>} : memref<2x2x128xf32, #tpu.memory_space<vmem>>, vector<1x2x128xf32>,
    %504 = tpu.concatenate %71, %131, %191, %251, %311, %371, %431, %491 in 0 : vector<2x128xf32>, vector<2x128xf32>, vector<2x128xf32>, vector<2x128xf32>, vector<2x128xf32>, vector<2x128xf32>, vector<2x128xf32>, vector<2x128xf32> -> vector<16x128xf32>
    %c0_116 = arith.constant 0 : index
    %c0_117 = arith.constant 0 : index
    %505 = vector.load %arg3[%c0_116, %c0_117] : memref<128x128xf32, #tpu.memory_space<vmem>>, vector<128x128xf32>
    %cst_118 = arith.constant dense<0.000000e+00> : vector<16x128xf32>
    %506 = tpu.matmul %504, %505, %cst_118 {dimension_numbers = #tpu.dot_dimension_numbers<[1], [0], [0], [1], [0, 0, 1, 1], [], []>} : vector<16x128xf32>, vector<128x128xf32>, vector<16x128xf32> -> vector<16x128xf32>
    %c0_119 = arith.constant 0 : index
    %c0_120 = arith.constant 0 : index
    %507 = vector.load %arg4[%c0_119, %c0_120] : memref<1x128xf32, #tpu.memory_space<vmem>>, vector<1x128xf32>
    %508 = vector.broadcast %507 : vector<1x128xf32> to vector<16x128xf32>
    %509 = arith.addf %506, %508 : vector<16x128xf32>
    %c0_121 = arith.constant 0 : index
    %c0_122 = arith.constant 0 : index
    %510 = vector.load %arg7[%c0_121, %c0_122] : memref<16x128xf32, #tpu.memory_space<vmem>>, vector<16x128xf32>
    tpu.vector_store %arg7[%c0_121, %c0_122], %509 {strides = array<i32>} : memref<16x128xf32, #tpu.memory_space<vmem>>, vector<16x128xf32>,
    return
  }
}

</mosaic_0001>

<llo_original>
// kernel: tpu_custom_call.1
$region0: #{tpu_custom_call.1}
  #allocation0 [shape = 'u32[]', space=smem, size = 0x4, offset = 0x4, fixed_abs, tag = 'smem constant byte address 0x4 - core index']
  #allocation1 [shape = 'u32[72,128]{1,0:T(1,128)}', space=vmem, size = 0x9000, scoped, tag = 'internal scratch']
  %s0 = inlined_call_operand.hbm [shape: f32[8,2,512], index: 0, kind: input, shape index: {}]
  %s1 = inlined_call_operand.hbm [shape: f32[256,1024], index: 1, kind: input, shape index: {}]
  %s2 = inlined_call_operand.hbm [shape: f32[1,512], index: 2, kind: input, shape index: {}]
  %s3 = inlined_call_operand.hbm [shape: f32[128,128], index: 3, kind: input, shape index: {}]
  %s4 = inlined_call_operand.hbm [shape: f32[1,128], index: 4, kind: input, shape index: {}]
  %s5 = inlined_call_operand.vmem [shape: f32[2,2,128], index: 5, kind: input, shape index: {}]
  %s6 = inlined_call_operand.hbm [shape: f32[2,2,128], index: 6, kind: input, shape index: {}]
  %s7 = inlined_call_operand.hbm [shape: f32[16,128], index: 7, kind: output, shape index: {0}]
  %s8 = inlined_call_operand.hbm [shape: f32[2,2,128], index: 8, kind: output, shape index: {1}]
  %s9 = inlined_call_operand.hbm [shape: f32[2,2,128], index: 9, kind: output, shape index: {2}]
  %10 = xla_tuple %s7, %s8, %s9
  %s11 = sld [smem:[#allocation0]]
  $region78: #{tpu_custom_call.1} parent=0
    _
  %s13 = ssub.s32 1, %s11
  %s14 = scalar_select 0, %s13, %s11
  $region1: #{tpu_custom_call.1} parent=0
    #allocation2 [shape = 'u8[32768]{0}', space=vmem, size = 0x8000, scoped, tag = 'input window, operand 0, single buffered']
    #allocation3 [shape = 's32[1]{0}', space=sflag, size = 0x4, scoped, tag = 'scoped memory for tpu_custom_call.1']
    #allocation4 [shape = 's32[1]{0}', space=sflag, size = 0x4, scoped, tag = 'scoped memory for tpu_custom_call.1']
    #allocation5 [shape = 'u8[1048576]{0}', space=vmem, size = 0x100000, scoped, tag = 'input window, operand 1, single buffered']
    #allocation6 [shape = 's32[1]{0}', space=sflag, size = 0x4, scoped, tag = 'scoped memory for tpu_custom_call.1']
    #allocation7 [shape = 'u8[2048]{0}', space=vmem, size = 0x800, scoped, tag = 'input window, operand 2, single buffered']
    #allocation8 [shape = 'u8[65536]{0}', space=vmem, size = 0x10000, scoped, tag = 'input window, operand 3, single buffered']
    #allocation9 [shape = 's32[1]{0}', space=sflag, size = 0x4, scoped, tag = 'scoped memory for tpu_custom_call.1']
    #allocation10 [shape = 'u8[512]{0}', space=vmem, size = 0x400, scoped, tag = 'input window, operand 4, single buffered']
    #allocation11 [shape = 'u8[2048]{0}', space=vmem, size = 0x800, scoped, tag = 'input window, operand 6, single buffered']
    #allocation12 [shape = 's32[1]{0}', space=sflag, size = 0x4, scoped, tag = 'scoped memory for tpu_custom_call.1']
    #allocation13 [shape = 'u8[8192]{0}', space=vmem, size = 0x2000, scoped, tag = 'output window, operand 0, single buffered']
    #allocation14 [shape = 'u8[2048]{0}', space=vmem, size = 0x800, scoped, tag = 'output window, operand 1, single buffered']
    #allocation15 [shape = 's32[1]{0}', space=sflag, size = 0x4, scoped, tag = 'scoped memory for tpu_custom_call.1']
    #allocation16 [shape = 'u8[2048]{0}', space=vmem, size = 0x800, scoped, tag = 'output window, operand 2, single buffered']
    %15 = vsyncpa [#allocation3], 0
    %16 = vsyncpa [#allocation6], 0
    %17 = vsyncpa [#allocation9], 0
    %18 = vsyncpa [#allocation12], 0
    %19 = vsyncpa [#allocation4], 0
    %20 = vsyncpa [#allocation15], 0
    // Predicated region
    $region2: #{tpu_custom_call.1} parent=1 // pred_check
      _
    $region3: #{tpu_custom_call.1} parent=1 // pred_check_branch
      %22 = sbr.rel (0) target = $region5
    $region4: #{tpu_custom_call.1} parent=1 // pred_region
      %24 = vsyncadd [#allocation3], 0
      %s25 = sshll.u32 %s0, 4
      %s26 = int_to_ptr.hbm [resolvable:$true] %s25
      %s27 = sshll.u32 [#allocation2], 4
      %s28 = int_to_ptr.vmem [resolvable:$true] %s27
      %33 = dma.hbm_to_vmem [thread:$0]  %s26, 1024, %s28, [#allocation3], 128, 128, 8
    $region5: #{tpu_custom_call.1} parent=1 // pred_fallthru
      _
    // Predicated region
    $region6: #{tpu_custom_call.1} parent=1 // pred_check
      _
    $region7: #{tpu_custom_call.1} parent=1 // pred_check_branch
      %35 = sbr.rel (0) target = $region9
    $region8: #{tpu_custom_call.1} parent=1 // pred_region
      %37 = vsyncadd [#allocation6], 0
      %s38 = sshll.u32 %s1, 4
      %s39 = int_to_ptr.hbm [resolvable:$true] %s38
      %s40 = sshll.u32 [#allocation5], 4
      %s41 = int_to_ptr.vmem [resolvable:$true] %s40
      %46 = dma.hbm_to_vmem [thread:$0]  %s39, 32768, %s41, [#allocation6], 1024, 1024, 64
    $region9: #{tpu_custom_call.1} parent=1 // pred_fallthru
      _
    // Predicated region
    $region10: #{tpu_custom_call.1} parent=1 // pred_check
      _
    $region11: #{tpu_custom_call.1} parent=1 // pred_check_branch
      %48 = sbr.rel (0) target = $region13
    $region12: #{tpu_custom_call.1} parent=1 // pred_region
      %50 = vsyncadd [#allocation6], 0
      %s52 = sshll.u32 %s2, 4
      %s53 = int_to_ptr.hbm [resolvable:$true] %s52
      %s54 = sshll.u32 [#allocation7], 4
      %s55 = int_to_ptr.vmem [resolvable:$true] %s54
      %57 = dma.hbm_to_vmem [thread:$0]  %s53, 64, %s55, [#allocation6]
    $region13: #{tpu_custom_call.1} parent=1 // pred_fallthru
      _
    // Predicated region
    $region14: #{tpu_custom_call.1} parent=1 // pred_check
      _
    $region15: #{tpu_custom_call.1} parent=1 // pred_check_branch
      %59 = sbr.rel (0) target = $region17
    $region16: #{tpu_custom_call.1} parent=1 // pred_region
      %61 = vsyncadd [#allocation9], 0
      %s62 = sshll.u32 %s3, 4
      %s63 = int_to_ptr.hbm [resolvable:$true] %s62
      %s64 = sshll.u32 [#allocation8], 4
      %s65 = int_to_ptr.vmem [resolvable:$true] %s64
      %70 = dma.hbm_to_vmem [thread:$0]  %s63, 2048, %s65, [#allocation9], 128, 128, 8
    $region17: #{tpu_custom_call.1} parent=1 // pred_fallthru
      _
    // Predicated region
    $region18: #{tpu_custom_call.1} parent=1 // pred_check
      _
    $region19: #{tpu_custom_call.1} parent=1 // pred_check_branch
      %72 = sbr.rel (0) target = $region21
    $region20: #{tpu_custom_call.1} parent=1 // pred_region
      %74 = vsyncadd [#allocation9], 0
      %s76 = sshll.u32 %s4, 4
      %s77 = int_to_ptr.hbm [resolvable:$true] %s76
      %s78 = sshll.u32 [#allocation10], 4
      %s79 = int_to_ptr.vmem [resolvable:$true] %s78
      %81 = dma.hbm_to_vmem [thread:$0]  %s77, 16, %s79, [#allocation9]
    $region21: #{tpu_custom_call.1} parent=1 // pred_fallthru
      _
    // Predicated region
    $region22: #{tpu_custom_call.1} parent=1 // pred_check
      _
    $region23: #{tpu_custom_call.1} parent=1 // pred_check_branch
      %83 = sbr.rel (0) target = $region25
    $region24: #{tpu_custom_call.1} parent=1 // pred_region
      _
    $region25: #{tpu_custom_call.1} parent=1 // pred_fallthru
      _
    // Predicated region
    $region26: #{tpu_custom_call.1} parent=1 // pred_check
      _
    $region27: #{tpu_custom_call.1} parent=1 // pred_check_branch
      %85 = sbr.rel (0) target = $region29
    $region28: #{tpu_custom_call.1} parent=1 // pred_region
      %87 = vsyncadd [#allocation12], 0
      %s88 = sshll.u32 %s6, 4
      %s89 = int_to_ptr.hbm [resolvable:$true] %s88
      %s90 = sshll.u32 [#allocation11], 4
      %s91 = int_to_ptr.vmem [resolvable:$true] %s90
      %96 = dma.hbm_to_vmem [thread:$0]  %s89, 64, %s91, [#allocation12], 32, 32, 2
    $region29: #{tpu_custom_call.1} parent=1 // pred_fallthru
      _
    // Predicated region
    $region30: #{tpu_custom_call.1} parent=1 // pred_check
      _
    $region31: #{tpu_custom_call.1} parent=1 // pred_check_branch
      %98 = sbr.rel (0) target = $region33
    $region32: #{tpu_custom_call.1} parent=1 // pred_region
      %100 = dma.done [#allocation3], 1024
    $region33: #{tpu_custom_call.1} parent=1 // pred_fallthru
      _
    // Predicated region
    $region34: #{tpu_custom_call.1} parent=1 // pred_check
      _
    $region35: #{tpu_custom_call.1} parent=1 // pred_check_branch
      %102 = sbr.rel (0) target = $region37
    $region36: #{tpu_custom_call.1} parent=1 // pred_region
      %104 = dma.done [#allocation6], 32768
    $region37: #{tpu_custom_call.1} parent=1 // pred_fallthru
      _
    // Predicated region
    $region38: #{tpu_custom_call.1} parent=1 // pred_check
      _
    $region39: #{tpu_custom_call.1} parent=1 // pred_check_branch
      %106 = sbr.rel (0) target = $region41
    $region40: #{tpu_custom_call.1} parent=1 // pred_region
      %108 = dma.done [#allocation6], 64
    $region41: #{tpu_custom_call.1} parent=1 // pred_fallthru
      _
    // Predicated region
    $region42: #{tpu_custom_call.1} parent=1 // pred_check
      _
    $region43: #{tpu_custom_call.1} parent=1 // pred_check_branch
      %110 = sbr.rel (0) target = $region45
    $region44: #{tpu_custom_call.1} parent=1 // pred_region
      %112 = dma.done [#allocation9], 2048
    $region45: #{tpu_custom_call.1} parent=1 // pred_fallthru
      _
    // Predicated region
    $region46: #{tpu_custom_call.1} parent=1 // pred_check
      _
    $region47: #{tpu_custom_call.1} parent=1 // pred_check_branch
      %114 = sbr.rel (0) target = $region49
    $region48: #{tpu_custom_call.1} parent=1 // pred_region
      %116 = dma.done [#allocation9], 16
    $region49: #{tpu_custom_call.1} parent=1 // pred_fallthru
      _
    // Predicated region
    $region50: #{tpu_custom_call.1} parent=1 // pred_check
      _
    $region51: #{tpu_custom_call.1} parent=1 // pred_check_branch
      %118 = sbr.rel (0) target = $region53
    $region52: #{tpu_custom_call.1} parent=1 // pred_region
      %120 = dma.done [#allocation12], 64
    $region53: #{tpu_custom_call.1} parent=1 // pred_fallthru
      _
    %v121 = vld [vmem:[#allocation7] sm:$0xf]
    %v122 = vld [vmem:[%s5] sm:$0x3]
    %v123 = vld [vmem:[#allocation11] sm:$0x3]
    %s124 = scalar_lea.vmem %s5, 2
    %v125 = vld [vmem:[%s124] sm:$0x3]
    %s126 = scalar_lea.vmem [#allocation11], 2
    %v127 = vld [vmem:[%s126] sm:$0x3]
    %v128 = vld [vmem:[#allocation5] sm:$0xff]
    %v129 = vld [vmem:[#allocation5 + $0x8] sm:$0xff]
    %v130 = vld [vmem:[#allocation5 + $0x10] sm:$0xff]
    %v131 = vld [vmem:[#allocation5 + $0x18] sm:$0xff]
    %v132 = vld [vmem:[#allocation5 + $0x20] sm:$0xff]
    %v133 = vld [vmem:[#allocation5 + $0x28] sm:$0xff]
    %v134 = vld [vmem:[#allocation5 + $0x30] sm:$0xff]
    %v135 = vld [vmem:[#allocation5 + $0x38] sm:$0xff]
    %v136 = vld [vmem:[#allocation5 + $0x40] sm:$0xff]
    %v137 = vld [vmem:[#allocation5 + $0x48] sm:$0xff]
    %v138 = vld [vmem:[#allocation5 + $0x50] sm:$0xff]
    %v139 = vld [vmem:[#allocation5 + $0x58] sm:$0xff]
    %v140 = vld [vmem:[#allocation5 + $0x60] sm:$0xff]
    %v141 = vld [vmem:[#allocation5 + $0x68] sm:$0xff]
    %v142 = vld [vmem:[#allocation5 + $0x70] sm:$0xff]
    %v143 = vld [vmem:[#allocation5 + $0x78] sm:$0xff]
    %v144 = vld [vmem:[#allocation5 + $0x80] sm:$0xff]
    %v145 = vld [vmem:[#allocation5 + $0x88] sm:$0xff]
    %v146 = vld [vmem:[#allocation5 + $0x90] sm:$0xff]
    %v147 = vld [vmem:[#allocation5 + $0x98] sm:$0xff]
    %v148 = vld [vmem:[#allocation5 + $0xa0] sm:$0xff]
    %v149 = vld [vmem:[#allocation5 + $0xa8] sm:$0xff]
    %v150 = vld [vmem:[#allocation5 + $0xb0] sm:$0xff]
    %v151 = vld [vmem:[#allocation5 + $0xb8] sm:$0xff]
    %v152 = vld [vmem:[#allocation5 + $0xc0] sm:$0xff]
    %v153 = vld [vmem:[#allocation5 + $0xc8] sm:$0xff]
    %v154 = vld [vmem:[#allocation5 + $0xd0] sm:$0xff]
    %v155 = vld [vmem:[#allocation5 + $0xd8] sm:$0xff]
    %v156 = vld [vmem:[#allocation5 + $0xe0] sm:$0xff]
    %v157 = vld [vmem:[#allocation5 + $0xe8] sm:$0xff]
    %v158 = vld [vmem:[#allocation5 + $0xf0] sm:$0xff]
    %v159 = vld [vmem:[#allocation5 + $0xf8] sm:$0xff]
    %v160 = vld [vmem:[#allocation5 + $0x100] sm:$0xff]
    %v161 = vld [vmem:[#allocation5 + $0x108] sm:$0xff]
    %v162 = vld [vmem:[#allocation5 + $0x110] sm:$0xff]
    %v163 = vld [vmem:[#allocation5 + $0x118] sm:$0xff]
    %v164 = vld [vmem:[#allocation5 + $0x120] sm:$0xff]
    %v165 = vld [vmem:[#allocation5 + $0x128] sm:$0xff]
    %v166 = vld [vmem:[#allocation5 + $0x130] sm:$0xff]
    %v167 = vld [vmem:[#allocation5 + $0x138] sm:$0xff]
    %v168 = vld [vmem:[#allocation5 + $0x140] sm:$0xff]
    %v169 = vld [vmem:[#allocation5 + $0x148] sm:$0xff]
    %v170 = vld [vmem:[#allocation5 + $0x150] sm:$0xff]
    %v171 = vld [vmem:[#allocation5 + $0x158] sm:$0xff]
    %v172 = vld [vmem:[#allocation5 + $0x160] sm:$0xff]
    %v173 = vld [vmem:[#allocation5 + $0x168] sm:$0xff]
    %v174 = vld [vmem:[#allocation5 + $0x170] sm:$0xff]
    %v175 = vld [vmem:[#allocation5 + $0x178] sm:$0xff]
    %v176 = vld [vmem:[#allocation5 + $0x180] sm:$0xff]
    %v177 = vld [vmem:[#allocation5 + $0x188] sm:$0xff]
    %v178 = vld [vmem:[#allocation5 + $0x190] sm:$0xff]
    %v179 = vld [vmem:[#allocation5 + $0x198] sm:$0xff]
    %v180 = vld [vmem:[#allocation5 + $0x1a0] sm:$0xff]
    %v181 = vld [vmem:[#allocation5 + $0x1a8] sm:$0xff]
    %v182 = vld [vmem:[#allocation5 + $0x1b0] sm:$0xff]
    %v183 = vld [vmem:[#allocation5 + $0x1b8] sm:$0xff]
    %v184 = vld [vmem:[#allocation5 + $0x1c0] sm:$0xff]
    %v185 = vld [vmem:[#allocation5 + $0x1c8] sm:$0xff]
    %v186 = vld [vmem:[#allocation5 + $0x1d0] sm:$0xff]
    %v187 = vld [vmem:[#allocation5 + $0x1d8] sm:$0xff]
    %v188 = vld [vmem:[#allocation5 + $0x1e0] sm:$0xff]
    %v189 = vld [vmem:[#allocation5 + $0x1e8] sm:$0xff]
    %v190 = vld [vmem:[#allocation5 + $0x1f0] sm:$0xff]
    %v191 = vld [vmem:[#allocation5 + $0x1f8] sm:$0xff]
    %v192 = vld [vmem:[#allocation5 + $0x200] sm:$0xff]
    %v193 = vld [vmem:[#allocation5 + $0x208] sm:$0xff]
    %v194 = vld [vmem:[#allocation5 + $0x210] sm:$0xff]
    %v195 = vld [vmem:[#allocation5 + $0x218] sm:$0xff]
    %v196 = vld [vmem:[#allocation5 + $0x220] sm:$0xff]
    %v197 = vld [vmem:[#allocation5 + $0x228] sm:$0xff]
    %v198 = vld [vmem:[#allocation5 + $0x230] sm:$0xff]
    %v199 = vld [vmem:[#allocation5 + $0x238] sm:$0xff]
    %v200 = vld [vmem:[#allocation5 + $0x240] sm:$0xff]
    %v201 = vld [vmem:[#allocation5 + $0x248] sm:$0xff]
    %v202 = vld [vmem:[#allocation5 + $0x250] sm:$0xff]
    %v203 = vld [vmem:[#allocation5 + $0x258] sm:$0xff]
    %v204 = vld [vmem:[#allocation5 + $0x260] sm:$0xff]
    %v205 = vld [vmem:[#allocation5 + $0x268] sm:$0xff]
    %v206 = vld [vmem:[#allocation5 + $0x270] sm:$0xff]
    %v207 = vld [vmem:[#allocation5 + $0x278] sm:$0xff]
    %v208 = vld [vmem:[#allocation5 + $0x280] sm:$0xff]
    %v209 = vld [vmem:[#allocation5 + $0x288] sm:$0xff]
    %v210 = vld [vmem:[#allocation5 + $0x290] sm:$0xff]
    %v211 = vld [vmem:[#allocation5 + $0x298] sm:$0xff]
    %v212 = vld [vmem:[#allocation5 + $0x2a0] sm:$0xff]
    %v213 = vld [vmem:[#allocation5 + $0x2a8] sm:$0xff]
    %v214 = vld [vmem:[#allocation5 + $0x2b0] sm:$0xff]
    %v215 = vld [vmem:[#allocation5 + $0x2b8] sm:$0xff]
    %v216 = vld [vmem:[#allocation5 + $0x2c0] sm:$0xff]
    %v217 = vld [vmem:[#allocation5 + $0x2c8] sm:$0xff]
    %v218 = vld [vmem:[#allocation5 + $0x2d0] sm:$0xff]
    %v219 = vld [vmem:[#allocation5 + $0x2d8] sm:$0xff]
    %v220 = vld [vmem:[#allocation5 + $0x2e0] sm:$0xff]
    %v221 = vld [vmem:[#allocation5 + $0x2e8] sm:$0xff]
    %v222 = vld [vmem:[#allocation5 + $0x2f0] sm:$0xff]
    %v223 = vld [vmem:[#allocation5 + $0x2f8] sm:$0xff]
    %v224 = vld [vmem:[#allocation5 + $0x300] sm:$0xff]
    %v225 = vld [vmem:[#allocation5 + $0x308] sm:$0xff]
    %v226 = vld [vmem:[#allocation5 + $0x310] sm:$0xff]
    %v227 = vld [vmem:[#allocation5 + $0x318] sm:$0xff]
    %v228 = vld [vmem:[#allocation5 + $0x320] sm:$0xff]
    %v229 = vld [vmem:[#allocation5 + $0x328] sm:$0xff]
    %v230 = vld [vmem:[#allocation5 + $0x330] sm:$0xff]
    %v231 = vld [vmem:[#allocation5 + $0x338] sm:$0xff]
    %v232 = vld [vmem:[#allocation5 + $0x340] sm:$0xff]
    %v233 = vld [vmem:[#allocation5 + $0x348] sm:$0xff]
    %v234 = vld [vmem:[#allocation5 + $0x350] sm:$0xff]
    %v235 = vld [vmem:[#allocation5 + $0x358] sm:$0xff]
    %v236 = vld [vmem:[#allocation5 + $0x360] sm:$0xff]
    %v237 = vld [vmem:[#allocation5 + $0x368] sm:$0xff]
    %v238 = vld [vmem:[#allocation5 + $0x370] sm:$0xff]
    %v239 = vld [vmem:[#allocation5 + $0x378] sm:$0xff]
    %v240 = vld [vmem:[#allocation5 + $0x380] sm:$0xff]
    %v241 = vld [vmem:[#allocation5 + $0x388] sm:$0xff]
    %v242 = vld [vmem:[#allocation5 + $0x390] sm:$0xff]
    %v243 = vld [vmem:[#allocation5 + $0x398] sm:$0xff]
    %v244 = vld [vmem:[#allocation5 + $0x3a0] sm:$0xff]
    %v245 = vld [vmem:[#allocation5 + $0x3a8] sm:$0xff]
    %v246 = vld [vmem:[#allocation5 + $0x3b0] sm:$0xff]
    %v247 = vld [vmem:[#allocation5 + $0x3b8] sm:$0xff]
    %v248 = vld [vmem:[#allocation5 + $0x3c0] sm:$0xff]
    %v249 = vld [vmem:[#allocation5 + $0x3c8] sm:$0xff]
    %v250 = vld [vmem:[#allocation5 + $0x3d0] sm:$0xff]
    %v251 = vld [vmem:[#allocation5 + $0x3d8] sm:$0xff]
    %v252 = vld [vmem:[#allocation5 + $0x3e0] sm:$0xff]
    %v253 = vld [vmem:[#allocation5 + $0x3e8] sm:$0xff]
    %v254 = vld [vmem:[#allocation5 + $0x3f0] sm:$0xff]
    %v255 = vld [vmem:[#allocation5 + $0x3f8] sm:$0xff]
    %v256 = vld [vmem:[#allocation5 + $0x400] sm:$0xff]
    %v257 = vld [vmem:[#allocation5 + $0x408] sm:$0xff]
    %v258 = vld [vmem:[#allocation5 + $0x410] sm:$0xff]
    %v259 = vld [vmem:[#allocation5 + $0x418] sm:$0xff]
    %v260 = vld [vmem:[#allocation5 + $0x420] sm:$0xff]
    %v261 = vld [vmem:[#allocation5 + $0x428] sm:$0xff]
    %v262 = vld [vmem:[#allocation5 + $0x430] sm:$0xff]
    %v263 = vld [vmem:[#allocation5 + $0x438] sm:$0xff]
    %v264 = vld [vmem:[#allocation5 + $0x440] sm:$0xff]
    %v265 = vld [vmem:[#allocation5 + $0x448] sm:$0xff]
    %v266 = vld [vmem:[#allocation5 + $0x450] sm:$0xff]
    %v267 = vld [vmem:[#allocation5 + $0x458] sm:$0xff]
    %v268 = vld [vmem:[#allocation5 + $0x460] sm:$0xff]
    %v269 = vld [vmem:[#allocation5 + $0x468] sm:$0xff]
    %v270 = vld [vmem:[#allocation5 + $0x470] sm:$0xff]
    %v271 = vld [vmem:[#allocation5 + $0x478] sm:$0xff]
    %v272 = vld [vmem:[#allocation5 + $0x480] sm:$0xff]
    %v273 = vld [vmem:[#allocation5 + $0x488] sm:$0xff]
    %v274 = vld [vmem:[#allocation5 + $0x490] sm:$0xff]
    %v275 = vld [vmem:[#allocation5 + $0x498] sm:$0xff]
    %v276 = vld [vmem:[#allocation5 + $0x4a0] sm:$0xff]
    %v277 = vld [vmem:[#allocation5 + $0x4a8] sm:$0xff]
    %v278 = vld [vmem:[#allocation5 + $0x4b0] sm:$0xff]
    %v279 = vld [vmem:[#allocation5 + $0x4b8] sm:$0xff]
    %v280 = vld [vmem:[#allocation5 + $0x4c0] sm:$0xff]
    %v281 = vld [vmem:[#allocation5 + $0x4c8] sm:$0xff]
    %v282 = vld [vmem:[#allocation5 + $0x4d0] sm:$0xff]
    %v283 = vld [vmem:[#allocation5 + $0x4d8] sm:$0xff]
    %v284 = vld [vmem:[#allocation5 + $0x4e0] sm:$0xff]
    %v285 = vld [vmem:[#allocation5 + $0x4e8] sm:$0xff]
    %v286 = vld [vmem:[#allocation5 + $0x4f0] sm:$0xff]
    %v287 = vld [vmem:[#allocation5 + $0x4f8] sm:$0xff]
    %v288 = vld [vmem:[#allocation5 + $0x500] sm:$0xff]
    %v289 = vld [vmem:[#allocation5 + $0x508] sm:$0xff]
    %v290 = vld [vmem:[#allocation5 + $0x510] sm:$0xff]
    %v291 = vld [vmem:[#allocation5 + $0x518] sm:$0xff]
    %v292 = vld [vmem:[#allocation5 + $0x520] sm:$0xff]
    %v293 = vld [vmem:[#allocation5 + $0x528] sm:$0xff]
    %v294 = vld [vmem:[#allocation5 + $0x530] sm:$0xff]
    %v295 = vld [vmem:[#allocation5 + $0x538] sm:$0xff]
    %v296 = vld [vmem:[#allocation5 + $0x540] sm:$0xff]
    %v297 = vld [vmem:[#allocation5 + $0x548] sm:$0xff]
    %v298 = vld [vmem:[#allocation5 + $0x550] sm:$0xff]
    %v299 = vld [vmem:[#allocation5 + $0x558] sm:$0xff]
    %v300 = vld [vmem:[#allocation5 + $0x560] sm:$0xff]
    %v301 = vld [vmem:[#allocation5 + $0x568] sm:$0xff]
    %v302 = vld [vmem:[#allocation5 + $0x570] sm:$0xff]
    %v303 = vld [vmem:[#allocation5 + $0x578] sm:$0xff]
    %v304 = vld [vmem:[#allocation5 + $0x580] sm:$0xff]
    %v305 = vld [vmem:[#allocation5 + $0x588] sm:$0xff]
    %v306 = vld [vmem:[#allocation5 + $0x590] sm:$0xff]
    %v307 = vld [vmem:[#allocation5 + $0x598] sm:$0xff]
    %v308 = vld [vmem:[#allocation5 + $0x5a0] sm:$0xff]
    %v309 = vld [vmem:[#allocation5 + $0x5a8] sm:$0xff]
    %v310 = vld [vmem:[#allocation5 + $0x5b0] sm:$0xff]
    %v311 = vld [vmem:[#allocation5 + $0x5b8] sm:$0xff]
    %v312 = vld [vmem:[#allocation5 + $0x5c0] sm:$0xff]
    %v313 = vld [vmem:[#allocation5 + $0x5c8] sm:$0xff]
    %v314 = vld [vmem:[#allocation5 + $0x5d0] sm:$0xff]
    %v315 = vld [vmem:[#allocation5 + $0x5d8] sm:$0xff]
    %v316 = vld [vmem:[#allocation5 + $0x5e0] sm:$0xff]
    %v317 = vld [vmem:[#allocation5 + $0x5e8] sm:$0xff]
    %v318 = vld [vmem:[#allocation5 + $0x5f0] sm:$0xff]
    %v319 = vld [vmem:[#allocation5 + $0x5f8] sm:$0xff]
    %v320 = vld [vmem:[#allocation5 + $0x600] sm:$0xff]
    %v321 = vld [vmem:[#allocation5 + $0x608] sm:$0xff]
    %v322 = vld [vmem:[#allocation5 + $0x610] sm:$0xff]
    %v323 = vld [vmem:[#allocation5 + $0x618] sm:$0xff]
    %v324 = vld [vmem:[#allocation5 + $0x620] sm:$0xff]
    %v325 = vld [vmem:[#allocation5 + $0x628] sm:$0xff]
    %v326 = vld [vmem:[#allocation5 + $0x630] sm:$0xff]
    %v327 = vld [vmem:[#allocation5 + $0x638] sm:$0xff]
    %v328 = vld [vmem:[#allocation5 + $0x640] sm:$0xff]
    %v329 = vld [vmem:[#allocation5 + $0x648] sm:$0xff]
    %v330 = vld [vmem:[#allocation5 + $0x650] sm:$0xff]
    %v331 = vld [vmem:[#allocation5 + $0x658] sm:$0xff]
    %v332 = vld [vmem:[#allocation5 + $0x660] sm:$0xff]
    %v333 = vld [vmem:[#allocation5 + $0x668] sm:$0xff]
    %v334 = vld [vmem:[#allocation5 + $0x670] sm:$0xff]
    %v335 = vld [vmem:[#allocation5 + $0x678] sm:$0xff]
    %v336 = vld [vmem:[#allocation5 + $0x680] sm:$0xff]
    %v337 = vld [vmem:[#allocation5 + $0x688] sm:$0xff]
    %v338 = vld [vmem:[#allocation5 + $0x690] sm:$0xff]
    %v339 = vld [vmem:[#allocation5 + $0x698] sm:$0xff]
    %v340 = vld [vmem:[#allocation5 + $0x6a0] sm:$0xff]
    %v341 = vld [vmem:[#allocation5 + $0x6a8] sm:$0xff]
    %v342 = vld [vmem:[#allocation5 + $0x6b0] sm:$0xff]
    %v343 = vld [vmem:[#allocation5 + $0x6b8] sm:$0xff]
    %v344 = vld [vmem:[#allocation5 + $0x6c0] sm:$0xff]
    %v345 = vld [vmem:[#allocation5 + $0x6c8] sm:$0xff]
    %v346 = vld [vmem:[#allocation5 + $0x6d0] sm:$0xff]
    %v347 = vld [vmem:[#allocation5 + $0x6d8] sm:$0xff]
    %v348 = vld [vmem:[#allocation5 + $0x6e0] sm:$0xff]
    %v349 = vld [vmem:[#allocation5 + $0x6e8] sm:$0xff]
    %v350 = vld [vmem:[#allocation5 + $0x6f0] sm:$0xff]
    %v351 = vld [vmem:[#allocation5 + $0x6f8] sm:$0xff]
    %v352 = vld [vmem:[#allocation5 + $0x700] sm:$0xff]
    %v353 = vld [vmem:[#allocation5 + $0x708] sm:$0xff]
    %v354 = vld [vmem:[#allocation5 + $0x710] sm:$0xff]
    %v355 = vld [vmem:[#allocation5 + $0x718] sm:$0xff]
    %v356 = vld [vmem:[#allocation5 + $0x720] sm:$0xff]
    %v357 = vld [vmem:[#allocation5 + $0x728] sm:$0xff]
    %v358 = vld [vmem:[#allocation5 + $0x730] sm:$0xff]
    %v359 = vld [vmem:[#allocation5 + $0x738] sm:$0xff]
    %v360 = vld [vmem:[#allocation5 + $0x740] sm:$0xff]
    %v361 = vld [vmem:[#allocation5 + $0x748] sm:$0xff]
    %v362 = vld [vmem:[#allocation5 + $0x750] sm:$0xff]
    %v363 = vld [vmem:[#allocation5 + $0x758] sm:$0xff]
    %v364 = vld [vmem:[#allocation5 + $0x760] sm:$0xff]
    %v365 = vld [vmem:[#allocation5 + $0x768] sm:$0xff]
    %v366 = vld [vmem:[#allocation5 + $0x770] sm:$0xff]
    %v367 = vld [vmem:[#allocation5 + $0x778] sm:$0xff]
    %v368 = vld [vmem:[#allocation5 + $0x780] sm:$0xff]
    %v369 = vld [vmem:[#allocation5 + $0x788] sm:$0xff]
    %v370 = vld [vmem:[#allocation5 + $0x790] sm:$0xff]
    %v371 = vld [vmem:[#allocation5 + $0x798] sm:$0xff]
    %v372 = vld [vmem:[#allocation5 + $0x7a0] sm:$0xff]
    %v373 = vld [vmem:[#allocation5 + $0x7a8] sm:$0xff]
    %v374 = vld [vmem:[#allocation5 + $0x7b0] sm:$0xff]
    %v375 = vld [vmem:[#allocation5 + $0x7b8] sm:$0xff]
    %v376 = vld [vmem:[#allocation5 + $0x7c0] sm:$0xff]
    %v377 = vld [vmem:[#allocation5 + $0x7c8] sm:$0xff]
    %v378 = vld [vmem:[#allocation5 + $0x7d0] sm:$0xff]
    %v379 = vld [vmem:[#allocation5 + $0x7d8] sm:$0xff]
    %v380 = vld [vmem:[#allocation5 + $0x7e0] sm:$0xff]
    %v381 = vld [vmem:[#allocation5 + $0x7e8] sm:$0xff]
    %v382 = vld [vmem:[#allocation5 + $0x7f0] sm:$0xff]
    %v383 = vld [vmem:[#allocation5 + $0x7f8] sm:$0xff]
    %384 = vmatpush.msra.mxu0 %v248
    %385 = vmatpush.msra.mxu0 %v240
    %386 = vmatpush.msra.mxu0 %v232
    %387 = vmatpush.msra.mxu0 %v224
    %388 = vmatpush.msra.mxu0 %v216
    %389 = vmatpush.msra.mxu0 %v208
    %390 = vmatpush.msra.mxu0 %v200
    %391 = vmatpush.msra.mxu0 %v192
    %392 = vmatpush.msra.mxu0 %v184
    %393 = vmatpush.msra.mxu0 %v176
    %394 = vmatpush.msra.mxu0 %v168
    %395 = vmatpush.msra.mxu0 %v160
    %396 = vmatpush.msra.mxu0 %v152
    %397 = vmatpush.msra.mxu0 %v144
    %398 = vmatpush.msra.mxu0 %v136
    %399 = vmatpush.msra.mxu0 %v128
    %400 = vmatmul.f32.gmra.mxu0 %v122
    %v401 = vpop.f32.mrf.mxu0
    %v402 = vadd.f32 0.0, %v401
    %403 = vdwg.mxu0
    %404 = vmatpush.msra.mxu0 %v376
    %405 = vmatpush.msra.mxu0 %v368
    %406 = vmatpush.msra.mxu0 %v360
    %407 = vmatpush.msra.mxu0 %v352
    %408 = vmatpush.msra.mxu0 %v344
    %409 = vmatpush.msra.mxu0 %v336
    %410 = vmatpush.msra.mxu0 %v328
    %411 = vmatpush.msra.mxu0 %v320
    %412 = vmatpush.msra.mxu0 %v312
    %413 = vmatpush.msra.mxu0 %v304
    %414 = vmatpush.msra.mxu0 %v296
    %415 = vmatpush.msra.mxu0 %v288
    %416 = vmatpush.msra.mxu0 %v280
    %417 = vmatpush.msra.mxu0 %v272
    %418 = vmatpush.msra.mxu0 %v264
    %419 = vmatpush.msra.mxu0 %v256
    %420 = vmatmul.f32.gmra.mxu0 %v125
    %v421 = vpop.f32.mrf.mxu0
    %v422 = vadd.f32 %v402, %v421
    %423 = vdwg.mxu0
    %424 = vmatpush.msra.mxu0 %v249
    %425 = vmatpush.msra.mxu0 %v241
    %426 = vmatpush.msra.mxu0 %v233
    %427 = vmatpush.msra.mxu0 %v225
    %428 = vmatpush.msra.mxu0 %v217
    %429 = vmatpush.msra.mxu0 %v209
    %430 = vmatpush.msra.mxu0 %v201
    %431 = vmatpush.msra.mxu0 %v193
    %432 = vmatpush.msra.mxu0 %v185
    %433 = vmatpush.msra.mxu0 %v177
    %434 = vmatpush.msra.mxu0 %v169
    %435 = vmatpush.msra.mxu0 %v161
    %436 = vmatpush.msra.mxu0 %v153
    %437 = vmatpush.msra.mxu0 %v145
    %438 = vmatpush.msra.mxu0 %v137
    %439 = vmatpush.msra.mxu0 %v129
    %440 = vmatmul.f32.gmra.mxu0 %v122
    %v441 = vpop.f32.mrf.mxu0
    %v442 = vadd.f32 0.0, %v441
    %443 = vdwg.mxu0
    %444 = vmatpush.msra.mxu0 %v377
    %445 = vmatpush.msra.mxu0 %v369
    %446 = vmatpush.msra.mxu0 %v361
    %447 = vmatpush.msra.mxu0 %v353
    %448 = vmatpush.msra.mxu0 %v345
    %449 = vmatpush.msra.mxu0 %v337
    %450 = vmatpush.msra.mxu0 %v329
    %451 = vmatpush.msra.mxu0 %v321
    %452 = vmatpush.msra.mxu0 %v313
    %453 = vmatpush.msra.mxu0 %v305
    %454 = vmatpush.msra.mxu0 %v297
    %455 = vmatpush.msra.mxu0 %v289
    %456 = vmatpush.msra.mxu0 %v281
    %457 = vmatpush.msra.mxu0 %v273
    %458 = vmatpush.msra.mxu0 %v265
    %459 = vmatpush.msra.mxu0 %v257
    %460 = vmatmul.f32.gmra.mxu0 %v125
    %v461 = vpop.f32.mrf.mxu0
    %v462 = vadd.f32 %v442, %v461
    %463 = vdwg.mxu0
    %464 = vmatpush.msra.mxu0 %v250
    %465 = vmatpush.msra.mxu0 %v242
    %466 = vmatpush.msra.mxu0 %v234
    %467 = vmatpush.msra.mxu0 %v226
    %468 = vmatpush.msra.mxu0 %v218
    %469 = vmatpush.msra.mxu0 %v210
    %470 = vmatpush.msra.mxu0 %v202
    %471 = vmatpush.msra.mxu0 %v194
    %472 = vmatpush.msra.mxu0 %v186
    %473 = vmatpush.msra.mxu0 %v178
    %474 = vmatpush.msra.mxu0 %v170
    %475 = vmatpush.msra.mxu0 %v162
    %476 = vmatpush.msra.mxu0 %v154
    %477 = vmatpush.msra.mxu0 %v146
    %478 = vmatpush.msra.mxu0 %v138
    %479 = vmatpush.msra.mxu0 %v130
    %480 = vmatmul.f32.gmra.mxu0 %v122
    %v481 = vpop.f32.mrf.mxu0
    %v482 = vadd.f32 0.0, %v481
    %483 = vdwg.mxu0
    %484 = vmatpush.msra.mxu0 %v378
    %485 = vmatpush.msra.mxu0 %v370
    %486 = vmatpush.msra.mxu0 %v362
    %487 = vmatpush.msra.mxu0 %v354
    %488 = vmatpush.msra.mxu0 %v346
    %489 = vmatpush.msra.mxu0 %v338
    %490 = vmatpush.msra.mxu0 %v330
    %491 = vmatpush.msra.mxu0 %v322
    %492 = vmatpush.msra.mxu0 %v314
    %493 = vmatpush.msra.mxu0 %v306
    %494 = vmatpush.msra.mxu0 %v298
    %495 = vmatpush.msra.mxu0 %v290
    %496 = vmatpush.msra.mxu0 %v282
    %497 = vmatpush.msra.mxu0 %v274
    %498 = vmatpush.msra.mxu0 %v266
    %499 = vmatpush.msra.mxu0 %v258
    %500 = vmatmul.f32.gmra.mxu0 %v125
    %v501 = vpop.f32.mrf.mxu0
    %v502 = vadd.f32 %v482, %v501
    %503 = vdwg.mxu0
    %504 = vmatpush.msra.mxu0 %v251
    %505 = vmatpush.msra.mxu0 %v243
    %506 = vmatpush.msra.mxu0 %v235
    %507 = vmatpush.msra.mxu0 %v227
    %508 = vmatpush.msra.mxu0 %v219
    %509 = vmatpush.msra.mxu0 %v211
    %510 = vmatpush.msra.mxu0 %v203
    %511 = vmatpush.msra.mxu0 %v195
    %512 = vmatpush.msra.mxu0 %v187
    %513 = vmatpush.msra.mxu0 %v179
    %514 = vmatpush.msra.mxu0 %v171
    %515 = vmatpush.msra.mxu0 %v163
    %516 = vmatpush.msra.mxu0 %v155
    %517 = vmatpush.msra.mxu0 %v147
    %518 = vmatpush.msra.mxu0 %v139
    %519 = vmatpush.msra.mxu0 %v131
    %520 = vmatmul.f32.gmra.mxu0 %v122
    %v521 = vpop.f32.mrf.mxu0
    %v522 = vadd.f32 0.0, %v521
    %523 = vdwg.mxu0
    %524 = vmatpush.msra.mxu0 %v379
    %525 = vmatpush.msra.mxu0 %v371
    %526 = vmatpush.msra.mxu0 %v363
    %527 = vmatpush.msra.mxu0 %v355
    %528 = vmatpush.msra.mxu0 %v347
    %529 = vmatpush.msra.mxu0 %v339
    %530 = vmatpush.msra.mxu0 %v331
    %531 = vmatpush.msra.mxu0 %v323
    %532 = vmatpush.msra.mxu0 %v315
    %533 = vmatpush.msra.mxu0 %v307
    %534 = vmatpush.msra.mxu0 %v299
    %535 = vmatpush.msra.mxu0 %v291
    %536 = vmatpush.msra.mxu0 %v283
    %537 = vmatpush.msra.mxu0 %v275
    %538 = vmatpush.msra.mxu0 %v267
    %539 = vmatpush.msra.mxu0 %v259
    %540 = vmatmul.f32.gmra.mxu0 %v125
    %v541 = vpop.f32.mrf.mxu0
    %v542 = vadd.f32 %v522, %v541
    %543 = vdwg.mxu0
    %v544 = vld [vmem:[#allocation2] sm:$0xff]
    %546 = vst [vmem:[#allocation1] ss:$4 sm:$0xff] %v544
    %v547 = vld.sshfl [vmem:[#allocation1] sm:$0xff pattern:$0x73625140]
    %v548 = vld.sshfl [vmem:[#allocation1 + $0x8] sm:$0xff pattern:$0x73625140]
    %v549 = vld.sshfl [vmem:[#allocation1 + $0x10] sm:$0xff pattern:$0x73625140]
    %v550 = vld.sshfl [vmem:[#allocation1 + $0x18] sm:$0xff pattern:$0x73625140]
    %v555 = vadd.f32 %v422, %v547
    %v556 = vadd.f32 %v462, %v548
    %v557 = vadd.f32 %v502, %v549
    %v558 = vadd.f32 %v542, %v550
    %v559 = vxor.u32 %v555, 2147483648
    %v560 = vmul.f32 %v559, 1.442695
    %v561 = vpow.pop %v560
    %v562 = vadd.f32 %v561, 1.0
    %v563 = vrcp.pop %v562
    %v564 = vmul.f32 %v562, %v563
    %v565 = vsub.f32 1.0, %v564
    %v566 = vmul.f32 %v563, %v565
    %v567 = vadd.f32 %v563, %v566
    %vm568 = vweird.f32 %v562
    %vm569 = vweird.f32 %v563
    %vm570 = vmor %vm568, %vm569
    %v571 = vsel %vm570, %v563, %v567
    %v572 = vand.u32 2147483647, %v562
    %vm573 = vcmp.eq.f32.partialorder %v572, 8.507059e+37
    %v574 = vand.u32 %v562, 2147483648
    %v575 = vor.u32 1.1754944e-38, %v574
    %v576 = vsel %vm573, %v575, %v571
    %v577 = vmul.f32 1.0, %v576
    %v578 = vxor.u32 %v556, 2147483648
    %v579 = vmul.f32 %v578, 1.442695
    %v580 = vpow.pop %v579
    %v581 = vadd.f32 %v580, 1.0
    %v582 = vrcp.pop %v581
    %v583 = vmul.f32 %v581, %v582
    %v584 = vsub.f32 1.0, %v583
    %v585 = vmul.f32 %v582, %v584
    %v586 = vadd.f32 %v582, %v585
    %vm587 = vweird.f32 %v581
    %vm588 = vweird.f32 %v582
    %vm589 = vmor %vm587, %vm588
    %v590 = vsel %vm589, %v582, %v586
    %v591 = vand.u32 2147483647, %v581
    %vm592 = vcmp.eq.f32.partialorder %v591, 8.507059e+37
    %v593 = vand.u32 %v581, 2147483648
    %v594 = vor.u32 1.1754944e-38, %v593
    %v595 = vsel %vm592, %v594, %v590
    %v596 = vmul.f32 1.0, %v595
    %v597 = vtanh.pop %v557
    %v598 = vxor.u32 %v558, 2147483648
    %v599 = vmul.f32 %v598, 1.442695
    %v600 = vpow.pop %v599
    %v601 = vadd.f32 %v600, 1.0
    %v602 = vrcp.pop %v601
    %v603 = vmul.f32 %v601, %v602
    %v604 = vsub.f32 1.0, %v603
    %v605 = vmul.f32 %v602, %v604
    %v606 = vadd.f32 %v602, %v605
    %vm607 = vweird.f32 %v601
    %vm608 = vweird.f32 %v602
    %vm609 = vmor %vm607, %vm608
    %v610 = vsel %vm609, %v602, %v606
    %v611 = vand.u32 2147483647, %v601
    %vm612 = vcmp.eq.f32.partialorder %v611, 8.507059e+37
    %v613 = vand.u32 %v601, 2147483648
    %v614 = vor.u32 1.1754944e-38, %v613
    %v615 = vsel %vm612, %v614, %v610
    %v616 = vmul.f32 1.0, %v615
    %v617 = vmul.f32 %v596, %v123
    %v618 = vmul.f32 %v577, %v597
    %v619 = vadd.f32 %v617, %v618
    %v620 = vtanh.pop %v619
    %v621 = vmul.f32 %v616, %v620
    %622 = vmatpush.msra.mxu0 %v248
    %623 = vmatpush.msra.mxu0 %v240
    %624 = vmatpush.msra.mxu0 %v232
    %625 = vmatpush.msra.mxu0 %v224
    %626 = vmatpush.msra.mxu0 %v216
    %627 = vmatpush.msra.mxu0 %v208
    %628 = vmatpush.msra.mxu0 %v200
    %629 = vmatpush.msra.mxu0 %v192
    %630 = vmatpush.msra.mxu0 %v184
    %631 = vmatpush.msra.mxu0 %v176
    %632 = vmatpush.msra.mxu0 %v168
    %633 = vmatpush.msra.mxu0 %v160
    %634 = vmatpush.msra.mxu0 %v152
    %635 = vmatpush.msra.mxu0 %v144
    %636 = vmatpush.msra.mxu0 %v136
    %637 = vmatpush.msra.mxu0 %v128
    %638 = vmatmul.f32.gmra.mxu0 %v621
    %v639 = vpop.f32.mrf.mxu0
    %v640 = vadd.f32 0.0, %v639
    %641 = vdwg.mxu0
    %642 = vmatpush.msra.mxu0 %v376
    %643 = vmatpush.msra.mxu0 %v368
    %644 = vmatpush.msra.mxu0 %v360
    %645 = vmatpush.msra.mxu0 %v352
    %646 = vmatpush.msra.mxu0 %v344
    %647 = vmatpush.msra.mxu0 %v336
    %648 = vmatpush.msra.mxu0 %v328
    %649 = vmatpush.msra.mxu0 %v320
    %650 = vmatpush.msra.mxu0 %v312
    %651 = vmatpush.msra.mxu0 %v304
    %652 = vmatpush.msra.mxu0 %v296
    %653 = vmatpush.msra.mxu0 %v288
    %654 = vmatpush.msra.mxu0 %v280
    %655 = vmatpush.msra.mxu0 %v272
    %656 = vmatpush.msra.mxu0 %v264
    %657 = vmatpush.msra.mxu0 %v256
    %658 = vmatmul.f32.gmra.mxu0 %v125
    %v659 = vpop.f32.mrf.mxu0
    %v660 = vadd.f32 %v640, %v659
    %661 = vdwg.mxu0
    %662 = vmatpush.msra.mxu0 %v249
    %663 = vmatpush.msra.mxu0 %v241
    %664 = vmatpush.msra.mxu0 %v233
    %665 = vmatpush.msra.mxu0 %v225
    %666 = vmatpush.msra.mxu0 %v217
    %667 = vmatpush.msra.mxu0 %v209
    %668 = vmatpush.msra.mxu0 %v201
    %669 = vmatpush.msra.mxu0 %v193
    %670 = vmatpush.msra.mxu0 %v185
    %671 = vmatpush.msra.mxu0 %v177
    %672 = vmatpush.msra.mxu0 %v169
    %673 = vmatpush.msra.mxu0 %v161
    %674 = vmatpush.msra.mxu0 %v153
    %675 = vmatpush.msra.mxu0 %v145
    %676 = vmatpush.msra.mxu0 %v137
    %677 = vmatpush.msra.mxu0 %v129
    %678 = vmatmul.f32.gmra.mxu0 %v621
    %v679 = vpop.f32.mrf.mxu0
    %v680 = vadd.f32 0.0, %v679
    %681 = vdwg.mxu0
    %682 = vmatpush.msra.mxu0 %v377
    %683 = vmatpush.msra.mxu0 %v369
    %684 = vmatpush.msra.mxu0 %v361
    %685 = vmatpush.msra.mxu0 %v353
    %686 = vmatpush.msra.mxu0 %v345
    %687 = vmatpush.msra.mxu0 %v337
    %688 = vmatpush.msra.mxu0 %v329
    %689 = vmatpush.msra.mxu0 %v321
    %690 = vmatpush.msra.mxu0 %v313
    %691 = vmatpush.msra.mxu0 %v305
    %692 = vmatpush.msra.mxu0 %v297
    %693 = vmatpush.msra.mxu0 %v289
    %694 = vmatpush.msra.mxu0 %v281
    %695 = vmatpush.msra.mxu0 %v273
    %696 = vmatpush.msra.mxu0 %v265
    %697 = vmatpush.msra.mxu0 %v257
    %698 = vmatmul.f32.gmra.mxu0 %v125
    %v699 = vpop.f32.mrf.mxu0
    %v700 = vadd.f32 %v680, %v699
    %701 = vdwg.mxu0
    %702 = vmatpush.msra.mxu0 %v250
    %703 = vmatpush.msra.mxu0 %v242
    %704 = vmatpush.msra.mxu0 %v234
    %705 = vmatpush.msra.mxu0 %v226
    %706 = vmatpush.msra.mxu0 %v218
    %707 = vmatpush.msra.mxu0 %v210
    %708 = vmatpush.msra.mxu0 %v202
    %709 = vmatpush.msra.mxu0 %v194
    %710 = vmatpush.msra.mxu0 %v186
    %711 = vmatpush.msra.mxu0 %v178
    %712 = vmatpush.msra.mxu0 %v170
    %713 = vmatpush.msra.mxu0 %v162
    %714 = vmatpush.msra.mxu0 %v154
    %715 = vmatpush.msra.mxu0 %v146
    %716 = vmatpush.msra.mxu0 %v138
    %717 = vmatpush.msra.mxu0 %v130
    %718 = vmatmul.f32.gmra.mxu0 %v621
    %v719 = vpop.f32.mrf.mxu0
    %v720 = vadd.f32 0.0, %v719
    %721 = vdwg.mxu0
    %722 = vmatpush.msra.mxu0 %v378
    %723 = vmatpush.msra.mxu0 %v370
    %724 = vmatpush.msra.mxu0 %v362
    %725 = vmatpush.msra.mxu0 %v354
    %726 = vmatpush.msra.mxu0 %v346
    %727 = vmatpush.msra.mxu0 %v338
    %728 = vmatpush.msra.mxu0 %v330
    %729 = vmatpush.msra.mxu0 %v322
    %730 = vmatpush.msra.mxu0 %v314
    %731 = vmatpush.msra.mxu0 %v306
    %732 = vmatpush.msra.mxu0 %v298
    %733 = vmatpush.msra.mxu0 %v290
    %734 = vmatpush.msra.mxu0 %v282
    %735 = vmatpush.msra.mxu0 %v274
    %736 = vmatpush.msra.mxu0 %v266
    %737 = vmatpush.msra.mxu0 %v258
    %738 = vmatmul.f32.gmra.mxu0 %v125
    %v739 = vpop.f32.mrf.mxu0
    %v740 = vadd.f32 %v720, %v739
    %741 = vdwg.mxu0
    %742 = vmatpush.msra.mxu0 %v251
    %743 = vmatpush.msra.mxu0 %v243
    %744 = vmatpush.msra.mxu0 %v235
    %745 = vmatpush.msra.mxu0 %v227
    %746 = vmatpush.msra.mxu0 %v219
    %747 = vmatpush.msra.mxu0 %v211
    %748 = vmatpush.msra.mxu0 %v203
    %749 = vmatpush.msra.mxu0 %v195
    %750 = vmatpush.msra.mxu0 %v187
    %751 = vmatpush.msra.mxu0 %v179
    %752 = vmatpush.msra.mxu0 %v171
    %753 = vmatpush.msra.mxu0 %v163
    %754 = vmatpush.msra.mxu0 %v155
    %755 = vmatpush.msra.mxu0 %v147
    %756 = vmatpush.msra.mxu0 %v139
    %757 = vmatpush.msra.mxu0 %v131
    %758 = vmatmul.f32.gmra.mxu0 %v621
    %v759 = vpop.f32.mrf.mxu0
    %v760 = vadd.f32 0.0, %v759
    %761 = vdwg.mxu0
    %762 = vmatpush.msra.mxu0 %v379
    %763 = vmatpush.msra.mxu0 %v371
    %764 = vmatpush.msra.mxu0 %v363
    %765 = vmatpush.msra.mxu0 %v355
    %766 = vmatpush.msra.mxu0 %v347
    %767 = vmatpush.msra.mxu0 %v339
    %768 = vmatpush.msra.mxu0 %v331
    %769 = vmatpush.msra.mxu0 %v323
    %770 = vmatpush.msra.mxu0 %v315
    %771 = vmatpush.msra.mxu0 %v307
    %772 = vmatpush.msra.mxu0 %v299
    %773 = vmatpush.msra.mxu0 %v291
    %774 = vmatpush.msra.mxu0 %v283
    %775 = vmatpush.msra.mxu0 %v275
    %776 = vmatpush.msra.mxu0 %v267
    %777 = vmatpush.msra.mxu0 %v259
    %778 = vmatmul.f32.gmra.mxu0 %v125
    %v779 = vpop.f32.mrf.mxu0
    %v780 = vadd.f32 %v760, %v779
    %781 = vdwg.mxu0
    %782 = vmatpush.msra.mxu0 %v252
    %783 = vmatpush.msra.mxu0 %v244
    %784 = vmatpush.msra.mxu0 %v236
    %785 = vmatpush.msra.mxu0 %v228
    %786 = vmatpush.msra.mxu0 %v220
    %787 = vmatpush.msra.mxu0 %v212
    %788 = vmatpush.msra.mxu0 %v204
    %789 = vmatpush.msra.mxu0 %v196
    %790 = vmatpush.msra.mxu0 %v188
    %791 = vmatpush.msra.mxu0 %v180
    %792 = vmatpush.msra.mxu0 %v172
    %793 = vmatpush.msra.mxu0 %v164
    %794 = vmatpush.msra.mxu0 %v156
    %795 = vmatpush.msra.mxu0 %v148
    %796 = vmatpush.msra.mxu0 %v140
    %797 = vmatpush.msra.mxu0 %v132
    %798 = vmatmul.f32.gmra.mxu0 %v621
    %v799 = vpop.f32.mrf.mxu0
    %v800 = vadd.f32 0.0, %v799
    %801 = vdwg.mxu0
    %802 = vmatpush.msra.mxu0 %v380
    %803 = vmatpush.msra.mxu0 %v372
    %804 = vmatpush.msra.mxu0 %v364
    %805 = vmatpush.msra.mxu0 %v356
    %806 = vmatpush.msra.mxu0 %v348
    %807 = vmatpush.msra.mxu0 %v340
    %808 = vmatpush.msra.mxu0 %v332
    %809 = vmatpush.msra.mxu0 %v324
    %810 = vmatpush.msra.mxu0 %v316
    %811 = vmatpush.msra.mxu0 %v308
    %812 = vmatpush.msra.mxu0 %v300
    %813 = vmatpush.msra.mxu0 %v292
    %814 = vmatpush.msra.mxu0 %v284
    %815 = vmatpush.msra.mxu0 %v276
    %816 = vmatpush.msra.mxu0 %v268
    %817 = vmatpush.msra.mxu0 %v260
    %818 = vmatmul.f32.gmra.mxu0 %v125
    %v819 = vpop.f32.mrf.mxu0
    %v820 = vadd.f32 %v800, %v819
    %821 = vdwg.mxu0
    %822 = vmatpush.msra.mxu0 %v253
    %823 = vmatpush.msra.mxu0 %v245
    %824 = vmatpush.msra.mxu0 %v237
    %825 = vmatpush.msra.mxu0 %v229
    %826 = vmatpush.msra.mxu0 %v221
    %827 = vmatpush.msra.mxu0 %v213
    %828 = vmatpush.msra.mxu0 %v205
    %829 = vmatpush.msra.mxu0 %v197
    %830 = vmatpush.msra.mxu0 %v189
    %831 = vmatpush.msra.mxu0 %v181
    %832 = vmatpush.msra.mxu0 %v173
    %833 = vmatpush.msra.mxu0 %v165
    %834 = vmatpush.msra.mxu0 %v157
    %835 = vmatpush.msra.mxu0 %v149
    %836 = vmatpush.msra.mxu0 %v141
    %837 = vmatpush.msra.mxu0 %v133
    %838 = vmatmul.f32.gmra.mxu0 %v621
    %v839 = vpop.f32.mrf.mxu0
    %v840 = vadd.f32 0.0, %v839
    %841 = vdwg.mxu0
    %842 = vmatpush.msra.mxu0 %v381
    %843 = vmatpush.msra.mxu0 %v373
    %844 = vmatpush.msra.mxu0 %v365
    %845 = vmatpush.msra.mxu0 %v357
    %846 = vmatpush.msra.mxu0 %v349
    %847 = vmatpush.msra.mxu0 %v341
    %848 = vmatpush.msra.mxu0 %v333
    %849 = vmatpush.msra.mxu0 %v325
    %850 = vmatpush.msra.mxu0 %v317
    %851 = vmatpush.msra.mxu0 %v309
    %852 = vmatpush.msra.mxu0 %v301
    %853 = vmatpush.msra.mxu0 %v293
    %854 = vmatpush.msra.mxu0 %v285
    %855 = vmatpush.msra.mxu0 %v277
    %856 = vmatpush.msra.mxu0 %v269
    %857 = vmatpush.msra.mxu0 %v261
    %858 = vmatmul.f32.gmra.mxu0 %v125
    %v859 = vpop.f32.mrf.mxu0
    %v860 = vadd.f32 %v840, %v859
    %861 = vdwg.mxu0
    %862 = vmatpush.msra.mxu0 %v254
    %863 = vmatpush.msra.mxu0 %v246
    %864 = vmatpush.msra.mxu0 %v238
    %865 = vmatpush.msra.mxu0 %v230
    %866 = vmatpush.msra.mxu0 %v222
    %867 = vmatpush.msra.mxu0 %v214
    %868 = vmatpush.msra.mxu0 %v206
    %869 = vmatpush.msra.mxu0 %v198
    %870 = vmatpush.msra.mxu0 %v190
    %871 = vmatpush.msra.mxu0 %v182
    %872 = vmatpush.msra.mxu0 %v174
    %873 = vmatpush.msra.mxu0 %v166
    %874 = vmatpush.msra.mxu0 %v158
    %875 = vmatpush.msra.mxu0 %v150
    %876 = vmatpush.msra.mxu0 %v142
    %877 = vmatpush.msra.mxu0 %v134
    %878 = vmatmul.f32.gmra.mxu0 %v621
    %v879 = vpop.f32.mrf.mxu0
    %v880 = vadd.f32 0.0, %v879
    %881 = vdwg.mxu0
    %882 = vmatpush.msra.mxu0 %v382
    %883 = vmatpush.msra.mxu0 %v374
    %884 = vmatpush.msra.mxu0 %v366
    %885 = vmatpush.msra.mxu0 %v358
    %886 = vmatpush.msra.mxu0 %v350
    %887 = vmatpush.msra.mxu0 %v342
    %888 = vmatpush.msra.mxu0 %v334
    %889 = vmatpush.msra.mxu0 %v326
    %890 = vmatpush.msra.mxu0 %v318
    %891 = vmatpush.msra.mxu0 %v310
    %892 = vmatpush.msra.mxu0 %v302
    %893 = vmatpush.msra.mxu0 %v294
    %894 = vmatpush.msra.mxu0 %v286
    %895 = vmatpush.msra.mxu0 %v278
    %896 = vmatpush.msra.mxu0 %v270
    %897 = vmatpush.msra.mxu0 %v262
    %898 = vmatmul.f32.gmra.mxu0 %v125
    %v899 = vpop.f32.mrf.mxu0
    %v900 = vadd.f32 %v880, %v899
    %901 = vdwg.mxu0
    %902 = vmatpush.msra.mxu0 %v255
    %903 = vmatpush.msra.mxu0 %v247
    %904 = vmatpush.msra.mxu0 %v239
    %905 = vmatpush.msra.mxu0 %v231
    %906 = vmatpush.msra.mxu0 %v223
    %907 = vmatpush.msra.mxu0 %v215
    %908 = vmatpush.msra.mxu0 %v207
    %909 = vmatpush.msra.mxu0 %v199
    %910 = vmatpush.msra.mxu0 %v191
    %911 = vmatpush.msra.mxu0 %v183
    %912 = vmatpush.msra.mxu0 %v175
    %913 = vmatpush.msra.mxu0 %v167
    %914 = vmatpush.msra.mxu0 %v159
    %915 = vmatpush.msra.mxu0 %v151
    %916 = vmatpush.msra.mxu0 %v143
    %917 = vmatpush.msra.mxu0 %v135
    %918 = vmatmul.f32.gmra.mxu0 %v621
    %v919 = vpop.f32.mrf.mxu0
    %v920 = vadd.f32 0.0, %v919
    %921 = vdwg.mxu0
    %922 = vmatpush.msra.mxu0 %v383
    %923 = vmatpush.msra.mxu0 %v375
    %924 = vmatpush.msra.mxu0 %v367
    %925 = vmatpush.msra.mxu0 %v359
    %926 = vmatpush.msra.mxu0 %v351
    %927 = vmatpush.msra.mxu0 %v343
    %928 = vmatpush.msra.mxu0 %v335
    %929 = vmatpush.msra.mxu0 %v327
    %930 = vmatpush.msra.mxu0 %v319
    %931 = vmatpush.msra.mxu0 %v311
    %932 = vmatpush.msra.mxu0 %v303
    %933 = vmatpush.msra.mxu0 %v295
    %934 = vmatpush.msra.mxu0 %v287
    %935 = vmatpush.msra.mxu0 %v279
    %936 = vmatpush.msra.mxu0 %v271
    %937 = vmatpush.msra.mxu0 %v263
    %938 = vmatmul.f32.gmra.mxu0 %v125
    %v939 = vpop.f32.mrf.mxu0
    %v940 = vadd.f32 %v920, %v939
    %941 = vdwg.mxu0
    %v943 = vperm.slane %v121, 0
    %v944 = vperm.slane %v121, 1
    %v945 = vperm.slane %v121, 2
    %v946 = vperm.slane %v121, 3
    %v951 = vadd.f32 %v820, %v943
    %v952 = vadd.f32 %v860, %v944
    %v953 = vadd.f32 %v900, %v945
    %v954 = vadd.f32 %v940, %v946
    %v955 = vxor.u32 %v951, 2147483648
    %v956 = vmul.f32 %v955, 1.442695
    %v957 = vpow.pop %v956
    %v958 = vadd.f32 %v957, 1.0
    %v959 = vrcp.pop %v958
    %v960 = vmul.f32 %v958, %v959
    %v961 = vsub.f32 1.0, %v960
    %v962 = vmul.f32 %v959, %v961
    %v963 = vadd.f32 %v959, %v962
    %vm964 = vweird.f32 %v958
    %vm965 = vweird.f32 %v959
    %vm966 = vmor %vm964, %vm965
    %v967 = vsel %vm966, %v959, %v963
    %v968 = vand.u32 2147483647, %v958
    %vm969 = vcmp.eq.f32.partialorder %v968, 8.507059e+37
    %v970 = vand.u32 %v958, 2147483648
    %v971 = vor.u32 1.1754944e-38, %v970
    %v972 = vsel %vm969, %v971, %v967
    %v973 = vmul.f32 1.0, %v972
    %v974 = vxor.u32 %v952, 2147483648
    %v975 = vmul.f32 %v974, 1.442695
    %v976 = vpow.pop %v975
    %v977 = vadd.f32 %v976, 1.0
    %v978 = vrcp.pop %v977
    %v979 = vmul.f32 %v977, %v978
    %v980 = vsub.f32 1.0, %v979
    %v981 = vmul.f32 %v978, %v980
    %v982 = vadd.f32 %v978, %v981
    %vm983 = vweird.f32 %v977
    %vm984 = vweird.f32 %v978
    %vm985 = vmor %vm983, %vm984
    %v986 = vsel %vm985, %v978, %v982
    %v987 = vand.u32 2147483647, %v977
    %vm988 = vcmp.eq.f32.partialorder %v987, 8.507059e+37
    %v989 = vand.u32 %v977, 2147483648
    %v990 = vor.u32 1.1754944e-38, %v989
    %v991 = vsel %vm988, %v990, %v986
    %v992 = vmul.f32 1.0, %v991
    %v993 = vtanh.pop %v953
    %v994 = vxor.u32 %v954, 2147483648
    %v995 = vmul.f32 %v994, 1.442695
    %v996 = vpow.pop %v995
    %v997 = vadd.f32 %v996, 1.0
    %v998 = vrcp.pop %v997
    %v999 = vmul.f32 %v997, %v998
    %v1000 = vsub.f32 1.0, %v999
    %v1001 = vmul.f32 %v998, %v1000
    %v1002 = vadd.f32 %v998, %v1001
    %vm1003 = vweird.f32 %v997
    %vm1004 = vweird.f32 %v998
    %vm1005 = vmor %vm1003, %vm1004
    %v1006 = vsel %vm1005, %v998, %v1002
    %v1007 = vand.u32 2147483647, %v997
    %vm1008 = vcmp.eq.f32.partialorder %v1007, 8.507059e+37
    %v1009 = vand.u32 %v997, 2147483648
    %v1010 = vor.u32 1.1754944e-38, %v1009
    %v1011 = vsel %vm1008, %v1010, %v1006
    %v1012 = vmul.f32 1.0, %v1011
    %v1013 = vmul.f32 %v992, %v127
    %v1014 = vmul.f32 %v973, %v993
    %v1015 = vadd.f32 %v1013, %v1014
    %v1016 = vtanh.pop %v1015
    %v1017 = vmul.f32 %v1012, %v1016
    %s1018 = scalar_lea.vmem [#allocation2], 8
    %v1019 = vld [vmem:[%s1018] sm:$0xff]
    %1021 = vst [vmem:[#allocation1] ss:$4 sm:$0xff] %v1019
    %v1022 = vld.sshfl [vmem:[#allocation1] sm:$0xff pattern:$0x73625140]
    %v1023 = vld.sshfl [vmem:[#allocation1 + $0x8] sm:$0xff pattern:$0x73625140]
    %v1024 = vld.sshfl [vmem:[#allocation1 + $0x10] sm:$0xff pattern:$0x73625140]
    %v1025 = vld.sshfl [vmem:[#allocation1 + $0x18] sm:$0xff pattern:$0x73625140]
    %v1030 = vadd.f32 %v660, %v1022
    %v1031 = vadd.f32 %v700, %v1023
    %v1032 = vadd.f32 %v740, %v1024
    %v1033 = vadd.f32 %v780, %v1025
    %v1034 = vxor.u32 %v1030, 2147483648
    %v1035 = vmul.f32 %v1034, 1.442695
    %v1036 = vpow.pop %v1035
    %v1037 = vadd.f32 %v1036, 1.0
    %v1038 = vrcp.pop %v1037
    %v1039 = vmul.f32 %v1037, %v1038
    %v1040 = vsub.f32 1.0, %v1039
    %v1041 = vmul.f32 %v1038, %v1040
    %v1042 = vadd.f32 %v1038, %v1041
    %vm1043 = vweird.f32 %v1037
    %vm1044 = vweird.f32 %v1038
    %vm1045 = vmor %vm1043, %vm1044
    %v1046 = vsel %vm1045, %v1038, %v1042
    %v1047 = vand.u32 2147483647, %v1037
    %vm1048 = vcmp.eq.f32.partialorder %v1047, 8.507059e+37
    %v1049 = vand.u32 %v1037, 2147483648
    %v1050 = vor.u32 1.1754944e-38, %v1049
    %v1051 = vsel %vm1048, %v1050, %v1046
    %v1052 = vmul.f32 1.0, %v1051
    %v1053 = vxor.u32 %v1031, 2147483648
    %v1054 = vmul.f32 %v1053, 1.442695
    %v1055 = vpow.pop %v1054
    %v1056 = vadd.f32 %v1055, 1.0
    %v1057 = vrcp.pop %v1056
    %v1058 = vmul.f32 %v1056, %v1057
    %v1059 = vsub.f32 1.0, %v1058
    %v1060 = vmul.f32 %v1057, %v1059
    %v1061 = vadd.f32 %v1057, %v1060
    %vm1062 = vweird.f32 %v1056
    %vm1063 = vweird.f32 %v1057
    %vm1064 = vmor %vm1062, %vm1063
    %v1065 = vsel %vm1064, %v1057, %v1061
    %v1066 = vand.u32 2147483647, %v1056
    %vm1067 = vcmp.eq.f32.partialorder %v1066, 8.507059e+37
    %v1068 = vand.u32 %v1056, 2147483648
    %v1069 = vor.u32 1.1754944e-38, %v1068
    %v1070 = vsel %vm1067, %v1069, %v1065
    %v1071 = vmul.f32 1.0, %v1070
    %v1072 = vtanh.pop %v1032
    %v1073 = vxor.u32 %v1033, 2147483648
    %v1074 = vmul.f32 %v1073, 1.442695
    %v1075 = vpow.pop %v1074
    %v1076 = vadd.f32 %v1075, 1.0
    %v1077 = vrcp.pop %v1076
    %v1078 = vmul.f32 %v1076, %v1077
    %v1079 = vsub.f32 1.0, %v1078
    %v1080 = vmul.f32 %v1077, %v1079
    %v1081 = vadd.f32 %v1077, %v1080
    %vm1082 = vweird.f32 %v1076
    %vm1083 = vweird.f32 %v1077
    %vm1084 = vmor %vm1082, %vm1083
    %v1085 = vsel %vm1084, %v1077, %v1081
    %v1086 = vand.u32 2147483647, %v1076
    %vm1087 = vcmp.eq.f32.partialorder %v1086, 8.507059e+37
    %v1088 = vand.u32 %v1076, 2147483648
    %v1089 = vor.u32 1.1754944e-38, %v1088
    %v1090 = vsel %vm1087, %v1089, %v1085
    %v1091 = vmul.f32 1.0, %v1090
    %v1092 = vmul.f32 %v1071, %v619
    %v1093 = vmul.f32 %v1052, %v1072
    %v1094 = vadd.f32 %v1092, %v1093
    %v1095 = vtanh.pop %v1094
    %v1096 = vmul.f32 %v1091, %v1095
    %1097 = vmatpush.msra.mxu0 %v248
    %1098 = vmatpush.msra.mxu0 %v240
    %1099 = vmatpush.msra.mxu0 %v232
    %1100 = vmatpush.msra.mxu0 %v224
    %1101 = vmatpush.msra.mxu0 %v216
    %1102 = vmatpush.msra.mxu0 %v208
    %1103 = vmatpush.msra.mxu0 %v200
    %1104 = vmatpush.msra.mxu0 %v192
    %1105 = vmatpush.msra.mxu0 %v184
    %1106 = vmatpush.msra.mxu0 %v176
    %1107 = vmatpush.msra.mxu0 %v168
    %1108 = vmatpush.msra.mxu0 %v160
    %1109 = vmatpush.msra.mxu0 %v152
    %1110 = vmatpush.msra.mxu0 %v144
    %1111 = vmatpush.msra.mxu0 %v136
    %1112 = vmatpush.msra.mxu0 %v128
    %1113 = vmatmul.f32.gmra.mxu0 %v1096
    %v1114 = vpop.f32.mrf.mxu0
    %v1115 = vadd.f32 0.0, %v1114
    %1116 = vdwg.mxu0
    %1117 = vmatpush.msra.mxu0 %v376
    %1118 = vmatpush.msra.mxu0 %v368
    %1119 = vmatpush.msra.mxu0 %v360
    %1120 = vmatpush.msra.mxu0 %v352
    %1121 = vmatpush.msra.mxu0 %v344
    %1122 = vmatpush.msra.mxu0 %v336
    %1123 = vmatpush.msra.mxu0 %v328
    %1124 = vmatpush.msra.mxu0 %v320
    %1125 = vmatpush.msra.mxu0 %v312
    %1126 = vmatpush.msra.mxu0 %v304
    %1127 = vmatpush.msra.mxu0 %v296
    %1128 = vmatpush.msra.mxu0 %v288
    %1129 = vmatpush.msra.mxu0 %v280
    %1130 = vmatpush.msra.mxu0 %v272
    %1131 = vmatpush.msra.mxu0 %v264
    %1132 = vmatpush.msra.mxu0 %v256
    %1133 = vmatmul.f32.gmra.mxu0 %v1017
    %v1134 = vpop.f32.mrf.mxu0
    %v1135 = vadd.f32 %v1115, %v1134
    %1136 = vdwg.mxu0
    %1137 = vmatpush.msra.mxu0 %v249
    %1138 = vmatpush.msra.mxu0 %v241
    %1139 = vmatpush.msra.mxu0 %v233
    %1140 = vmatpush.msra.mxu0 %v225
    %1141 = vmatpush.msra.mxu0 %v217
    %1142 = vmatpush.msra.mxu0 %v209
    %1143 = vmatpush.msra.mxu0 %v201
    %1144 = vmatpush.msra.mxu0 %v193
    %1145 = vmatpush.msra.mxu0 %v185
    %1146 = vmatpush.msra.mxu0 %v177
    %1147 = vmatpush.msra.mxu0 %v169
    %1148 = vmatpush.msra.mxu0 %v161
    %1149 = vmatpush.msra.mxu0 %v153
    %1150 = vmatpush.msra.mxu0 %v145
    %1151 = vmatpush.msra.mxu0 %v137
    %1152 = vmatpush.msra.mxu0 %v129
    %1153 = vmatmul.f32.gmra.mxu0 %v1096
    %v1154 = vpop.f32.mrf.mxu0
    %v1155 = vadd.f32 0.0, %v1154
    %1156 = vdwg.mxu0
    %1157 = vmatpush.msra.mxu0 %v377
    %1158 = vmatpush.msra.mxu0 %v369
    %1159 = vmatpush.msra.mxu0 %v361
    %1160 = vmatpush.msra.mxu0 %v353
    %1161 = vmatpush.msra.mxu0 %v345
    %1162 = vmatpush.msra.mxu0 %v337
    %1163 = vmatpush.msra.mxu0 %v329
    %1164 = vmatpush.msra.mxu0 %v321
    %1165 = vmatpush.msra.mxu0 %v313
    %1166 = vmatpush.msra.mxu0 %v305
    %1167 = vmatpush.msra.mxu0 %v297
    %1168 = vmatpush.msra.mxu0 %v289
    %1169 = vmatpush.msra.mxu0 %v281
    %1170 = vmatpush.msra.mxu0 %v273
    %1171 = vmatpush.msra.mxu0 %v265
    %1172 = vmatpush.msra.mxu0 %v257
    %1173 = vmatmul.f32.gmra.mxu0 %v1017
    %v1174 = vpop.f32.mrf.mxu0
    %v1175 = vadd.f32 %v1155, %v1174
    %1176 = vdwg.mxu0
    %1177 = vmatpush.msra.mxu0 %v250
    %1178 = vmatpush.msra.mxu0 %v242
    %1179 = vmatpush.msra.mxu0 %v234
    %1180 = vmatpush.msra.mxu0 %v226
    %1181 = vmatpush.msra.mxu0 %v218
    %1182 = vmatpush.msra.mxu0 %v210
    %1183 = vmatpush.msra.mxu0 %v202
    %1184 = vmatpush.msra.mxu0 %v194
    %1185 = vmatpush.msra.mxu0 %v186
    %1186 = vmatpush.msra.mxu0 %v178
    %1187 = vmatpush.msra.mxu0 %v170
    %1188 = vmatpush.msra.mxu0 %v162
    %1189 = vmatpush.msra.mxu0 %v154
    %1190 = vmatpush.msra.mxu0 %v146
    %1191 = vmatpush.msra.mxu0 %v138
    %1192 = vmatpush.msra.mxu0 %v130
    %1193 = vmatmul.f32.gmra.mxu0 %v1096
    %v1194 = vpop.f32.mrf.mxu0
    %v1195 = vadd.f32 0.0, %v1194
    %1196 = vdwg.mxu0
    %1197 = vmatpush.msra.mxu0 %v378
    %1198 = vmatpush.msra.mxu0 %v370
    %1199 = vmatpush.msra.mxu0 %v362
    %1200 = vmatpush.msra.mxu0 %v354
    %1201 = vmatpush.msra.mxu0 %v346
    %1202 = vmatpush.msra.mxu0 %v338
    %1203 = vmatpush.msra.mxu0 %v330
    %1204 = vmatpush.msra.mxu0 %v322
    %1205 = vmatpush.msra.mxu0 %v314
    %1206 = vmatpush.msra.mxu0 %v306
    %1207 = vmatpush.msra.mxu0 %v298
    %1208 = vmatpush.msra.mxu0 %v290
    %1209 = vmatpush.msra.mxu0 %v282
    %1210 = vmatpush.msra.mxu0 %v274
    %1211 = vmatpush.msra.mxu0 %v266
    %1212 = vmatpush.msra.mxu0 %v258
    %1213 = vmatmul.f32.gmra.mxu0 %v1017
    %v1214 = vpop.f32.mrf.mxu0
    %v1215 = vadd.f32 %v1195, %v1214
    %1216 = vdwg.mxu0
    %1217 = vmatpush.msra.mxu0 %v251
    %1218 = vmatpush.msra.mxu0 %v243
    %1219 = vmatpush.msra.mxu0 %v235
    %1220 = vmatpush.msra.mxu0 %v227
    %1221 = vmatpush.msra.mxu0 %v219
    %1222 = vmatpush.msra.mxu0 %v211
    %1223 = vmatpush.msra.mxu0 %v203
    %1224 = vmatpush.msra.mxu0 %v195
    %1225 = vmatpush.msra.mxu0 %v187
    %1226 = vmatpush.msra.mxu0 %v179
    %1227 = vmatpush.msra.mxu0 %v171
    %1228 = vmatpush.msra.mxu0 %v163
    %1229 = vmatpush.msra.mxu0 %v155
    %1230 = vmatpush.msra.mxu0 %v147
    %1231 = vmatpush.msra.mxu0 %v139
    %1232 = vmatpush.msra.mxu0 %v131
    %1233 = vmatmul.f32.gmra.mxu0 %v1096
    %v1234 = vpop.f32.mrf.mxu0
    %v1235 = vadd.f32 0.0, %v1234
    %1236 = vdwg.mxu0
    %1237 = vmatpush.msra.mxu0 %v379
    %1238 = vmatpush.msra.mxu0 %v371
    %1239 = vmatpush.msra.mxu0 %v363
    %1240 = vmatpush.msra.mxu0 %v355
    %1241 = vmatpush.msra.mxu0 %v347
    %1242 = vmatpush.msra.mxu0 %v339
    %1243 = vmatpush.msra.mxu0 %v331
    %1244 = vmatpush.msra.mxu0 %v323
    %1245 = vmatpush.msra.mxu0 %v315
    %1246 = vmatpush.msra.mxu0 %v307
    %1247 = vmatpush.msra.mxu0 %v299
    %1248 = vmatpush.msra.mxu0 %v291
    %1249 = vmatpush.msra.mxu0 %v283
    %1250 = vmatpush.msra.mxu0 %v275
    %1251 = vmatpush.msra.mxu0 %v267
    %1252 = vmatpush.msra.mxu0 %v259
    %1253 = vmatmul.f32.gmra.mxu0 %v1017
    %v1254 = vpop.f32.mrf.mxu0
    %v1255 = vadd.f32 %v1235, %v1254
    %1256 = vdwg.mxu0
    %1257 = vmatpush.msra.mxu0 %v252
    %1258 = vmatpush.msra.mxu0 %v244
    %1259 = vmatpush.msra.mxu0 %v236
    %1260 = vmatpush.msra.mxu0 %v228
    %1261 = vmatpush.msra.mxu0 %v220
    %1262 = vmatpush.msra.mxu0 %v212
    %1263 = vmatpush.msra.mxu0 %v204
    %1264 = vmatpush.msra.mxu0 %v196
    %1265 = vmatpush.msra.mxu0 %v188
    %1266 = vmatpush.msra.mxu0 %v180
    %1267 = vmatpush.msra.mxu0 %v172
    %1268 = vmatpush.msra.mxu0 %v164
    %1269 = vmatpush.msra.mxu0 %v156
    %1270 = vmatpush.msra.mxu0 %v148
    %1271 = vmatpush.msra.mxu0 %v140
    %1272 = vmatpush.msra.mxu0 %v132
    %1273 = vmatmul.f32.gmra.mxu0 %v1096
    %v1274 = vpop.f32.mrf.mxu0
    %v1275 = vadd.f32 0.0, %v1274
    %1276 = vdwg.mxu0
    %1277 = vmatpush.msra.mxu0 %v380
    %1278 = vmatpush.msra.mxu0 %v372
    %1279 = vmatpush.msra.mxu0 %v364
    %1280 = vmatpush.msra.mxu0 %v356
    %1281 = vmatpush.msra.mxu0 %v348
    %1282 = vmatpush.msra.mxu0 %v340
    %1283 = vmatpush.msra.mxu0 %v332
    %1284 = vmatpush.msra.mxu0 %v324
    %1285 = vmatpush.msra.mxu0 %v316
    %1286 = vmatpush.msra.mxu0 %v308
    %1287 = vmatpush.msra.mxu0 %v300
    %1288 = vmatpush.msra.mxu0 %v292
    %1289 = vmatpush.msra.mxu0 %v284
    %1290 = vmatpush.msra.mxu0 %v276
    %1291 = vmatpush.msra.mxu0 %v268
    %1292 = vmatpush.msra.mxu0 %v260
    %1293 = vmatmul.f32.gmra.mxu0 %v1017
    %v1294 = vpop.f32.mrf.mxu0
    %v1295 = vadd.f32 %v1275, %v1294
    %1296 = vdwg.mxu0
    %1297 = vmatpush.msra.mxu0 %v253
    %1298 = vmatpush.msra.mxu0 %v245
    %1299 = vmatpush.msra.mxu0 %v237
    %1300 = vmatpush.msra.mxu0 %v229
    %1301 = vmatpush.msra.mxu0 %v221
    %1302 = vmatpush.msra.mxu0 %v213
    %1303 = vmatpush.msra.mxu0 %v205
    %1304 = vmatpush.msra.mxu0 %v197
    %1305 = vmatpush.msra.mxu0 %v189
    %1306 = vmatpush.msra.mxu0 %v181
    %1307 = vmatpush.msra.mxu0 %v173
    %1308 = vmatpush.msra.mxu0 %v165
    %1309 = vmatpush.msra.mxu0 %v157
    %1310 = vmatpush.msra.mxu0 %v149
    %1311 = vmatpush.msra.mxu0 %v141
    %1312 = vmatpush.msra.mxu0 %v133
    %1313 = vmatmul.f32.gmra.mxu0 %v1096
    %v1314 = vpop.f32.mrf.mxu0
    %v1315 = vadd.f32 0.0, %v1314
    %1316 = vdwg.mxu0
    %1317 = vmatpush.msra.mxu0 %v381
    %1318 = vmatpush.msra.mxu0 %v373
    %1319 = vmatpush.msra.mxu0 %v365
    %1320 = vmatpush.msra.mxu0 %v357
    %1321 = vmatpush.msra.mxu0 %v349
    %1322 = vmatpush.msra.mxu0 %v341
    %1323 = vmatpush.msra.mxu0 %v333
    %1324 = vmatpush.msra.mxu0 %v325
    %1325 = vmatpush.msra.mxu0 %v317
    %1326 = vmatpush.msra.mxu0 %v309
    %1327 = vmatpush.msra.mxu0 %v301
    %1328 = vmatpush.msra.mxu0 %v293
    %1329 = vmatpush.msra.mxu0 %v285
    %1330 = vmatpush.msra.mxu0 %v277
    %1331 = vmatpush.msra.mxu0 %v269
    %1332 = vmatpush.msra.mxu0 %v261
    %1333 = vmatmul.f32.gmra.mxu0 %v1017
    %v1334 = vpop.f32.mrf.mxu0
    %v1335 = vadd.f32 %v1315, %v1334
    %1336 = vdwg.mxu0
    %1337 = vmatpush.msra.mxu0 %v254
    %1338 = vmatpush.msra.mxu0 %v246
    %1339 = vmatpush.msra.mxu0 %v238
    %1340 = vmatpush.msra.mxu0 %v230
    %1341 = vmatpush.msra.mxu0 %v222
    %1342 = vmatpush.msra.mxu0 %v214
    %1343 = vmatpush.msra.mxu0 %v206
    %1344 = vmatpush.msra.mxu0 %v198
    %1345 = vmatpush.msra.mxu0 %v190
    %1346 = vmatpush.msra.mxu0 %v182
    %1347 = vmatpush.msra.mxu0 %v174
    %1348 = vmatpush.msra.mxu0 %v166
    %1349 = vmatpush.msra.mxu0 %v158
    %1350 = vmatpush.msra.mxu0 %v150
    %1351 = vmatpush.msra.mxu0 %v142
    %1352 = vmatpush.msra.mxu0 %v134
    %1353 = vmatmul.f32.gmra.mxu0 %v1096
    %v1354 = vpop.f32.mrf.mxu0
    %v1355 = vadd.f32 0.0, %v1354
    %1356 = vdwg.mxu0
    %1357 = vmatpush.msra.mxu0 %v382
    %1358 = vmatpush.msra.mxu0 %v374
    %1359 = vmatpush.msra.mxu0 %v366
    %1360 = vmatpush.msra.mxu0 %v358
    %1361 = vmatpush.msra.mxu0 %v350
    %1362 = vmatpush.msra.mxu0 %v342
    %1363 = vmatpush.msra.mxu0 %v334
    %1364 = vmatpush.msra.mxu0 %v326
    %1365 = vmatpush.msra.mxu0 %v318
    %1366 = vmatpush.msra.mxu0 %v310
    %1367 = vmatpush.msra.mxu0 %v302
    %1368 = vmatpush.msra.mxu0 %v294
    %1369 = vmatpush.msra.mxu0 %v286
    %1370 = vmatpush.msra.mxu0 %v278
    %1371 = vmatpush.msra.mxu0 %v270
    %1372 = vmatpush.msra.mxu0 %v262
    %1373 = vmatmul.f32.gmra.mxu0 %v1017
    %v1374 = vpop.f32.mrf.mxu0
    %v1375 = vadd.f32 %v1355, %v1374
    %1376 = vdwg.mxu0
    %1377 = vmatpush.msra.mxu0 %v255
    %1378 = vmatpush.msra.mxu0 %v247
    %1379 = vmatpush.msra.mxu0 %v239
    %1380 = vmatpush.msra.mxu0 %v231
    %1381 = vmatpush.msra.mxu0 %v223
    %1382 = vmatpush.msra.mxu0 %v215
    %1383 = vmatpush.msra.mxu0 %v207
    %1384 = vmatpush.msra.mxu0 %v199
    %1385 = vmatpush.msra.mxu0 %v191
    %1386 = vmatpush.msra.mxu0 %v183
    %1387 = vmatpush.msra.mxu0 %v175
    %1388 = vmatpush.msra.mxu0 %v167
    %1389 = vmatpush.msra.mxu0 %v159
    %1390 = vmatpush.msra.mxu0 %v151
    %1391 = vmatpush.msra.mxu0 %v143
    %1392 = vmatpush.msra.mxu0 %v135
    %1393 = vmatmul.f32.gmra.mxu0 %v1096
    %v1394 = vpop.f32.mrf.mxu0
    %v1395 = vadd.f32 0.0, %v1394
    %1396 = vdwg.mxu0
    %1397 = vmatpush.msra.mxu0 %v383
    %1398 = vmatpush.msra.mxu0 %v375
    %1399 = vmatpush.msra.mxu0 %v367
    %1400 = vmatpush.msra.mxu0 %v359
    %1401 = vmatpush.msra.mxu0 %v351
    %1402 = vmatpush.msra.mxu0 %v343
    %1403 = vmatpush.msra.mxu0 %v335
    %1404 = vmatpush.msra.mxu0 %v327
    %1405 = vmatpush.msra.mxu0 %v319
    %1406 = vmatpush.msra.mxu0 %v311
    %1407 = vmatpush.msra.mxu0 %v303
    %1408 = vmatpush.msra.mxu0 %v295
    %1409 = vmatpush.msra.mxu0 %v287
    %1410 = vmatpush.msra.mxu0 %v279
    %1411 = vmatpush.msra.mxu0 %v271
    %1412 = vmatpush.msra.mxu0 %v263
    %1413 = vmatmul.f32.gmra.mxu0 %v1017
    %v1414 = vpop.f32.mrf.mxu0
    %v1415 = vadd.f32 %v1395, %v1414
    %1416 = vdwg.mxu0
    %v1417 = vadd.f32 %v1295, %v943
    %v1418 = vadd.f32 %v1335, %v944
    %v1419 = vadd.f32 %v1375, %v945
    %v1420 = vadd.f32 %v1415, %v946
    %v1421 = vxor.u32 %v1417, 2147483648
    %v1422 = vmul.f32 %v1421, 1.442695
    %v1423 = vpow.pop %v1422
    %v1424 = vadd.f32 %v1423, 1.0
    %v1425 = vrcp.pop %v1424
    %v1426 = vmul.f32 %v1424, %v1425
    %v1427 = vsub.f32 1.0, %v1426
    %v1428 = vmul.f32 %v1425, %v1427
    %v1429 = vadd.f32 %v1425, %v1428
    %vm1430 = vweird.f32 %v1424
    %vm1431 = vweird.f32 %v1425
    %vm1432 = vmor %vm1430, %vm1431
    %v1433 = vsel %vm1432, %v1425, %v1429
    %v1434 = vand.u32 2147483647, %v1424
    %vm1435 = vcmp.eq.f32.partialorder %v1434, 8.507059e+37
    %v1436 = vand.u32 %v1424, 2147483648
    %v1437 = vor.u32 1.1754944e-38, %v1436
    %v1438 = vsel %vm1435, %v1437, %v1433
    %v1439 = vmul.f32 1.0, %v1438
    %v1440 = vxor.u32 %v1418, 2147483648
    %v1441 = vmul.f32 %v1440, 1.442695
    %v1442 = vpow.pop %v1441
    %v1443 = vadd.f32 %v1442, 1.0
    %v1444 = vrcp.pop %v1443
    %v1445 = vmul.f32 %v1443, %v1444
    %v1446 = vsub.f32 1.0, %v1445
    %v1447 = vmul.f32 %v1444, %v1446
    %v1448 = vadd.f32 %v1444, %v1447
    %vm1449 = vweird.f32 %v1443
    %vm1450 = vweird.f32 %v1444
    %vm1451 = vmor %vm1449, %vm1450
    %v1452 = vsel %vm1451, %v1444, %v1448
    %v1453 = vand.u32 2147483647, %v1443
    %vm1454 = vcmp.eq.f32.partialorder %v1453, 8.507059e+37
    %v1455 = vand.u32 %v1443, 2147483648
    %v1456 = vor.u32 1.1754944e-38, %v1455
    %v1457 = vsel %vm1454, %v1456, %v1452
    %v1458 = vmul.f32 1.0, %v1457
    %v1459 = vtanh.pop %v1419
    %v1460 = vxor.u32 %v1420, 2147483648
    %v1461 = vmul.f32 %v1460, 1.442695
    %v1462 = vpow.pop %v1461
    %v1463 = vadd.f32 %v1462, 1.0
    %v1464 = vrcp.pop %v1463
    %v1465 = vmul.f32 %v1463, %v1464
    %v1466 = vsub.f32 1.0, %v1465
    %v1467 = vmul.f32 %v1464, %v1466
    %v1468 = vadd.f32 %v1464, %v1467
    %vm1469 = vweird.f32 %v1463
    %vm1470 = vweird.f32 %v1464
    %vm1471 = vmor %vm1469, %vm1470
    %v1472 = vsel %vm1471, %v1464, %v1468
    %v1473 = vand.u32 2147483647, %v1463
    %vm1474 = vcmp.eq.f32.partialorder %v1473, 8.507059e+37
    %v1475 = vand.u32 %v1463, 2147483648
    %v1476 = vor.u32 1.1754944e-38, %v1475
    %v1477 = vsel %vm1474, %v1476, %v1472
    %v1478 = vmul.f32 1.0, %v1477
    %v1479 = vmul.f32 %v1458, %v1015
    %v1480 = vmul.f32 %v1439, %v1459
    %v1481 = vadd.f32 %v1479, %v1480
    %v1482 = vtanh.pop %v1481
    %v1483 = vmul.f32 %v1478, %v1482
    %s1484 = scalar_lea.vmem [#allocation2], 16
    %v1485 = vld [vmem:[%s1484] sm:$0xff]
    %1487 = vst [vmem:[#allocation1] ss:$4 sm:$0xff] %v1485
    %v1488 = vld.sshfl [vmem:[#allocation1] sm:$0xff pattern:$0x73625140]
    %v1489 = vld.sshfl [vmem:[#allocation1 + $0x8] sm:$0xff pattern:$0x73625140]
    %v1490 = vld.sshfl [vmem:[#allocation1 + $0x10] sm:$0xff pattern:$0x73625140]
    %v1491 = vld.sshfl [vmem:[#allocation1 + $0x18] sm:$0xff pattern:$0x73625140]
    %v1496 = vadd.f32 %v1135, %v1488
    %v1497 = vadd.f32 %v1175, %v1489
    %v1498 = vadd.f32 %v1215, %v1490
    %v1499 = vadd.f32 %v1255, %v1491
    %v1500 = vxor.u32 %v1496, 2147483648
    %v1501 = vmul.f32 %v1500, 1.442695
    %v1502 = vpow.pop %v1501
    %v1503 = vadd.f32 %v1502, 1.0
    %v1504 = vrcp.pop %v1503
    %v1505 = vmul.f32 %v1503, %v1504
    %v1506 = vsub.f32 1.0, %v1505
    %v1507 = vmul.f32 %v1504, %v1506
    %v1508 = vadd.f32 %v1504, %v1507
    %vm1509 = vweird.f32 %v1503
    %vm1510 = vweird.f32 %v1504
    %vm1511 = vmor %vm1509, %vm1510
    %v1512 = vsel %vm1511, %v1504, %v1508
    %v1513 = vand.u32 2147483647, %v1503
    %vm1514 = vcmp.eq.f32.partialorder %v1513, 8.507059e+37
    %v1515 = vand.u32 %v1503, 2147483648
    %v1516 = vor.u32 1.1754944e-38, %v1515
    %v1517 = vsel %vm1514, %v1516, %v1512
    %v1518 = vmul.f32 1.0, %v1517
    %v1519 = vxor.u32 %v1497, 2147483648
    %v1520 = vmul.f32 %v1519, 1.442695
    %v1521 = vpow.pop %v1520
    %v1522 = vadd.f32 %v1521, 1.0
    %v1523 = vrcp.pop %v1522
    %v1524 = vmul.f32 %v1522, %v1523
    %v1525 = vsub.f32 1.0, %v1524
    %v1526 = vmul.f32 %v1523, %v1525
    %v1527 = vadd.f32 %v1523, %v1526
    %vm1528 = vweird.f32 %v1522
    %vm1529 = vweird.f32 %v1523
    %vm1530 = vmor %vm1528, %vm1529
    %v1531 = vsel %vm1530, %v1523, %v1527
    %v1532 = vand.u32 2147483647, %v1522
    %vm1533 = vcmp.eq.f32.partialorder %v1532, 8.507059e+37
    %v1534 = vand.u32 %v1522, 2147483648
    %v1535 = vor.u32 1.1754944e-38, %v1534
    %v1536 = vsel %vm1533, %v1535, %v1531
    %v1537 = vmul.f32 1.0, %v1536
    %v1538 = vtanh.pop %v1498
    %v1539 = vxor.u32 %v1499, 2147483648
    %v1540 = vmul.f32 %v1539, 1.442695
    %v1541 = vpow.pop %v1540
    %v1542 = vadd.f32 %v1541, 1.0
    %v1543 = vrcp.pop %v1542
    %v1544 = vmul.f32 %v1542, %v1543
    %v1545 = vsub.f32 1.0, %v1544
    %v1546 = vmul.f32 %v1543, %v1545
    %v1547 = vadd.f32 %v1543, %v1546
    %vm1548 = vweird.f32 %v1542
    %vm1549 = vweird.f32 %v1543
    %vm1550 = vmor %vm1548, %vm1549
    %v1551 = vsel %vm1550, %v1543, %v1547
    %v1552 = vand.u32 2147483647, %v1542
    %vm1553 = vcmp.eq.f32.partialorder %v1552, 8.507059e+37
    %v1554 = vand.u32 %v1542, 2147483648
    %v1555 = vor.u32 1.1754944e-38, %v1554
    %v1556 = vsel %vm1553, %v1555, %v1551
    %v1557 = vmul.f32 1.0, %v1556
    %v1558 = vmul.f32 %v1537, %v1094
    %v1559 = vmul.f32 %v1518, %v1538
    %v1560 = vadd.f32 %v1558, %v1559
    %v1561 = vtanh.pop %v1560
    %v1562 = vmul.f32 %v1557, %v1561
    %1563 = vmatpush.msra.mxu0 %v248
    %1564 = vmatpush.msra.mxu0 %v240
    %1565 = vmatpush.msra.mxu0 %v232
    %1566 = vmatpush.msra.mxu0 %v224
    %1567 = vmatpush.msra.mxu0 %v216
    %1568 = vmatpush.msra.mxu0 %v208
    %1569 = vmatpush.msra.mxu0 %v200
    %1570 = vmatpush.msra.mxu0 %v192
    %1571 = vmatpush.msra.mxu0 %v184
    %1572 = vmatpush.msra.mxu0 %v176
    %1573 = vmatpush.msra.mxu0 %v168
    %1574 = vmatpush.msra.mxu0 %v160
    %1575 = vmatpush.msra.mxu0 %v152
    %1576 = vmatpush.msra.mxu0 %v144
    %1577 = vmatpush.msra.mxu0 %v136
    %1578 = vmatpush.msra.mxu0 %v128
    %1579 = vmatmul.f32.gmra.mxu0 %v1562
    %v1580 = vpop.f32.mrf.mxu0
    %v1581 = vadd.f32 0.0, %v1580
    %1582 = vdwg.mxu0
    %1583 = vmatpush.msra.mxu0 %v376
    %1584 = vmatpush.msra.mxu0 %v368
    %1585 = vmatpush.msra.mxu0 %v360
    %1586 = vmatpush.msra.mxu0 %v352
    %1587 = vmatpush.msra.mxu0 %v344
    %1588 = vmatpush.msra.mxu0 %v336
    %1589 = vmatpush.msra.mxu0 %v328
    %1590 = vmatpush.msra.mxu0 %v320
    %1591 = vmatpush.msra.mxu0 %v312
    %1592 = vmatpush.msra.mxu0 %v304
    %1593 = vmatpush.msra.mxu0 %v296
    %1594 = vmatpush.msra.mxu0 %v288
    %1595 = vmatpush.msra.mxu0 %v280
    %1596 = vmatpush.msra.mxu0 %v272
    %1597 = vmatpush.msra.mxu0 %v264
    %1598 = vmatpush.msra.mxu0 %v256
    %1599 = vmatmul.f32.gmra.mxu0 %v1483
    %v1600 = vpop.f32.mrf.mxu0
    %v1601 = vadd.f32 %v1581, %v1600
    %1602 = vdwg.mxu0
    %1603 = vmatpush.msra.mxu0 %v249
    %1604 = vmatpush.msra.mxu0 %v241
    %1605 = vmatpush.msra.mxu0 %v233
    %1606 = vmatpush.msra.mxu0 %v225
    %1607 = vmatpush.msra.mxu0 %v217
    %1608 = vmatpush.msra.mxu0 %v209
    %1609 = vmatpush.msra.mxu0 %v201
    %1610 = vmatpush.msra.mxu0 %v193
    %1611 = vmatpush.msra.mxu0 %v185
    %1612 = vmatpush.msra.mxu0 %v177
    %1613 = vmatpush.msra.mxu0 %v169
    %1614 = vmatpush.msra.mxu0 %v161
    %1615 = vmatpush.msra.mxu0 %v153
    %1616 = vmatpush.msra.mxu0 %v145
    %1617 = vmatpush.msra.mxu0 %v137
    %1618 = vmatpush.msra.mxu0 %v129
    %1619 = vmatmul.f32.gmra.mxu0 %v1562
    %v1620 = vpop.f32.mrf.mxu0
    %v1621 = vadd.f32 0.0, %v1620
    %1622 = vdwg.mxu0
    %1623 = vmatpush.msra.mxu0 %v377
    %1624 = vmatpush.msra.mxu0 %v369
    %1625 = vmatpush.msra.mxu0 %v361
    %1626 = vmatpush.msra.mxu0 %v353
    %1627 = vmatpush.msra.mxu0 %v345
    %1628 = vmatpush.msra.mxu0 %v337
    %1629 = vmatpush.msra.mxu0 %v329
    %1630 = vmatpush.msra.mxu0 %v321
    %1631 = vmatpush.msra.mxu0 %v313
    %1632 = vmatpush.msra.mxu0 %v305
    %1633 = vmatpush.msra.mxu0 %v297
    %1634 = vmatpush.msra.mxu0 %v289
    %1635 = vmatpush.msra.mxu0 %v281
    %1636 = vmatpush.msra.mxu0 %v273
    %1637 = vmatpush.msra.mxu0 %v265
    %1638 = vmatpush.msra.mxu0 %v257
    %1639 = vmatmul.f32.gmra.mxu0 %v1483
    %v1640 = vpop.f32.mrf.mxu0
    %v1641 = vadd.f32 %v1621, %v1640
    %1642 = vdwg.mxu0
    %1643 = vmatpush.msra.mxu0 %v250
    %1644 = vmatpush.msra.mxu0 %v242
    %1645 = vmatpush.msra.mxu0 %v234
    %1646 = vmatpush.msra.mxu0 %v226
    %1647 = vmatpush.msra.mxu0 %v218
    %1648 = vmatpush.msra.mxu0 %v210
    %1649 = vmatpush.msra.mxu0 %v202
    %1650 = vmatpush.msra.mxu0 %v194
    %1651 = vmatpush.msra.mxu0 %v186
    %1652 = vmatpush.msra.mxu0 %v178
    %1653 = vmatpush.msra.mxu0 %v170
    %1654 = vmatpush.msra.mxu0 %v162
    %1655 = vmatpush.msra.mxu0 %v154
    %1656 = vmatpush.msra.mxu0 %v146
    %1657 = vmatpush.msra.mxu0 %v138
    %1658 = vmatpush.msra.mxu0 %v130
    %1659 = vmatmul.f32.gmra.mxu0 %v1562
    %v1660 = vpop.f32.mrf.mxu0
    %v1661 = vadd.f32 0.0, %v1660
    %1662 = vdwg.mxu0
    %1663 = vmatpush.msra.mxu0 %v378
    %1664 = vmatpush.msra.mxu0 %v370
    %1665 = vmatpush.msra.mxu0 %v362
    %1666 = vmatpush.msra.mxu0 %v354
    %1667 = vmatpush.msra.mxu0 %v346
    %1668 = vmatpush.msra.mxu0 %v338
    %1669 = vmatpush.msra.mxu0 %v330
    %1670 = vmatpush.msra.mxu0 %v322
    %1671 = vmatpush.msra.mxu0 %v314
    %1672 = vmatpush.msra.mxu0 %v306
    %1673 = vmatpush.msra.mxu0 %v298
    %1674 = vmatpush.msra.mxu0 %v290
    %1675 = vmatpush.msra.mxu0 %v282
    %1676 = vmatpush.msra.mxu0 %v274
    %1677 = vmatpush.msra.mxu0 %v266
    %1678 = vmatpush.msra.mxu0 %v258
    %1679 = vmatmul.f32.gmra.mxu0 %v1483
    %v1680 = vpop.f32.mrf.mxu0
    %v1681 = vadd.f32 %v1661, %v1680
    %1682 = vdwg.mxu0
    %1683 = vmatpush.msra.mxu0 %v251
    %1684 = vmatpush.msra.mxu0 %v243
    %1685 = vmatpush.msra.mxu0 %v235
    %1686 = vmatpush.msra.mxu0 %v227
    %1687 = vmatpush.msra.mxu0 %v219
    %1688 = vmatpush.msra.mxu0 %v211
    %1689 = vmatpush.msra.mxu0 %v203
    %1690 = vmatpush.msra.mxu0 %v195
    %1691 = vmatpush.msra.mxu0 %v187
    %1692 = vmatpush.msra.mxu0 %v179
    %1693 = vmatpush.msra.mxu0 %v171
    %1694 = vmatpush.msra.mxu0 %v163
    %1695 = vmatpush.msra.mxu0 %v155
    %1696 = vmatpush.msra.mxu0 %v147
    %1697 = vmatpush.msra.mxu0 %v139
    %1698 = vmatpush.msra.mxu0 %v131
    %1699 = vmatmul.f32.gmra.mxu0 %v1562
    %v1700 = vpop.f32.mrf.mxu0
    %v1701 = vadd.f32 0.0, %v1700
    %1702 = vdwg.mxu0
    %1703 = vmatpush.msra.mxu0 %v379
    %1704 = vmatpush.msra.mxu0 %v371
    %1705 = vmatpush.msra.mxu0 %v363
    %1706 = vmatpush.msra.mxu0 %v355
    %1707 = vmatpush.msra.mxu0 %v347
    %1708 = vmatpush.msra.mxu0 %v339
    %1709 = vmatpush.msra.mxu0 %v331
    %1710 = vmatpush.msra.mxu0 %v323
    %1711 = vmatpush.msra.mxu0 %v315
    %1712 = vmatpush.msra.mxu0 %v307
    %1713 = vmatpush.msra.mxu0 %v299
    %1714 = vmatpush.msra.mxu0 %v291
    %1715 = vmatpush.msra.mxu0 %v283
    %1716 = vmatpush.msra.mxu0 %v275
    %1717 = vmatpush.msra.mxu0 %v267
    %1718 = vmatpush.msra.mxu0 %v259
    %1719 = vmatmul.f32.gmra.mxu0 %v1483
    %v1720 = vpop.f32.mrf.mxu0
    %v1721 = vadd.f32 %v1701, %v1720
    %1722 = vdwg.mxu0
    %1723 = vmatpush.msra.mxu0 %v252
    %1724 = vmatpush.msra.mxu0 %v244
    %1725 = vmatpush.msra.mxu0 %v236
    %1726 = vmatpush.msra.mxu0 %v228
    %1727 = vmatpush.msra.mxu0 %v220
    %1728 = vmatpush.msra.mxu0 %v212
    %1729 = vmatpush.msra.mxu0 %v204
    %1730 = vmatpush.msra.mxu0 %v196
    %1731 = vmatpush.msra.mxu0 %v188
    %1732 = vmatpush.msra.mxu0 %v180
    %1733 = vmatpush.msra.mxu0 %v172
    %1734 = vmatpush.msra.mxu0 %v164
    %1735 = vmatpush.msra.mxu0 %v156
    %1736 = vmatpush.msra.mxu0 %v148
    %1737 = vmatpush.msra.mxu0 %v140
    %1738 = vmatpush.msra.mxu0 %v132
    %1739 = vmatmul.f32.gmra.mxu0 %v1562
    %v1740 = vpop.f32.mrf.mxu0
    %v1741 = vadd.f32 0.0, %v1740
    %1742 = vdwg.mxu0
    %1743 = vmatpush.msra.mxu0 %v380
    %1744 = vmatpush.msra.mxu0 %v372
    %1745 = vmatpush.msra.mxu0 %v364
    %1746 = vmatpush.msra.mxu0 %v356
    %1747 = vmatpush.msra.mxu0 %v348
    %1748 = vmatpush.msra.mxu0 %v340
    %1749 = vmatpush.msra.mxu0 %v332
    %1750 = vmatpush.msra.mxu0 %v324
    %1751 = vmatpush.msra.mxu0 %v316
    %1752 = vmatpush.msra.mxu0 %v308
    %1753 = vmatpush.msra.mxu0 %v300
    %1754 = vmatpush.msra.mxu0 %v292
    %1755 = vmatpush.msra.mxu0 %v284
    %1756 = vmatpush.msra.mxu0 %v276
    %1757 = vmatpush.msra.mxu0 %v268
    %1758 = vmatpush.msra.mxu0 %v260
    %1759 = vmatmul.f32.gmra.mxu0 %v1483
    %v1760 = vpop.f32.mrf.mxu0
    %v1761 = vadd.f32 %v1741, %v1760
    %1762 = vdwg.mxu0
    %1763 = vmatpush.msra.mxu0 %v253
    %1764 = vmatpush.msra.mxu0 %v245
    %1765 = vmatpush.msra.mxu0 %v237
    %1766 = vmatpush.msra.mxu0 %v229
    %1767 = vmatpush.msra.mxu0 %v221
    %1768 = vmatpush.msra.mxu0 %v213
    %1769 = vmatpush.msra.mxu0 %v205
    %1770 = vmatpush.msra.mxu0 %v197
    %1771 = vmatpush.msra.mxu0 %v189
    %1772 = vmatpush.msra.mxu0 %v181
    %1773 = vmatpush.msra.mxu0 %v173
    %1774 = vmatpush.msra.mxu0 %v165
    %1775 = vmatpush.msra.mxu0 %v157
    %1776 = vmatpush.msra.mxu0 %v149
    %1777 = vmatpush.msra.mxu0 %v141
    %1778 = vmatpush.msra.mxu0 %v133
    %1779 = vmatmul.f32.gmra.mxu0 %v1562
    %v1780 = vpop.f32.mrf.mxu0
    %v1781 = vadd.f32 0.0, %v1780
    %1782 = vdwg.mxu0
    %1783 = vmatpush.msra.mxu0 %v381
    %1784 = vmatpush.msra.mxu0 %v373
    %1785 = vmatpush.msra.mxu0 %v365
    %1786 = vmatpush.msra.mxu0 %v357
    %1787 = vmatpush.msra.mxu0 %v349
    %1788 = vmatpush.msra.mxu0 %v341
    %1789 = vmatpush.msra.mxu0 %v333
    %1790 = vmatpush.msra.mxu0 %v325
    %1791 = vmatpush.msra.mxu0 %v317
    %1792 = vmatpush.msra.mxu0 %v309
    %1793 = vmatpush.msra.mxu0 %v301
    %1794 = vmatpush.msra.mxu0 %v293
    %1795 = vmatpush.msra.mxu0 %v285
    %1796 = vmatpush.msra.mxu0 %v277
    %1797 = vmatpush.msra.mxu0 %v269
    %1798 = vmatpush.msra.mxu0 %v261
    %1799 = vmatmul.f32.gmra.mxu0 %v1483
    %v1800 = vpop.f32.mrf.mxu0
    %v1801 = vadd.f32 %v1781, %v1800
    %1802 = vdwg.mxu0
    %1803 = vmatpush.msra.mxu0 %v254
    %1804 = vmatpush.msra.mxu0 %v246
    %1805 = vmatpush.msra.mxu0 %v238
    %1806 = vmatpush.msra.mxu0 %v230
    %1807 = vmatpush.msra.mxu0 %v222
    %1808 = vmatpush.msra.mxu0 %v214
    %1809 = vmatpush.msra.mxu0 %v206
    %1810 = vmatpush.msra.mxu0 %v198
    %1811 = vmatpush.msra.mxu0 %v190
    %1812 = vmatpush.msra.mxu0 %v182
    %1813 = vmatpush.msra.mxu0 %v174
    %1814 = vmatpush.msra.mxu0 %v166
    %1815 = vmatpush.msra.mxu0 %v158
    %1816 = vmatpush.msra.mxu0 %v150
    %1817 = vmatpush.msra.mxu0 %v142
    %1818 = vmatpush.msra.mxu0 %v134
    %1819 = vmatmul.f32.gmra.mxu0 %v1562
    %v1820 = vpop.f32.mrf.mxu0
    %v1821 = vadd.f32 0.0, %v1820
    %1822 = vdwg.mxu0
    %1823 = vmatpush.msra.mxu0 %v382
    %1824 = vmatpush.msra.mxu0 %v374
    %1825 = vmatpush.msra.mxu0 %v366
    %1826 = vmatpush.msra.mxu0 %v358
    %1827 = vmatpush.msra.mxu0 %v350
    %1828 = vmatpush.msra.mxu0 %v342
    %1829 = vmatpush.msra.mxu0 %v334
    %1830 = vmatpush.msra.mxu0 %v326
    %1831 = vmatpush.msra.mxu0 %v318
    %1832 = vmatpush.msra.mxu0 %v310
    %1833 = vmatpush.msra.mxu0 %v302
    %1834 = vmatpush.msra.mxu0 %v294
    %1835 = vmatpush.msra.mxu0 %v286
    %1836 = vmatpush.msra.mxu0 %v278
    %1837 = vmatpush.msra.mxu0 %v270
    %1838 = vmatpush.msra.mxu0 %v262
    %1839 = vmatmul.f32.gmra.mxu0 %v1483
    %v1840 = vpop.f32.mrf.mxu0
    %v1841 = vadd.f32 %v1821, %v1840
    %1842 = vdwg.mxu0
    %1843 = vmatpush.msra.mxu0 %v255
    %1844 = vmatpush.msra.mxu0 %v247
    %1845 = vmatpush.msra.mxu0 %v239
    %1846 = vmatpush.msra.mxu0 %v231
    %1847 = vmatpush.msra.mxu0 %v223
    %1848 = vmatpush.msra.mxu0 %v215
    %1849 = vmatpush.msra.mxu0 %v207
    %1850 = vmatpush.msra.mxu0 %v199
    %1851 = vmatpush.msra.mxu0 %v191
    %1852 = vmatpush.msra.mxu0 %v183
    %1853 = vmatpush.msra.mxu0 %v175
    %1854 = vmatpush.msra.mxu0 %v167
    %1855 = vmatpush.msra.mxu0 %v159
    %1856 = vmatpush.msra.mxu0 %v151
    %1857 = vmatpush.msra.mxu0 %v143
    %1858 = vmatpush.msra.mxu0 %v135
    %1859 = vmatmul.f32.gmra.mxu0 %v1562
    %v1860 = vpop.f32.mrf.mxu0
    %v1861 = vadd.f32 0.0, %v1860
    %1862 = vdwg.mxu0
    %1863 = vmatpush.msra.mxu0 %v383
    %1864 = vmatpush.msra.mxu0 %v375
    %1865 = vmatpush.msra.mxu0 %v367
    %1866 = vmatpush.msra.mxu0 %v359
    %1867 = vmatpush.msra.mxu0 %v351
    %1868 = vmatpush.msra.mxu0 %v343
    %1869 = vmatpush.msra.mxu0 %v335
    %1870 = vmatpush.msra.mxu0 %v327
    %1871 = vmatpush.msra.mxu0 %v319
    %1872 = vmatpush.msra.mxu0 %v311
    %1873 = vmatpush.msra.mxu0 %v303
    %1874 = vmatpush.msra.mxu0 %v295
    %1875 = vmatpush.msra.mxu0 %v287
    %1876 = vmatpush.msra.mxu0 %v279
    %1877 = vmatpush.msra.mxu0 %v271
    %1878 = vmatpush.msra.mxu0 %v263
    %1879 = vmatmul.f32.gmra.mxu0 %v1483
    %v1880 = vpop.f32.mrf.mxu0
    %v1881 = vadd.f32 %v1861, %v1880
    %1882 = vdwg.mxu0
    %v1883 = vadd.f32 %v1761, %v943
    %v1884 = vadd.f32 %v1801, %v944
    %v1885 = vadd.f32 %v1841, %v945
    %v1886 = vadd.f32 %v1881, %v946
    %v1887 = vxor.u32 %v1883, 2147483648
    %v1888 = vmul.f32 %v1887, 1.442695
    %v1889 = vpow.pop %v1888
    %v1890 = vadd.f32 %v1889, 1.0
    %v1891 = vrcp.pop %v1890
    %v1892 = vmul.f32 %v1890, %v1891
    %v1893 = vsub.f32 1.0, %v1892
    %v1894 = vmul.f32 %v1891, %v1893
    %v1895 = vadd.f32 %v1891, %v1894
    %vm1896 = vweird.f32 %v1890
    %vm1897 = vweird.f32 %v1891
    %vm1898 = vmor %vm1896, %vm1897
    %v1899 = vsel %vm1898, %v1891, %v1895
    %v1900 = vand.u32 2147483647, %v1890
    %vm1901 = vcmp.eq.f32.partialorder %v1900, 8.507059e+37
    %v1902 = vand.u32 %v1890, 2147483648
    %v1903 = vor.u32 1.1754944e-38, %v1902
    %v1904 = vsel %vm1901, %v1903, %v1899
    %v1905 = vmul.f32 1.0, %v1904
    %v1906 = vxor.u32 %v1884, 2147483648
    %v1907 = vmul.f32 %v1906, 1.442695
    %v1908 = vpow.pop %v1907
    %v1909 = vadd.f32 %v1908, 1.0
    %v1910 = vrcp.pop %v1909
    %v1911 = vmul.f32 %v1909, %v1910
    %v1912 = vsub.f32 1.0, %v1911
    %v1913 = vmul.f32 %v1910, %v1912
    %v1914 = vadd.f32 %v1910, %v1913
    %vm1915 = vweird.f32 %v1909
    %vm1916 = vweird.f32 %v1910
    %vm1917 = vmor %vm1915, %vm1916
    %v1918 = vsel %vm1917, %v1910, %v1914
    %v1919 = vand.u32 2147483647, %v1909
    %vm1920 = vcmp.eq.f32.partialorder %v1919, 8.507059e+37
    %v1921 = vand.u32 %v1909, 2147483648
    %v1922 = vor.u32 1.1754944e-38, %v1921
    %v1923 = vsel %vm1920, %v1922, %v1918
    %v1924 = vmul.f32 1.0, %v1923
    %v1925 = vtanh.pop %v1885
    %v1926 = vxor.u32 %v1886, 2147483648
    %v1927 = vmul.f32 %v1926, 1.442695
    %v1928 = vpow.pop %v1927
    %v1929 = vadd.f32 %v1928, 1.0
    %v1930 = vrcp.pop %v1929
    %v1931 = vmul.f32 %v1929, %v1930
    %v1932 = vsub.f32 1.0, %v1931
    %v1933 = vmul.f32 %v1930, %v1932
    %v1934 = vadd.f32 %v1930, %v1933
    %vm1935 = vweird.f32 %v1929
    %vm1936 = vweird.f32 %v1930
    %vm1937 = vmor %vm1935, %vm1936
    %v1938 = vsel %vm1937, %v1930, %v1934
    %v1939 = vand.u32 2147483647, %v1929
    %vm1940 = vcmp.eq.f32.partialorder %v1939, 8.507059e+37
    %v1941 = vand.u32 %v1929, 2147483648
    %v1942 = vor.u32 1.1754944e-38, %v1941
    %v1943 = vsel %vm1940, %v1942, %v1938
    %v1944 = vmul.f32 1.0, %v1943
    %v1945 = vmul.f32 %v1924, %v1481
    %v1946 = vmul.f32 %v1905, %v1925
    %v1947 = vadd.f32 %v1945, %v1946
    %v1948 = vtanh.pop %v1947
    %v1949 = vmul.f32 %v1944, %v1948
    %s1950 = scalar_lea.vmem [#allocation2], 24
    %v1951 = vld [vmem:[%s1950] sm:$0xff]
    %1953 = vst [vmem:[#allocation1] ss:$4 sm:$0xff] %v1951
    %v1954 = vld.sshfl [vmem:[#allocation1] sm:$0xff pattern:$0x73625140]
    %v1955 = vld.sshfl [vmem:[#allocation1 + $0x8] sm:$0xff pattern:$0x73625140]
    %v1956 = vld.sshfl [vmem:[#allocation1 + $0x10] sm:$0xff pattern:$0x73625140]
    %v1957 = vld.sshfl [vmem:[#allocation1 + $0x18] sm:$0xff pattern:$0x73625140]
    %v1962 = vadd.f32 %v1601, %v1954
    %v1963 = vadd.f32 %v1641, %v1955
    %v1964 = vadd.f32 %v1681, %v1956
    %v1965 = vadd.f32 %v1721, %v1957
    %v1966 = vxor.u32 %v1962, 2147483648
    %v1967 = vmul.f32 %v1966, 1.442695
    %v1968 = vpow.pop %v1967
    %v1969 = vadd.f32 %v1968, 1.0
    %v1970 = vrcp.pop %v1969
    %v1971 = vmul.f32 %v1969, %v1970
    %v1972 = vsub.f32 1.0, %v1971
    %v1973 = vmul.f32 %v1970, %v1972
    %v1974 = vadd.f32 %v1970, %v1973
    %vm1975 = vweird.f32 %v1969
    %vm1976 = vweird.f32 %v1970
    %vm1977 = vmor %vm1975, %vm1976
    %v1978 = vsel %vm1977, %v1970, %v1974
    %v1979 = vand.u32 2147483647, %v1969
    %vm1980 = vcmp.eq.f32.partialorder %v1979, 8.507059e+37
    %v1981 = vand.u32 %v1969, 2147483648
    %v1982 = vor.u32 1.1754944e-38, %v1981
    %v1983 = vsel %vm1980, %v1982, %v1978
    %v1984 = vmul.f32 1.0, %v1983
    %v1985 = vxor.u32 %v1963, 2147483648
    %v1986 = vmul.f32 %v1985, 1.442695
    %v1987 = vpow.pop %v1986
    %v1988 = vadd.f32 %v1987, 1.0
    %v1989 = vrcp.pop %v1988
    %v1990 = vmul.f32 %v1988, %v1989
    %v1991 = vsub.f32 1.0, %v1990
    %v1992 = vmul.f32 %v1989, %v1991
    %v1993 = vadd.f32 %v1989, %v1992
    %vm1994 = vweird.f32 %v1988
    %vm1995 = vweird.f32 %v1989
    %vm1996 = vmor %vm1994, %vm1995
    %v1997 = vsel %vm1996, %v1989, %v1993
    %v1998 = vand.u32 2147483647, %v1988
    %vm1999 = vcmp.eq.f32.partialorder %v1998, 8.507059e+37
    %v2000 = vand.u32 %v1988, 2147483648
    %v2001 = vor.u32 1.1754944e-38, %v2000
    %v2002 = vsel %vm1999, %v2001, %v1997
    %v2003 = vmul.f32 1.0, %v2002
    %v2004 = vtanh.pop %v1964
    %v2005 = vxor.u32 %v1965, 2147483648
    %v2006 = vmul.f32 %v2005, 1.442695
    %v2007 = vpow.pop %v2006
    %v2008 = vadd.f32 %v2007, 1.0
    %v2009 = vrcp.pop %v2008
    %v2010 = vmul.f32 %v2008, %v2009
    %v2011 = vsub.f32 1.0, %v2010
    %v2012 = vmul.f32 %v2009, %v2011
    %v2013 = vadd.f32 %v2009, %v2012
    %vm2014 = vweird.f32 %v2008
    %vm2015 = vweird.f32 %v2009
    %vm2016 = vmor %vm2014, %vm2015
    %v2017 = vsel %vm2016, %v2009, %v2013
    %v2018 = vand.u32 2147483647, %v2008
    %vm2019 = vcmp.eq.f32.partialorder %v2018, 8.507059e+37
    %v2020 = vand.u32 %v2008, 2147483648
    %v2021 = vor.u32 1.1754944e-38, %v2020
    %v2022 = vsel %vm2019, %v2021, %v2017
    %v2023 = vmul.f32 1.0, %v2022
    %v2024 = vmul.f32 %v2003, %v1560
    %v2025 = vmul.f32 %v1984, %v2004
    %v2026 = vadd.f32 %v2024, %v2025
    %v2027 = vtanh.pop %v2026
    %v2028 = vmul.f32 %v2023, %v2027
    %2029 = vmatpush.msra.mxu0 %v248
    %2030 = vmatpush.msra.mxu0 %v240
    %2031 = vmatpush.msra.mxu0 %v232
    %2032 = vmatpush.msra.mxu0 %v224
    %2033 = vmatpush.msra.mxu0 %v216
    %2034 = vmatpush.msra.mxu0 %v208
    %2035 = vmatpush.msra.mxu0 %v200
    %2036 = vmatpush.msra.mxu0 %v192
    %2037 = vmatpush.msra.mxu0 %v184
    %2038 = vmatpush.msra.mxu0 %v176
    %2039 = vmatpush.msra.mxu0 %v168
    %2040 = vmatpush.msra.mxu0 %v160
    %2041 = vmatpush.msra.mxu0 %v152
    %2042 = vmatpush.msra.mxu0 %v144
    %2043 = vmatpush.msra.mxu0 %v136
    %2044 = vmatpush.msra.mxu0 %v128
    %2045 = vmatmul.f32.gmra.mxu0 %v2028
    %v2046 = vpop.f32.mrf.mxu0
    %v2047 = vadd.f32 0.0, %v2046
    %2048 = vdwg.mxu0
    %2049 = vmatpush.msra.mxu0 %v376
    %2050 = vmatpush.msra.mxu0 %v368
    %2051 = vmatpush.msra.mxu0 %v360
    %2052 = vmatpush.msra.mxu0 %v352
    %2053 = vmatpush.msra.mxu0 %v344
    %2054 = vmatpush.msra.mxu0 %v336
    %2055 = vmatpush.msra.mxu0 %v328
    %2056 = vmatpush.msra.mxu0 %v320
    %2057 = vmatpush.msra.mxu0 %v312
    %2058 = vmatpush.msra.mxu0 %v304
    %2059 = vmatpush.msra.mxu0 %v296
    %2060 = vmatpush.msra.mxu0 %v288
    %2061 = vmatpush.msra.mxu0 %v280
    %2062 = vmatpush.msra.mxu0 %v272
    %2063 = vmatpush.msra.mxu0 %v264
    %2064 = vmatpush.msra.mxu0 %v256
    %2065 = vmatmul.f32.gmra.mxu0 %v1949
    %v2066 = vpop.f32.mrf.mxu0
    %v2067 = vadd.f32 %v2047, %v2066
    %2068 = vdwg.mxu0
    %2069 = vmatpush.msra.mxu0 %v249
    %2070 = vmatpush.msra.mxu0 %v241
    %2071 = vmatpush.msra.mxu0 %v233
    %2072 = vmatpush.msra.mxu0 %v225
    %2073 = vmatpush.msra.mxu0 %v217
    %2074 = vmatpush.msra.mxu0 %v209
    %2075 = vmatpush.msra.mxu0 %v201
    %2076 = vmatpush.msra.mxu0 %v193
    %2077 = vmatpush.msra.mxu0 %v185
    %2078 = vmatpush.msra.mxu0 %v177
    %2079 = vmatpush.msra.mxu0 %v169
    %2080 = vmatpush.msra.mxu0 %v161
    %2081 = vmatpush.msra.mxu0 %v153
    %2082 = vmatpush.msra.mxu0 %v145
    %2083 = vmatpush.msra.mxu0 %v137
    %2084 = vmatpush.msra.mxu0 %v129
    %2085 = vmatmul.f32.gmra.mxu0 %v2028
    %v2086 = vpop.f32.mrf.mxu0
    %v2087 = vadd.f32 0.0, %v2086
    %2088 = vdwg.mxu0
    %2089 = vmatpush.msra.mxu0 %v377
    %2090 = vmatpush.msra.mxu0 %v369
    %2091 = vmatpush.msra.mxu0 %v361
    %2092 = vmatpush.msra.mxu0 %v353
    %2093 = vmatpush.msra.mxu0 %v345
    %2094 = vmatpush.msra.mxu0 %v337
    %2095 = vmatpush.msra.mxu0 %v329
    %2096 = vmatpush.msra.mxu0 %v321
    %2097 = vmatpush.msra.mxu0 %v313
    %2098 = vmatpush.msra.mxu0 %v305
    %2099 = vmatpush.msra.mxu0 %v297
    %2100 = vmatpush.msra.mxu0 %v289
    %2101 = vmatpush.msra.mxu0 %v281
    %2102 = vmatpush.msra.mxu0 %v273
    %2103 = vmatpush.msra.mxu0 %v265
    %2104 = vmatpush.msra.mxu0 %v257
    %2105 = vmatmul.f32.gmra.mxu0 %v1949
    %v2106 = vpop.f32.mrf.mxu0
    %v2107 = vadd.f32 %v2087, %v2106
    %2108 = vdwg.mxu0
    %2109 = vmatpush.msra.mxu0 %v250
    %2110 = vmatpush.msra.mxu0 %v242
    %2111 = vmatpush.msra.mxu0 %v234
    %2112 = vmatpush.msra.mxu0 %v226
    %2113 = vmatpush.msra.mxu0 %v218
    %2114 = vmatpush.msra.mxu0 %v210
    %2115 = vmatpush.msra.mxu0 %v202
    %2116 = vmatpush.msra.mxu0 %v194
    %2117 = vmatpush.msra.mxu0 %v186
    %2118 = vmatpush.msra.mxu0 %v178
    %2119 = vmatpush.msra.mxu0 %v170
    %2120 = vmatpush.msra.mxu0 %v162
    %2121 = vmatpush.msra.mxu0 %v154
    %2122 = vmatpush.msra.mxu0 %v146
    %2123 = vmatpush.msra.mxu0 %v138
    %2124 = vmatpush.msra.mxu0 %v130
    %2125 = vmatmul.f32.gmra.mxu0 %v2028
    %v2126 = vpop.f32.mrf.mxu0
    %v2127 = vadd.f32 0.0, %v2126
    %2128 = vdwg.mxu0
    %2129 = vmatpush.msra.mxu0 %v378
    %2130 = vmatpush.msra.mxu0 %v370
    %2131 = vmatpush.msra.mxu0 %v362
    %2132 = vmatpush.msra.mxu0 %v354
    %2133 = vmatpush.msra.mxu0 %v346
    %2134 = vmatpush.msra.mxu0 %v338
    %2135 = vmatpush.msra.mxu0 %v330
    %2136 = vmatpush.msra.mxu0 %v322
    %2137 = vmatpush.msra.mxu0 %v314
    %2138 = vmatpush.msra.mxu0 %v306
    %2139 = vmatpush.msra.mxu0 %v298
    %2140 = vmatpush.msra.mxu0 %v290
    %2141 = vmatpush.msra.mxu0 %v282
    %2142 = vmatpush.msra.mxu0 %v274
    %2143 = vmatpush.msra.mxu0 %v266
    %2144 = vmatpush.msra.mxu0 %v258
    %2145 = vmatmul.f32.gmra.mxu0 %v1949
    %v2146 = vpop.f32.mrf.mxu0
    %v2147 = vadd.f32 %v2127, %v2146
    %2148 = vdwg.mxu0
    %2149 = vmatpush.msra.mxu0 %v251
    %2150 = vmatpush.msra.mxu0 %v243
    %2151 = vmatpush.msra.mxu0 %v235
    %2152 = vmatpush.msra.mxu0 %v227
    %2153 = vmatpush.msra.mxu0 %v219
    %2154 = vmatpush.msra.mxu0 %v211
    %2155 = vmatpush.msra.mxu0 %v203
    %2156 = vmatpush.msra.mxu0 %v195
    %2157 = vmatpush.msra.mxu0 %v187
    %2158 = vmatpush.msra.mxu0 %v179
    %2159 = vmatpush.msra.mxu0 %v171
    %2160 = vmatpush.msra.mxu0 %v163
    %2161 = vmatpush.msra.mxu0 %v155
    %2162 = vmatpush.msra.mxu0 %v147
    %2163 = vmatpush.msra.mxu0 %v139
    %2164 = vmatpush.msra.mxu0 %v131
    %2165 = vmatmul.f32.gmra.mxu0 %v2028
    %v2166 = vpop.f32.mrf.mxu0
    %v2167 = vadd.f32 0.0, %v2166
    %2168 = vdwg.mxu0
    %2169 = vmatpush.msra.mxu0 %v379
    %2170 = vmatpush.msra.mxu0 %v371
    %2171 = vmatpush.msra.mxu0 %v363
    %2172 = vmatpush.msra.mxu0 %v355
    %2173 = vmatpush.msra.mxu0 %v347
    %2174 = vmatpush.msra.mxu0 %v339
    %2175 = vmatpush.msra.mxu0 %v331
    %2176 = vmatpush.msra.mxu0 %v323
    %2177 = vmatpush.msra.mxu0 %v315
    %2178 = vmatpush.msra.mxu0 %v307
    %2179 = vmatpush.msra.mxu0 %v299
    %2180 = vmatpush.msra.mxu0 %v291
    %2181 = vmatpush.msra.mxu0 %v283
    %2182 = vmatpush.msra.mxu0 %v275
    %2183 = vmatpush.msra.mxu0 %v267
    %2184 = vmatpush.msra.mxu0 %v259
    %2185 = vmatmul.f32.gmra.mxu0 %v1949
    %v2186 = vpop.f32.mrf.mxu0
    %v2187 = vadd.f32 %v2167, %v2186
    %2188 = vdwg.mxu0
    %2189 = vmatpush.msra.mxu0 %v252
    %2190 = vmatpush.msra.mxu0 %v244
    %2191 = vmatpush.msra.mxu0 %v236
    %2192 = vmatpush.msra.mxu0 %v228
    %2193 = vmatpush.msra.mxu0 %v220
    %2194 = vmatpush.msra.mxu0 %v212
    %2195 = vmatpush.msra.mxu0 %v204
    %2196 = vmatpush.msra.mxu0 %v196
    %2197 = vmatpush.msra.mxu0 %v188
    %2198 = vmatpush.msra.mxu0 %v180
    %2199 = vmatpush.msra.mxu0 %v172
    %2200 = vmatpush.msra.mxu0 %v164
    %2201 = vmatpush.msra.mxu0 %v156
    %2202 = vmatpush.msra.mxu0 %v148
    %2203 = vmatpush.msra.mxu0 %v140
    %2204 = vmatpush.msra.mxu0 %v132
    %2205 = vmatmul.f32.gmra.mxu0 %v2028
    %v2206 = vpop.f32.mrf.mxu0
    %v2207 = vadd.f32 0.0, %v2206
    %2208 = vdwg.mxu0
    %2209 = vmatpush.msra.mxu0 %v380
    %2210 = vmatpush.msra.mxu0 %v372
    %2211 = vmatpush.msra.mxu0 %v364
    %2212 = vmatpush.msra.mxu0 %v356
    %2213 = vmatpush.msra.mxu0 %v348
    %2214 = vmatpush.msra.mxu0 %v340
    %2215 = vmatpush.msra.mxu0 %v332
    %2216 = vmatpush.msra.mxu0 %v324
    %2217 = vmatpush.msra.mxu0 %v316
    %2218 = vmatpush.msra.mxu0 %v308
    %2219 = vmatpush.msra.mxu0 %v300
    %2220 = vmatpush.msra.mxu0 %v292
    %2221 = vmatpush.msra.mxu0 %v284
    %2222 = vmatpush.msra.mxu0 %v276
    %2223 = vmatpush.msra.mxu0 %v268
    %2224 = vmatpush.msra.mxu0 %v260
    %2225 = vmatmul.f32.gmra.mxu0 %v1949
    %v2226 = vpop.f32.mrf.mxu0
    %v2227 = vadd.f32 %v2207, %v2226
    %2228 = vdwg.mxu0
    %2229 = vmatpush.msra.mxu0 %v253
    %2230 = vmatpush.msra.mxu0 %v245
    %2231 = vmatpush.msra.mxu0 %v237
    %2232 = vmatpush.msra.mxu0 %v229
    %2233 = vmatpush.msra.mxu0 %v221
    %2234 = vmatpush.msra.mxu0 %v213
    %2235 = vmatpush.msra.mxu0 %v205
    %2236 = vmatpush.msra.mxu0 %v197
    %2237 = vmatpush.msra.mxu0 %v189
    %2238 = vmatpush.msra.mxu0 %v181
    %2239 = vmatpush.msra.mxu0 %v173
    %2240 = vmatpush.msra.mxu0 %v165
    %2241 = vmatpush.msra.mxu0 %v157
    %2242 = vmatpush.msra.mxu0 %v149
    %2243 = vmatpush.msra.mxu0 %v141
    %2244 = vmatpush.msra.mxu0 %v133
    %2245 = vmatmul.f32.gmra.mxu0 %v2028
    %v2246 = vpop.f32.mrf.mxu0
    %v2247 = vadd.f32 0.0, %v2246
    %2248 = vdwg.mxu0
    %2249 = vmatpush.msra.mxu0 %v381
    %2250 = vmatpush.msra.mxu0 %v373
    %2251 = vmatpush.msra.mxu0 %v365
    %2252 = vmatpush.msra.mxu0 %v357
    %2253 = vmatpush.msra.mxu0 %v349
    %2254 = vmatpush.msra.mxu0 %v341
    %2255 = vmatpush.msra.mxu0 %v333
    %2256 = vmatpush.msra.mxu0 %v325
    %2257 = vmatpush.msra.mxu0 %v317
    %2258 = vmatpush.msra.mxu0 %v309
    %2259 = vmatpush.msra.mxu0 %v301
    %2260 = vmatpush.msra.mxu0 %v293
    %2261 = vmatpush.msra.mxu0 %v285
    %2262 = vmatpush.msra.mxu0 %v277
    %2263 = vmatpush.msra.mxu0 %v269
    %2264 = vmatpush.msra.mxu0 %v261
    %2265 = vmatmul.f32.gmra.mxu0 %v1949
    %v2266 = vpop.f32.mrf.mxu0
    %v2267 = vadd.f32 %v2247, %v2266
    %2268 = vdwg.mxu0
    %2269 = vmatpush.msra.mxu0 %v254
    %2270 = vmatpush.msra.mxu0 %v246
    %2271 = vmatpush.msra.mxu0 %v238
    %2272 = vmatpush.msra.mxu0 %v230
    %2273 = vmatpush.msra.mxu0 %v222
    %2274 = vmatpush.msra.mxu0 %v214
    %2275 = vmatpush.msra.mxu0 %v206
    %2276 = vmatpush.msra.mxu0 %v198
    %2277 = vmatpush.msra.mxu0 %v190
    %2278 = vmatpush.msra.mxu0 %v182
    %2279 = vmatpush.msra.mxu0 %v174
    %2280 = vmatpush.msra.mxu0 %v166
    %2281 = vmatpush.msra.mxu0 %v158
    %2282 = vmatpush.msra.mxu0 %v150
    %2283 = vmatpush.msra.mxu0 %v142
    %2284 = vmatpush.msra.mxu0 %v134
    %2285 = vmatmul.f32.gmra.mxu0 %v2028
    %v2286 = vpop.f32.mrf.mxu0
    %v2287 = vadd.f32 0.0, %v2286
    %2288 = vdwg.mxu0
    %2289 = vmatpush.msra.mxu0 %v382
    %2290 = vmatpush.msra.mxu0 %v374
    %2291 = vmatpush.msra.mxu0 %v366
    %2292 = vmatpush.msra.mxu0 %v358
    %2293 = vmatpush.msra.mxu0 %v350
    %2294 = vmatpush.msra.mxu0 %v342
    %2295 = vmatpush.msra.mxu0 %v334
    %2296 = vmatpush.msra.mxu0 %v326
    %2297 = vmatpush.msra.mxu0 %v318
    %2298 = vmatpush.msra.mxu0 %v310
    %2299 = vmatpush.msra.mxu0 %v302
    %2300 = vmatpush.msra.mxu0 %v294
    %2301 = vmatpush.msra.mxu0 %v286
    %2302 = vmatpush.msra.mxu0 %v278
    %2303 = vmatpush.msra.mxu0 %v270
    %2304 = vmatpush.msra.mxu0 %v262
    %2305 = vmatmul.f32.gmra.mxu0 %v1949
    %v2306 = vpop.f32.mrf.mxu0
    %v2307 = vadd.f32 %v2287, %v2306
    %2308 = vdwg.mxu0
    %2309 = vmatpush.msra.mxu0 %v255
    %2310 = vmatpush.msra.mxu0 %v247
    %2311 = vmatpush.msra.mxu0 %v239
    %2312 = vmatpush.msra.mxu0 %v231
    %2313 = vmatpush.msra.mxu0 %v223
    %2314 = vmatpush.msra.mxu0 %v215
    %2315 = vmatpush.msra.mxu0 %v207
    %2316 = vmatpush.msra.mxu0 %v199
    %2317 = vmatpush.msra.mxu0 %v191
    %2318 = vmatpush.msra.mxu0 %v183
    %2319 = vmatpush.msra.mxu0 %v175
    %2320 = vmatpush.msra.mxu0 %v167
    %2321 = vmatpush.msra.mxu0 %v159
    %2322 = vmatpush.msra.mxu0 %v151
    %2323 = vmatpush.msra.mxu0 %v143
    %2324 = vmatpush.msra.mxu0 %v135
    %2325 = vmatmul.f32.gmra.mxu0 %v2028
    %v2326 = vpop.f32.mrf.mxu0
    %v2327 = vadd.f32 0.0, %v2326
    %2328 = vdwg.mxu0
    %2329 = vmatpush.msra.mxu0 %v383
    %2330 = vmatpush.msra.mxu0 %v375
    %2331 = vmatpush.msra.mxu0 %v367
    %2332 = vmatpush.msra.mxu0 %v359
    %2333 = vmatpush.msra.mxu0 %v351
    %2334 = vmatpush.msra.mxu0 %v343
    %2335 = vmatpush.msra.mxu0 %v335
    %2336 = vmatpush.msra.mxu0 %v327
    %2337 = vmatpush.msra.mxu0 %v319
    %2338 = vmatpush.msra.mxu0 %v311
    %2339 = vmatpush.msra.mxu0 %v303
    %2340 = vmatpush.msra.mxu0 %v295
    %2341 = vmatpush.msra.mxu0 %v287
    %2342 = vmatpush.msra.mxu0 %v279
    %2343 = vmatpush.msra.mxu0 %v271
    %2344 = vmatpush.msra.mxu0 %v263
    %2345 = vmatmul.f32.gmra.mxu0 %v1949
    %v2346 = vpop.f32.mrf.mxu0
    %v2347 = vadd.f32 %v2327, %v2346
    %2348 = vdwg.mxu0
    %v2349 = vadd.f32 %v2227, %v943
    %v2350 = vadd.f32 %v2267, %v944
    %v2351 = vadd.f32 %v2307, %v945
    %v2352 = vadd.f32 %v2347, %v946
    %v2353 = vxor.u32 %v2349, 2147483648
    %v2354 = vmul.f32 %v2353, 1.442695
    %v2355 = vpow.pop %v2354
    %v2356 = vadd.f32 %v2355, 1.0
    %v2357 = vrcp.pop %v2356
    %v2358 = vmul.f32 %v2356, %v2357
    %v2359 = vsub.f32 1.0, %v2358
    %v2360 = vmul.f32 %v2357, %v2359
    %v2361 = vadd.f32 %v2357, %v2360
    %vm2362 = vweird.f32 %v2356
    %vm2363 = vweird.f32 %v2357
    %vm2364 = vmor %vm2362, %vm2363
    %v2365 = vsel %vm2364, %v2357, %v2361
    %v2366 = vand.u32 2147483647, %v2356
    %vm2367 = vcmp.eq.f32.partialorder %v2366, 8.507059e+37
    %v2368 = vand.u32 %v2356, 2147483648
    %v2369 = vor.u32 1.1754944e-38, %v2368
    %v2370 = vsel %vm2367, %v2369, %v2365
    %v2371 = vmul.f32 1.0, %v2370
    %v2372 = vxor.u32 %v2350, 2147483648
    %v2373 = vmul.f32 %v2372, 1.442695
    %v2374 = vpow.pop %v2373
    %v2375 = vadd.f32 %v2374, 1.0
    %v2376 = vrcp.pop %v2375
    %v2377 = vmul.f32 %v2375, %v2376
    %v2378 = vsub.f32 1.0, %v2377
    %v2379 = vmul.f32 %v2376, %v2378
    %v2380 = vadd.f32 %v2376, %v2379
    %vm2381 = vweird.f32 %v2375
    %vm2382 = vweird.f32 %v2376
    %vm2383 = vmor %vm2381, %vm2382
    %v2384 = vsel %vm2383, %v2376, %v2380
    %v2385 = vand.u32 2147483647, %v2375
    %vm2386 = vcmp.eq.f32.partialorder %v2385, 8.507059e+37
    %v2387 = vand.u32 %v2375, 2147483648
    %v2388 = vor.u32 1.1754944e-38, %v2387
    %v2389 = vsel %vm2386, %v2388, %v2384
    %v2390 = vmul.f32 1.0, %v2389
    %v2391 = vtanh.pop %v2351
    %v2392 = vxor.u32 %v2352, 2147483648
    %v2393 = vmul.f32 %v2392, 1.442695
    %v2394 = vpow.pop %v2393
    %v2395 = vadd.f32 %v2394, 1.0
    %v2396 = vrcp.pop %v2395
    %v2397 = vmul.f32 %v2395, %v2396
    %v2398 = vsub.f32 1.0, %v2397
    %v2399 = vmul.f32 %v2396, %v2398
    %v2400 = vadd.f32 %v2396, %v2399
    %vm2401 = vweird.f32 %v2395
    %vm2402 = vweird.f32 %v2396
    %vm2403 = vmor %vm2401, %vm2402
    %v2404 = vsel %vm2403, %v2396, %v2400
    %v2405 = vand.u32 2147483647, %v2395
    %vm2406 = vcmp.eq.f32.partialorder %v2405, 8.507059e+37
    %v2407 = vand.u32 %v2395, 2147483648
    %v2408 = vor.u32 1.1754944e-38, %v2407
    %v2409 = vsel %vm2406, %v2408, %v2404
    %v2410 = vmul.f32 1.0, %v2409
    %v2411 = vmul.f32 %v2390, %v1947
    %v2412 = vmul.f32 %v2371, %v2391
    %v2413 = vadd.f32 %v2411, %v2412
    %v2414 = vtanh.pop %v2413
    %v2415 = vmul.f32 %v2410, %v2414
    %s2416 = scalar_lea.vmem [#allocation2], 32
    %v2417 = vld [vmem:[%s2416] sm:$0xff]
    %2419 = vst [vmem:[#allocation1] ss:$4 sm:$0xff] %v2417
    %v2420 = vld.sshfl [vmem:[#allocation1] sm:$0xff pattern:$0x73625140]
    %v2421 = vld.sshfl [vmem:[#allocation1 + $0x8] sm:$0xff pattern:$0x73625140]
    %v2422 = vld.sshfl [vmem:[#allocation1 + $0x10] sm:$0xff pattern:$0x73625140]
    %v2423 = vld.sshfl [vmem:[#allocation1 + $0x18] sm:$0xff pattern:$0x73625140]
    %v2428 = vadd.f32 %v2067, %v2420
    %v2429 = vadd.f32 %v2107, %v2421
    %v2430 = vadd.f32 %v2147, %v2422
    %v2431 = vadd.f32 %v2187, %v2423
    %v2432 = vxor.u32 %v2428, 2147483648
    %v2433 = vmul.f32 %v2432, 1.442695
    %v2434 = vpow.pop %v2433
    %v2435 = vadd.f32 %v2434, 1.0
    %v2436 = vrcp.pop %v2435
    %v2437 = vmul.f32 %v2435, %v2436
    %v2438 = vsub.f32 1.0, %v2437
    %v2439 = vmul.f32 %v2436, %v2438
    %v2440 = vadd.f32 %v2436, %v2439
    %vm2441 = vweird.f32 %v2435
    %vm2442 = vweird.f32 %v2436
    %vm2443 = vmor %vm2441, %vm2442
    %v2444 = vsel %vm2443, %v2436, %v2440
    %v2445 = vand.u32 2147483647, %v2435
    %vm2446 = vcmp.eq.f32.partialorder %v2445, 8.507059e+37
    %v2447 = vand.u32 %v2435, 2147483648
    %v2448 = vor.u32 1.1754944e-38, %v2447
    %v2449 = vsel %vm2446, %v2448, %v2444
    %v2450 = vmul.f32 1.0, %v2449
    %v2451 = vxor.u32 %v2429, 2147483648
    %v2452 = vmul.f32 %v2451, 1.442695
    %v2453 = vpow.pop %v2452
    %v2454 = vadd.f32 %v2453, 1.0
    %v2455 = vrcp.pop %v2454
    %v2456 = vmul.f32 %v2454, %v2455
    %v2457 = vsub.f32 1.0, %v2456
    %v2458 = vmul.f32 %v2455, %v2457
    %v2459 = vadd.f32 %v2455, %v2458
    %vm2460 = vweird.f32 %v2454
    %vm2461 = vweird.f32 %v2455
    %vm2462 = vmor %vm2460, %vm2461
    %v2463 = vsel %vm2462, %v2455, %v2459
    %v2464 = vand.u32 2147483647, %v2454
    %vm2465 = vcmp.eq.f32.partialorder %v2464, 8.507059e+37
    %v2466 = vand.u32 %v2454, 2147483648
    %v2467 = vor.u32 1.1754944e-38, %v2466
    %v2468 = vsel %vm2465, %v2467, %v2463
    %v2469 = vmul.f32 1.0, %v2468
    %v2470 = vtanh.pop %v2430
    %v2471 = vxor.u32 %v2431, 2147483648
    %v2472 = vmul.f32 %v2471, 1.442695
    %v2473 = vpow.pop %v2472
    %v2474 = vadd.f32 %v2473, 1.0
    %v2475 = vrcp.pop %v2474
    %v2476 = vmul.f32 %v2474, %v2475
    %v2477 = vsub.f32 1.0, %v2476
    %v2478 = vmul.f32 %v2475, %v2477
    %v2479 = vadd.f32 %v2475, %v2478
    %vm2480 = vweird.f32 %v2474
    %vm2481 = vweird.f32 %v2475
    %vm2482 = vmor %vm2480, %vm2481
    %v2483 = vsel %vm2482, %v2475, %v2479
    %v2484 = vand.u32 2147483647, %v2474
    %vm2485 = vcmp.eq.f32.partialorder %v2484, 8.507059e+37
    %v2486 = vand.u32 %v2474, 2147483648
    %v2487 = vor.u32 1.1754944e-38, %v2486
    %v2488 = vsel %vm2485, %v2487, %v2483
    %v2489 = vmul.f32 1.0, %v2488
    %v2490 = vmul.f32 %v2469, %v2026
    %v2491 = vmul.f32 %v2450, %v2470
    %v2492 = vadd.f32 %v2490, %v2491
    %v2493 = vtanh.pop %v2492
    %v2494 = vmul.f32 %v2489, %v2493
    %2495 = vmatpush.msra.mxu0 %v248
    %2496 = vmatpush.msra.mxu0 %v240
    %2497 = vmatpush.msra.mxu0 %v232
    %2498 = vmatpush.msra.mxu0 %v224
    %2499 = vmatpush.msra.mxu0 %v216
    %2500 = vmatpush.msra.mxu0 %v208
    %2501 = vmatpush.msra.mxu0 %v200
    %2502 = vmatpush.msra.mxu0 %v192
    %2503 = vmatpush.msra.mxu0 %v184
    %2504 = vmatpush.msra.mxu0 %v176
    %2505 = vmatpush.msra.mxu0 %v168
    %2506 = vmatpush.msra.mxu0 %v160
    %2507 = vmatpush.msra.mxu0 %v152
    %2508 = vmatpush.msra.mxu0 %v144
    %2509 = vmatpush.msra.mxu0 %v136
    %2510 = vmatpush.msra.mxu0 %v128
    %2511 = vmatmul.f32.gmra.mxu0 %v2494
    %v2512 = vpop.f32.mrf.mxu0
    %v2513 = vadd.f32 0.0, %v2512
    %2514 = vdwg.mxu0
    %2515 = vmatpush.msra.mxu0 %v376
    %2516 = vmatpush.msra.mxu0 %v368
    %2517 = vmatpush.msra.mxu0 %v360
    %2518 = vmatpush.msra.mxu0 %v352
    %2519 = vmatpush.msra.mxu0 %v344
    %2520 = vmatpush.msra.mxu0 %v336
    %2521 = vmatpush.msra.mxu0 %v328
    %2522 = vmatpush.msra.mxu0 %v320
    %2523 = vmatpush.msra.mxu0 %v312
    %2524 = vmatpush.msra.mxu0 %v304
    %2525 = vmatpush.msra.mxu0 %v296
    %2526 = vmatpush.msra.mxu0 %v288
    %2527 = vmatpush.msra.mxu0 %v280
    %2528 = vmatpush.msra.mxu0 %v272
    %2529 = vmatpush.msra.mxu0 %v264
    %2530 = vmatpush.msra.mxu0 %v256
    %2531 = vmatmul.f32.gmra.mxu0 %v2415
    %v2532 = vpop.f32.mrf.mxu0
    %v2533 = vadd.f32 %v2513, %v2532
    %2534 = vdwg.mxu0
    %2535 = vmatpush.msra.mxu0 %v249
    %2536 = vmatpush.msra.mxu0 %v241
    %2537 = vmatpush.msra.mxu0 %v233
    %2538 = vmatpush.msra.mxu0 %v225
    %2539 = vmatpush.msra.mxu0 %v217
    %2540 = vmatpush.msra.mxu0 %v209
    %2541 = vmatpush.msra.mxu0 %v201
    %2542 = vmatpush.msra.mxu0 %v193
    %2543 = vmatpush.msra.mxu0 %v185
    %2544 = vmatpush.msra.mxu0 %v177
    %2545 = vmatpush.msra.mxu0 %v169
    %2546 = vmatpush.msra.mxu0 %v161
    %2547 = vmatpush.msra.mxu0 %v153
    %2548 = vmatpush.msra.mxu0 %v145
    %2549 = vmatpush.msra.mxu0 %v137
    %2550 = vmatpush.msra.mxu0 %v129
    %2551 = vmatmul.f32.gmra.mxu0 %v2494
    %v2552 = vpop.f32.mrf.mxu0
    %v2553 = vadd.f32 0.0, %v2552
    %2554 = vdwg.mxu0
    %2555 = vmatpush.msra.mxu0 %v377
    %2556 = vmatpush.msra.mxu0 %v369
    %2557 = vmatpush.msra.mxu0 %v361
    %2558 = vmatpush.msra.mxu0 %v353
    %2559 = vmatpush.msra.mxu0 %v345
    %2560 = vmatpush.msra.mxu0 %v337
    %2561 = vmatpush.msra.mxu0 %v329
    %2562 = vmatpush.msra.mxu0 %v321
    %2563 = vmatpush.msra.mxu0 %v313
    %2564 = vmatpush.msra.mxu0 %v305
    %2565 = vmatpush.msra.mxu0 %v297
    %2566 = vmatpush.msra.mxu0 %v289
    %2567 = vmatpush.msra.mxu0 %v281
    %2568 = vmatpush.msra.mxu0 %v273
    %2569 = vmatpush.msra.mxu0 %v265
    %2570 = vmatpush.msra.mxu0 %v257
    %2571 = vmatmul.f32.gmra.mxu0 %v2415
    %v2572 = vpop.f32.mrf.mxu0
    %v2573 = vadd.f32 %v2553, %v2572
    %2574 = vdwg.mxu0
    %2575 = vmatpush.msra.mxu0 %v250
    %2576 = vmatpush.msra.mxu0 %v242
    %2577 = vmatpush.msra.mxu0 %v234
    %2578 = vmatpush.msra.mxu0 %v226
    %2579 = vmatpush.msra.mxu0 %v218
    %2580 = vmatpush.msra.mxu0 %v210
    %2581 = vmatpush.msra.mxu0 %v202
    %2582 = vmatpush.msra.mxu0 %v194
    %2583 = vmatpush.msra.mxu0 %v186
    %2584 = vmatpush.msra.mxu0 %v178
    %2585 = vmatpush.msra.mxu0 %v170
    %2586 = vmatpush.msra.mxu0 %v162
    %2587 = vmatpush.msra.mxu0 %v154
    %2588 = vmatpush.msra.mxu0 %v146
    %2589 = vmatpush.msra.mxu0 %v138
    %2590 = vmatpush.msra.mxu0 %v130
    %2591 = vmatmul.f32.gmra.mxu0 %v2494
    %v2592 = vpop.f32.mrf.mxu0
    %v2593 = vadd.f32 0.0, %v2592
    %2594 = vdwg.mxu0
    %2595 = vmatpush.msra.mxu0 %v378
    %2596 = vmatpush.msra.mxu0 %v370
    %2597 = vmatpush.msra.mxu0 %v362
    %2598 = vmatpush.msra.mxu0 %v354
    %2599 = vmatpush.msra.mxu0 %v346
    %2600 = vmatpush.msra.mxu0 %v338
    %2601 = vmatpush.msra.mxu0 %v330
    %2602 = vmatpush.msra.mxu0 %v322
    %2603 = vmatpush.msra.mxu0 %v314
    %2604 = vmatpush.msra.mxu0 %v306
    %2605 = vmatpush.msra.mxu0 %v298
    %2606 = vmatpush.msra.mxu0 %v290
    %2607 = vmatpush.msra.mxu0 %v282
    %2608 = vmatpush.msra.mxu0 %v274
    %2609 = vmatpush.msra.mxu0 %v266
    %2610 = vmatpush.msra.mxu0 %v258
    %2611 = vmatmul.f32.gmra.mxu0 %v2415
    %v2612 = vpop.f32.mrf.mxu0
    %v2613 = vadd.f32 %v2593, %v2612
    %2614 = vdwg.mxu0
    %2615 = vmatpush.msra.mxu0 %v251
    %2616 = vmatpush.msra.mxu0 %v243
    %2617 = vmatpush.msra.mxu0 %v235
    %2618 = vmatpush.msra.mxu0 %v227
    %2619 = vmatpush.msra.mxu0 %v219
    %2620 = vmatpush.msra.mxu0 %v211
    %2621 = vmatpush.msra.mxu0 %v203
    %2622 = vmatpush.msra.mxu0 %v195
    %2623 = vmatpush.msra.mxu0 %v187
    %2624 = vmatpush.msra.mxu0 %v179
    %2625 = vmatpush.msra.mxu0 %v171
    %2626 = vmatpush.msra.mxu0 %v163
    %2627 = vmatpush.msra.mxu0 %v155
    %2628 = vmatpush.msra.mxu0 %v147
    %2629 = vmatpush.msra.mxu0 %v139
    %2630 = vmatpush.msra.mxu0 %v131
    %2631 = vmatmul.f32.gmra.mxu0 %v2494
    %v2632 = vpop.f32.mrf.mxu0
    %v2633 = vadd.f32 0.0, %v2632
    %2634 = vdwg.mxu0
    %2635 = vmatpush.msra.mxu0 %v379
    %2636 = vmatpush.msra.mxu0 %v371
    %2637 = vmatpush.msra.mxu0 %v363
    %2638 = vmatpush.msra.mxu0 %v355
    %2639 = vmatpush.msra.mxu0 %v347
    %2640 = vmatpush.msra.mxu0 %v339
    %2641 = vmatpush.msra.mxu0 %v331
    %2642 = vmatpush.msra.mxu0 %v323
    %2643 = vmatpush.msra.mxu0 %v315
    %2644 = vmatpush.msra.mxu0 %v307
    %2645 = vmatpush.msra.mxu0 %v299
    %2646 = vmatpush.msra.mxu0 %v291
    %2647 = vmatpush.msra.mxu0 %v283
    %2648 = vmatpush.msra.mxu0 %v275
    %2649 = vmatpush.msra.mxu0 %v267
    %2650 = vmatpush.msra.mxu0 %v259
    %2651 = vmatmul.f32.gmra.mxu0 %v2415
    %v2652 = vpop.f32.mrf.mxu0
    %v2653 = vadd.f32 %v2633, %v2652
    %2654 = vdwg.mxu0
    %2655 = vmatpush.msra.mxu0 %v252
    %2656 = vmatpush.msra.mxu0 %v244
    %2657 = vmatpush.msra.mxu0 %v236
    %2658 = vmatpush.msra.mxu0 %v228
    %2659 = vmatpush.msra.mxu0 %v220
    %2660 = vmatpush.msra.mxu0 %v212
    %2661 = vmatpush.msra.mxu0 %v204
    %2662 = vmatpush.msra.mxu0 %v196
    %2663 = vmatpush.msra.mxu0 %v188
    %2664 = vmatpush.msra.mxu0 %v180
    %2665 = vmatpush.msra.mxu0 %v172
    %2666 = vmatpush.msra.mxu0 %v164
    %2667 = vmatpush.msra.mxu0 %v156
    %2668 = vmatpush.msra.mxu0 %v148
    %2669 = vmatpush.msra.mxu0 %v140
    %2670 = vmatpush.msra.mxu0 %v132
    %2671 = vmatmul.f32.gmra.mxu0 %v2494
    %v2672 = vpop.f32.mrf.mxu0
    %v2673 = vadd.f32 0.0, %v2672
    %2674 = vdwg.mxu0
    %2675 = vmatpush.msra.mxu0 %v380
    %2676 = vmatpush.msra.mxu0 %v372
    %2677 = vmatpush.msra.mxu0 %v364
    %2678 = vmatpush.msra.mxu0 %v356
    %2679 = vmatpush.msra.mxu0 %v348
    %2680 = vmatpush.msra.mxu0 %v340
    %2681 = vmatpush.msra.mxu0 %v332
    %2682 = vmatpush.msra.mxu0 %v324
    %2683 = vmatpush.msra.mxu0 %v316
    %2684 = vmatpush.msra.mxu0 %v308
    %2685 = vmatpush.msra.mxu0 %v300
    %2686 = vmatpush.msra.mxu0 %v292
    %2687 = vmatpush.msra.mxu0 %v284
    %2688 = vmatpush.msra.mxu0 %v276
    %2689 = vmatpush.msra.mxu0 %v268
    %2690 = vmatpush.msra.mxu0 %v260
    %2691 = vmatmul.f32.gmra.mxu0 %v2415
    %v2692 = vpop.f32.mrf.mxu0
    %v2693 = vadd.f32 %v2673, %v2692
    %2694 = vdwg.mxu0
    %2695 = vmatpush.msra.mxu0 %v253
    %2696 = vmatpush.msra.mxu0 %v245
    %2697 = vmatpush.msra.mxu0 %v237
    %2698 = vmatpush.msra.mxu0 %v229
    %2699 = vmatpush.msra.mxu0 %v221
    %2700 = vmatpush.msra.mxu0 %v213
    %2701 = vmatpush.msra.mxu0 %v205
    %2702 = vmatpush.msra.mxu0 %v197
    %2703 = vmatpush.msra.mxu0 %v189
    %2704 = vmatpush.msra.mxu0 %v181
    %2705 = vmatpush.msra.mxu0 %v173
    %2706 = vmatpush.msra.mxu0 %v165
    %2707 = vmatpush.msra.mxu0 %v157
    %2708 = vmatpush.msra.mxu0 %v149
    %2709 = vmatpush.msra.mxu0 %v141
    %2710 = vmatpush.msra.mxu0 %v133
    %2711 = vmatmul.f32.gmra.mxu0 %v2494
    %v2712 = vpop.f32.mrf.mxu0
    %v2713 = vadd.f32 0.0, %v2712
    %2714 = vdwg.mxu0
    %2715 = vmatpush.msra.mxu0 %v381
    %2716 = vmatpush.msra.mxu0 %v373
    %2717 = vmatpush.msra.mxu0 %v365
    %2718 = vmatpush.msra.mxu0 %v357
    %2719 = vmatpush.msra.mxu0 %v349
    %2720 = vmatpush.msra.mxu0 %v341
    %2721 = vmatpush.msra.mxu0 %v333
    %2722 = vmatpush.msra.mxu0 %v325
    %2723 = vmatpush.msra.mxu0 %v317
    %2724 = vmatpush.msra.mxu0 %v309
    %2725 = vmatpush.msra.mxu0 %v301
    %2726 = vmatpush.msra.mxu0 %v293
    %2727 = vmatpush.msra.mxu0 %v285
    %2728 = vmatpush.msra.mxu0 %v277
    %2729 = vmatpush.msra.mxu0 %v269
    %2730 = vmatpush.msra.mxu0 %v261
    %2731 = vmatmul.f32.gmra.mxu0 %v2415
    %v2732 = vpop.f32.mrf.mxu0
    %v2733 = vadd.f32 %v2713, %v2732
    %2734 = vdwg.mxu0
    %2735 = vmatpush.msra.mxu0 %v254
    %2736 = vmatpush.msra.mxu0 %v246
    %2737 = vmatpush.msra.mxu0 %v238
    %2738 = vmatpush.msra.mxu0 %v230
    %2739 = vmatpush.msra.mxu0 %v222
    %2740 = vmatpush.msra.mxu0 %v214
    %2741 = vmatpush.msra.mxu0 %v206
    %2742 = vmatpush.msra.mxu0 %v198
    %2743 = vmatpush.msra.mxu0 %v190
    %2744 = vmatpush.msra.mxu0 %v182
    %2745 = vmatpush.msra.mxu0 %v174
    %2746 = vmatpush.msra.mxu0 %v166
    %2747 = vmatpush.msra.mxu0 %v158
    %2748 = vmatpush.msra.mxu0 %v150
    %2749 = vmatpush.msra.mxu0 %v142
    %2750 = vmatpush.msra.mxu0 %v134
    %2751 = vmatmul.f32.gmra.mxu0 %v2494
    %v2752 = vpop.f32.mrf.mxu0
    %v2753 = vadd.f32 0.0, %v2752
    %2754 = vdwg.mxu0
    %2755 = vmatpush.msra.mxu0 %v382
    %2756 = vmatpush.msra.mxu0 %v374
    %2757 = vmatpush.msra.mxu0 %v366
    %2758 = vmatpush.msra.mxu0 %v358
    %2759 = vmatpush.msra.mxu0 %v350
    %2760 = vmatpush.msra.mxu0 %v342
    %2761 = vmatpush.msra.mxu0 %v334
    %2762 = vmatpush.msra.mxu0 %v326
    %2763 = vmatpush.msra.mxu0 %v318
    %2764 = vmatpush.msra.mxu0 %v310
    %2765 = vmatpush.msra.mxu0 %v302
    %2766 = vmatpush.msra.mxu0 %v294
    %2767 = vmatpush.msra.mxu0 %v286
    %2768 = vmatpush.msra.mxu0 %v278
    %2769 = vmatpush.msra.mxu0 %v270
    %2770 = vmatpush.msra.mxu0 %v262
    %2771 = vmatmul.f32.gmra.mxu0 %v2415
    %v2772 = vpop.f32.mrf.mxu0
    %v2773 = vadd.f32 %v2753, %v2772
    %2774 = vdwg.mxu0
    %2775 = vmatpush.msra.mxu0 %v255
    %2776 = vmatpush.msra.mxu0 %v247
    %2777 = vmatpush.msra.mxu0 %v239
    %2778 = vmatpush.msra.mxu0 %v231
    %2779 = vmatpush.msra.mxu0 %v223
    %2780 = vmatpush.msra.mxu0 %v215
    %2781 = vmatpush.msra.mxu0 %v207
    %2782 = vmatpush.msra.mxu0 %v199
    %2783 = vmatpush.msra.mxu0 %v191
    %2784 = vmatpush.msra.mxu0 %v183
    %2785 = vmatpush.msra.mxu0 %v175
    %2786 = vmatpush.msra.mxu0 %v167
    %2787 = vmatpush.msra.mxu0 %v159
    %2788 = vmatpush.msra.mxu0 %v151
    %2789 = vmatpush.msra.mxu0 %v143
    %2790 = vmatpush.msra.mxu0 %v135
    %2791 = vmatmul.f32.gmra.mxu0 %v2494
    %v2792 = vpop.f32.mrf.mxu0
    %v2793 = vadd.f32 0.0, %v2792
    %2794 = vdwg.mxu0
    %2795 = vmatpush.msra.mxu0 %v383
    %2796 = vmatpush.msra.mxu0 %v375
    %2797 = vmatpush.msra.mxu0 %v367
    %2798 = vmatpush.msra.mxu0 %v359
    %2799 = vmatpush.msra.mxu0 %v351
    %2800 = vmatpush.msra.mxu0 %v343
    %2801 = vmatpush.msra.mxu0 %v335
    %2802 = vmatpush.msra.mxu0 %v327
    %2803 = vmatpush.msra.mxu0 %v319
    %2804 = vmatpush.msra.mxu0 %v311
    %2805 = vmatpush.msra.mxu0 %v303
    %2806 = vmatpush.msra.mxu0 %v295
    %2807 = vmatpush.msra.mxu0 %v287
    %2808 = vmatpush.msra.mxu0 %v279
    %2809 = vmatpush.msra.mxu0 %v271
    %2810 = vmatpush.msra.mxu0 %v263
    %2811 = vmatmul.f32.gmra.mxu0 %v2415
    %v2812 = vpop.f32.mrf.mxu0
    %v2813 = vadd.f32 %v2793, %v2812
    %2814 = vdwg.mxu0
    %v2815 = vadd.f32 %v2693, %v943
    %v2816 = vadd.f32 %v2733, %v944
    %v2817 = vadd.f32 %v2773, %v945
    %v2818 = vadd.f32 %v2813, %v946
    %v2819 = vxor.u32 %v2815, 2147483648
    %v2820 = vmul.f32 %v2819, 1.442695
    %v2821 = vpow.pop %v2820
    %v2822 = vadd.f32 %v2821, 1.0
    %v2823 = vrcp.pop %v2822
    %v2824 = vmul.f32 %v2822, %v2823
    %v2825 = vsub.f32 1.0, %v2824
    %v2826 = vmul.f32 %v2823, %v2825
    %v2827 = vadd.f32 %v2823, %v2826
    %vm2828 = vweird.f32 %v2822
    %vm2829 = vweird.f32 %v2823
    %vm2830 = vmor %vm2828, %vm2829
    %v2831 = vsel %vm2830, %v2823, %v2827
    %v2832 = vand.u32 2147483647, %v2822
    %vm2833 = vcmp.eq.f32.partialorder %v2832, 8.507059e+37
    %v2834 = vand.u32 %v2822, 2147483648
    %v2835 = vor.u32 1.1754944e-38, %v2834
    %v2836 = vsel %vm2833, %v2835, %v2831
    %v2837 = vmul.f32 1.0, %v2836
    %v2838 = vxor.u32 %v2816, 2147483648
    %v2839 = vmul.f32 %v2838, 1.442695
    %v2840 = vpow.pop %v2839
    %v2841 = vadd.f32 %v2840, 1.0
    %v2842 = vrcp.pop %v2841
    %v2843 = vmul.f32 %v2841, %v2842
    %v2844 = vsub.f32 1.0, %v2843
    %v2845 = vmul.f32 %v2842, %v2844
    %v2846 = vadd.f32 %v2842, %v2845
    %vm2847 = vweird.f32 %v2841
    %vm2848 = vweird.f32 %v2842
    %vm2849 = vmor %vm2847, %vm2848
    %v2850 = vsel %vm2849, %v2842, %v2846
    %v2851 = vand.u32 2147483647, %v2841
    %vm2852 = vcmp.eq.f32.partialorder %v2851, 8.507059e+37
    %v2853 = vand.u32 %v2841, 2147483648
    %v2854 = vor.u32 1.1754944e-38, %v2853
    %v2855 = vsel %vm2852, %v2854, %v2850
    %v2856 = vmul.f32 1.0, %v2855
    %v2857 = vtanh.pop %v2817
    %v2858 = vxor.u32 %v2818, 2147483648
    %v2859 = vmul.f32 %v2858, 1.442695
    %v2860 = vpow.pop %v2859
    %v2861 = vadd.f32 %v2860, 1.0
    %v2862 = vrcp.pop %v2861
    %v2863 = vmul.f32 %v2861, %v2862
    %v2864 = vsub.f32 1.0, %v2863
    %v2865 = vmul.f32 %v2862, %v2864
    %v2866 = vadd.f32 %v2862, %v2865
    %vm2867 = vweird.f32 %v2861
    %vm2868 = vweird.f32 %v2862
    %vm2869 = vmor %vm2867, %vm2868
    %v2870 = vsel %vm2869, %v2862, %v2866
    %v2871 = vand.u32 2147483647, %v2861
    %vm2872 = vcmp.eq.f32.partialorder %v2871, 8.507059e+37
    %v2873 = vand.u32 %v2861, 2147483648
    %v2874 = vor.u32 1.1754944e-38, %v2873
    %v2875 = vsel %vm2872, %v2874, %v2870
    %v2876 = vmul.f32 1.0, %v2875
    %v2877 = vmul.f32 %v2856, %v2413
    %v2878 = vmul.f32 %v2837, %v2857
    %v2879 = vadd.f32 %v2877, %v2878
    %v2880 = vtanh.pop %v2879
    %v2881 = vmul.f32 %v2876, %v2880
    %s2882 = scalar_lea.vmem [#allocation2], 40
    %v2883 = vld [vmem:[%s2882] sm:$0xff]
    %2885 = vst [vmem:[#allocation1] ss:$4 sm:$0xff] %v2883
    %v2886 = vld.sshfl [vmem:[#allocation1] sm:$0xff pattern:$0x73625140]
    %v2887 = vld.sshfl [vmem:[#allocation1 + $0x8] sm:$0xff pattern:$0x73625140]
    %v2888 = vld.sshfl [vmem:[#allocation1 + $0x10] sm:$0xff pattern:$0x73625140]
    %v2889 = vld.sshfl [vmem:[#allocation1 + $0x18] sm:$0xff pattern:$0x73625140]
    %v2894 = vadd.f32 %v2533, %v2886
    %v2895 = vadd.f32 %v2573, %v2887
    %v2896 = vadd.f32 %v2613, %v2888
    %v2897 = vadd.f32 %v2653, %v2889
    %v2898 = vxor.u32 %v2894, 2147483648
    %v2899 = vmul.f32 %v2898, 1.442695
    %v2900 = vpow.pop %v2899
    %v2901 = vadd.f32 %v2900, 1.0
    %v2902 = vrcp.pop %v2901
    %v2903 = vmul.f32 %v2901, %v2902
    %v2904 = vsub.f32 1.0, %v2903
    %v2905 = vmul.f32 %v2902, %v2904
    %v2906 = vadd.f32 %v2902, %v2905
    %vm2907 = vweird.f32 %v2901
    %vm2908 = vweird.f32 %v2902
    %vm2909 = vmor %vm2907, %vm2908
    %v2910 = vsel %vm2909, %v2902, %v2906
    %v2911 = vand.u32 2147483647, %v2901
    %vm2912 = vcmp.eq.f32.partialorder %v2911, 8.507059e+37
    %v2913 = vand.u32 %v2901, 2147483648
    %v2914 = vor.u32 1.1754944e-38, %v2913
    %v2915 = vsel %vm2912, %v2914, %v2910
    %v2916 = vmul.f32 1.0, %v2915
    %v2917 = vxor.u32 %v2895, 2147483648
    %v2918 = vmul.f32 %v2917, 1.442695
    %v2919 = vpow.pop %v2918
    %v2920 = vadd.f32 %v2919, 1.0
    %v2921 = vrcp.pop %v2920
    %v2922 = vmul.f32 %v2920, %v2921
    %v2923 = vsub.f32 1.0, %v2922
    %v2924 = vmul.f32 %v2921, %v2923
    %v2925 = vadd.f32 %v2921, %v2924
    %vm2926 = vweird.f32 %v2920
    %vm2927 = vweird.f32 %v2921
    %vm2928 = vmor %vm2926, %vm2927
    %v2929 = vsel %vm2928, %v2921, %v2925
    %v2930 = vand.u32 2147483647, %v2920
    %vm2931 = vcmp.eq.f32.partialorder %v2930, 8.507059e+37
    %v2932 = vand.u32 %v2920, 2147483648
    %v2933 = vor.u32 1.1754944e-38, %v2932
    %v2934 = vsel %vm2931, %v2933, %v2929
    %v2935 = vmul.f32 1.0, %v2934
    %v2936 = vtanh.pop %v2896
    %v2937 = vxor.u32 %v2897, 2147483648
    %v2938 = vmul.f32 %v2937, 1.442695
    %v2939 = vpow.pop %v2938
    %v2940 = vadd.f32 %v2939, 1.0
    %v2941 = vrcp.pop %v2940
    %v2942 = vmul.f32 %v2940, %v2941
    %v2943 = vsub.f32 1.0, %v2942
    %v2944 = vmul.f32 %v2941, %v2943
    %v2945 = vadd.f32 %v2941, %v2944
    %vm2946 = vweird.f32 %v2940
    %vm2947 = vweird.f32 %v2941
    %vm2948 = vmor %vm2946, %vm2947
    %v2949 = vsel %vm2948, %v2941, %v2945
    %v2950 = vand.u32 2147483647, %v2940
    %vm2951 = vcmp.eq.f32.partialorder %v2950, 8.507059e+37
    %v2952 = vand.u32 %v2940, 2147483648
    %v2953 = vor.u32 1.1754944e-38, %v2952
    %v2954 = vsel %vm2951, %v2953, %v2949
    %v2955 = vmul.f32 1.0, %v2954
    %v2956 = vmul.f32 %v2935, %v2492
    %v2957 = vmul.f32 %v2916, %v2936
    %v2958 = vadd.f32 %v2956, %v2957
    %v2959 = vtanh.pop %v2958
    %v2960 = vmul.f32 %v2955, %v2959
    %2961 = vmatpush.msra.mxu0 %v248
    %2962 = vmatpush.msra.mxu0 %v240
    %2963 = vmatpush.msra.mxu0 %v232
    %2964 = vmatpush.msra.mxu0 %v224
    %2965 = vmatpush.msra.mxu0 %v216
    %2966 = vmatpush.msra.mxu0 %v208
    %2967 = vmatpush.msra.mxu0 %v200
    %2968 = vmatpush.msra.mxu0 %v192
    %2969 = vmatpush.msra.mxu0 %v184
    %2970 = vmatpush.msra.mxu0 %v176
    %2971 = vmatpush.msra.mxu0 %v168
    %2972 = vmatpush.msra.mxu0 %v160
    %2973 = vmatpush.msra.mxu0 %v152
    %2974 = vmatpush.msra.mxu0 %v144
    %2975 = vmatpush.msra.mxu0 %v136
    %2976 = vmatpush.msra.mxu0 %v128
    %2977 = vmatmul.f32.gmra.mxu0 %v2960
    %v2978 = vpop.f32.mrf.mxu0
    %v2979 = vadd.f32 0.0, %v2978
    %2980 = vdwg.mxu0
    %2981 = vmatpush.msra.mxu0 %v376
    %2982 = vmatpush.msra.mxu0 %v368
    %2983 = vmatpush.msra.mxu0 %v360
    %2984 = vmatpush.msra.mxu0 %v352
    %2985 = vmatpush.msra.mxu0 %v344
    %2986 = vmatpush.msra.mxu0 %v336
    %2987 = vmatpush.msra.mxu0 %v328
    %2988 = vmatpush.msra.mxu0 %v320
    %2989 = vmatpush.msra.mxu0 %v312
    %2990 = vmatpush.msra.mxu0 %v304
    %2991 = vmatpush.msra.mxu0 %v296
    %2992 = vmatpush.msra.mxu0 %v288
    %2993 = vmatpush.msra.mxu0 %v280
    %2994 = vmatpush.msra.mxu0 %v272
    %2995 = vmatpush.msra.mxu0 %v264
    %2996 = vmatpush.msra.mxu0 %v256
    %2997 = vmatmul.f32.gmra.mxu0 %v2881
    %v2998 = vpop.f32.mrf.mxu0
    %v2999 = vadd.f32 %v2979, %v2998
    %3000 = vdwg.mxu0
    %3001 = vmatpush.msra.mxu0 %v249
    %3002 = vmatpush.msra.mxu0 %v241
    %3003 = vmatpush.msra.mxu0 %v233
    %3004 = vmatpush.msra.mxu0 %v225
    %3005 = vmatpush.msra.mxu0 %v217
    %3006 = vmatpush.msra.mxu0 %v209
    %3007 = vmatpush.msra.mxu0 %v201
    %3008 = vmatpush.msra.mxu0 %v193
    %3009 = vmatpush.msra.mxu0 %v185
    %3010 = vmatpush.msra.mxu0 %v177
    %3011 = vmatpush.msra.mxu0 %v169
    %3012 = vmatpush.msra.mxu0 %v161
    %3013 = vmatpush.msra.mxu0 %v153
    %3014 = vmatpush.msra.mxu0 %v145
    %3015 = vmatpush.msra.mxu0 %v137
    %3016 = vmatpush.msra.mxu0 %v129
    %3017 = vmatmul.f32.gmra.mxu0 %v2960
    %v3018 = vpop.f32.mrf.mxu0
    %v3019 = vadd.f32 0.0, %v3018
    %3020 = vdwg.mxu0
    %3021 = vmatpush.msra.mxu0 %v377
    %3022 = vmatpush.msra.mxu0 %v369
    %3023 = vmatpush.msra.mxu0 %v361
    %3024 = vmatpush.msra.mxu0 %v353
    %3025 = vmatpush.msra.mxu0 %v345
    %3026 = vmatpush.msra.mxu0 %v337
    %3027 = vmatpush.msra.mxu0 %v329
    %3028 = vmatpush.msra.mxu0 %v321
    %3029 = vmatpush.msra.mxu0 %v313
    %3030 = vmatpush.msra.mxu0 %v305
    %3031 = vmatpush.msra.mxu0 %v297
    %3032 = vmatpush.msra.mxu0 %v289
    %3033 = vmatpush.msra.mxu0 %v281
    %3034 = vmatpush.msra.mxu0 %v273
    %3035 = vmatpush.msra.mxu0 %v265
    %3036 = vmatpush.msra.mxu0 %v257
    %3037 = vmatmul.f32.gmra.mxu0 %v2881
    %v3038 = vpop.f32.mrf.mxu0
    %v3039 = vadd.f32 %v3019, %v3038
    %3040 = vdwg.mxu0
    %3041 = vmatpush.msra.mxu0 %v250
    %3042 = vmatpush.msra.mxu0 %v242
    %3043 = vmatpush.msra.mxu0 %v234
    %3044 = vmatpush.msra.mxu0 %v226
    %3045 = vmatpush.msra.mxu0 %v218
    %3046 = vmatpush.msra.mxu0 %v210
    %3047 = vmatpush.msra.mxu0 %v202
    %3048 = vmatpush.msra.mxu0 %v194
    %3049 = vmatpush.msra.mxu0 %v186
    %3050 = vmatpush.msra.mxu0 %v178
    %3051 = vmatpush.msra.mxu0 %v170
    %3052 = vmatpush.msra.mxu0 %v162
    %3053 = vmatpush.msra.mxu0 %v154
    %3054 = vmatpush.msra.mxu0 %v146
    %3055 = vmatpush.msra.mxu0 %v138
    %3056 = vmatpush.msra.mxu0 %v130
    %3057 = vmatmul.f32.gmra.mxu0 %v2960
    %v3058 = vpop.f32.mrf.mxu0
    %v3059 = vadd.f32 0.0, %v3058
    %3060 = vdwg.mxu0
    %3061 = vmatpush.msra.mxu0 %v378
    %3062 = vmatpush.msra.mxu0 %v370
    %3063 = vmatpush.msra.mxu0 %v362
    %3064 = vmatpush.msra.mxu0 %v354
    %3065 = vmatpush.msra.mxu0 %v346
    %3066 = vmatpush.msra.mxu0 %v338
    %3067 = vmatpush.msra.mxu0 %v330
    %3068 = vmatpush.msra.mxu0 %v322
    %3069 = vmatpush.msra.mxu0 %v314
    %3070 = vmatpush.msra.mxu0 %v306
    %3071 = vmatpush.msra.mxu0 %v298
    %3072 = vmatpush.msra.mxu0 %v290
    %3073 = vmatpush.msra.mxu0 %v282
    %3074 = vmatpush.msra.mxu0 %v274
    %3075 = vmatpush.msra.mxu0 %v266
    %3076 = vmatpush.msra.mxu0 %v258
    %3077 = vmatmul.f32.gmra.mxu0 %v2881
    %v3078 = vpop.f32.mrf.mxu0
    %v3079 = vadd.f32 %v3059, %v3078
    %3080 = vdwg.mxu0
    %3081 = vmatpush.msra.mxu0 %v251
    %3082 = vmatpush.msra.mxu0 %v243
    %3083 = vmatpush.msra.mxu0 %v235
    %3084 = vmatpush.msra.mxu0 %v227
    %3085 = vmatpush.msra.mxu0 %v219
    %3086 = vmatpush.msra.mxu0 %v211
    %3087 = vmatpush.msra.mxu0 %v203
    %3088 = vmatpush.msra.mxu0 %v195
    %3089 = vmatpush.msra.mxu0 %v187
    %3090 = vmatpush.msra.mxu0 %v179
    %3091 = vmatpush.msra.mxu0 %v171
    %3092 = vmatpush.msra.mxu0 %v163
    %3093 = vmatpush.msra.mxu0 %v155
    %3094 = vmatpush.msra.mxu0 %v147
    %3095 = vmatpush.msra.mxu0 %v139
    %3096 = vmatpush.msra.mxu0 %v131
    %3097 = vmatmul.f32.gmra.mxu0 %v2960
    %v3098 = vpop.f32.mrf.mxu0
    %v3099 = vadd.f32 0.0, %v3098
    %3100 = vdwg.mxu0
    %3101 = vmatpush.msra.mxu0 %v379
    %3102 = vmatpush.msra.mxu0 %v371
    %3103 = vmatpush.msra.mxu0 %v363
    %3104 = vmatpush.msra.mxu0 %v355
    %3105 = vmatpush.msra.mxu0 %v347
    %3106 = vmatpush.msra.mxu0 %v339
    %3107 = vmatpush.msra.mxu0 %v331
    %3108 = vmatpush.msra.mxu0 %v323
    %3109 = vmatpush.msra.mxu0 %v315
    %3110 = vmatpush.msra.mxu0 %v307
    %3111 = vmatpush.msra.mxu0 %v299
    %3112 = vmatpush.msra.mxu0 %v291
    %3113 = vmatpush.msra.mxu0 %v283
    %3114 = vmatpush.msra.mxu0 %v275
    %3115 = vmatpush.msra.mxu0 %v267
    %3116 = vmatpush.msra.mxu0 %v259
    %3117 = vmatmul.f32.gmra.mxu0 %v2881
    %v3118 = vpop.f32.mrf.mxu0
    %v3119 = vadd.f32 %v3099, %v3118
    %3120 = vdwg.mxu0
    %3121 = vmatpush.msra.mxu0 %v252
    %3122 = vmatpush.msra.mxu0 %v244
    %3123 = vmatpush.msra.mxu0 %v236
    %3124 = vmatpush.msra.mxu0 %v228
    %3125 = vmatpush.msra.mxu0 %v220
    %3126 = vmatpush.msra.mxu0 %v212
    %3127 = vmatpush.msra.mxu0 %v204
    %3128 = vmatpush.msra.mxu0 %v196
    %3129 = vmatpush.msra.mxu0 %v188
    %3130 = vmatpush.msra.mxu0 %v180
    %3131 = vmatpush.msra.mxu0 %v172
    %3132 = vmatpush.msra.mxu0 %v164
    %3133 = vmatpush.msra.mxu0 %v156
    %3134 = vmatpush.msra.mxu0 %v148
    %3135 = vmatpush.msra.mxu0 %v140
    %3136 = vmatpush.msra.mxu0 %v132
    %3137 = vmatmul.f32.gmra.mxu0 %v2960
    %v3138 = vpop.f32.mrf.mxu0
    %v3139 = vadd.f32 0.0, %v3138
    %3140 = vdwg.mxu0
    %3141 = vmatpush.msra.mxu0 %v380
    %3142 = vmatpush.msra.mxu0 %v372
    %3143 = vmatpush.msra.mxu0 %v364
    %3144 = vmatpush.msra.mxu0 %v356
    %3145 = vmatpush.msra.mxu0 %v348
    %3146 = vmatpush.msra.mxu0 %v340
    %3147 = vmatpush.msra.mxu0 %v332
    %3148 = vmatpush.msra.mxu0 %v324
    %3149 = vmatpush.msra.mxu0 %v316
    %3150 = vmatpush.msra.mxu0 %v308
    %3151 = vmatpush.msra.mxu0 %v300
    %3152 = vmatpush.msra.mxu0 %v292
    %3153 = vmatpush.msra.mxu0 %v284
    %3154 = vmatpush.msra.mxu0 %v276
    %3155 = vmatpush.msra.mxu0 %v268
    %3156 = vmatpush.msra.mxu0 %v260
    %3157 = vmatmul.f32.gmra.mxu0 %v2881
    %v3158 = vpop.f32.mrf.mxu0
    %v3159 = vadd.f32 %v3139, %v3158
    %3160 = vdwg.mxu0
    %3161 = vmatpush.msra.mxu0 %v253
    %3162 = vmatpush.msra.mxu0 %v245
    %3163 = vmatpush.msra.mxu0 %v237
    %3164 = vmatpush.msra.mxu0 %v229
    %3165 = vmatpush.msra.mxu0 %v221
    %3166 = vmatpush.msra.mxu0 %v213
    %3167 = vmatpush.msra.mxu0 %v205
    %3168 = vmatpush.msra.mxu0 %v197
    %3169 = vmatpush.msra.mxu0 %v189
    %3170 = vmatpush.msra.mxu0 %v181
    %3171 = vmatpush.msra.mxu0 %v173
    %3172 = vmatpush.msra.mxu0 %v165
    %3173 = vmatpush.msra.mxu0 %v157
    %3174 = vmatpush.msra.mxu0 %v149
    %3175 = vmatpush.msra.mxu0 %v141
    %3176 = vmatpush.msra.mxu0 %v133
    %3177 = vmatmul.f32.gmra.mxu0 %v2960
    %v3178 = vpop.f32.mrf.mxu0
    %v3179 = vadd.f32 0.0, %v3178
    %3180 = vdwg.mxu0
    %3181 = vmatpush.msra.mxu0 %v381
    %3182 = vmatpush.msra.mxu0 %v373
    %3183 = vmatpush.msra.mxu0 %v365
    %3184 = vmatpush.msra.mxu0 %v357
    %3185 = vmatpush.msra.mxu0 %v349
    %3186 = vmatpush.msra.mxu0 %v341
    %3187 = vmatpush.msra.mxu0 %v333
    %3188 = vmatpush.msra.mxu0 %v325
    %3189 = vmatpush.msra.mxu0 %v317
    %3190 = vmatpush.msra.mxu0 %v309
    %3191 = vmatpush.msra.mxu0 %v301
    %3192 = vmatpush.msra.mxu0 %v293
    %3193 = vmatpush.msra.mxu0 %v285
    %3194 = vmatpush.msra.mxu0 %v277
    %3195 = vmatpush.msra.mxu0 %v269
    %3196 = vmatpush.msra.mxu0 %v261
    %3197 = vmatmul.f32.gmra.mxu0 %v2881
    %v3198 = vpop.f32.mrf.mxu0
    %v3199 = vadd.f32 %v3179, %v3198
    %3200 = vdwg.mxu0
    %3201 = vmatpush.msra.mxu0 %v254
    %3202 = vmatpush.msra.mxu0 %v246
    %3203 = vmatpush.msra.mxu0 %v238
    %3204 = vmatpush.msra.mxu0 %v230
    %3205 = vmatpush.msra.mxu0 %v222
    %3206 = vmatpush.msra.mxu0 %v214
    %3207 = vmatpush.msra.mxu0 %v206
    %3208 = vmatpush.msra.mxu0 %v198
    %3209 = vmatpush.msra.mxu0 %v190
    %3210 = vmatpush.msra.mxu0 %v182
    %3211 = vmatpush.msra.mxu0 %v174
    %3212 = vmatpush.msra.mxu0 %v166
    %3213 = vmatpush.msra.mxu0 %v158
    %3214 = vmatpush.msra.mxu0 %v150
    %3215 = vmatpush.msra.mxu0 %v142
    %3216 = vmatpush.msra.mxu0 %v134
    %3217 = vmatmul.f32.gmra.mxu0 %v2960
    %v3218 = vpop.f32.mrf.mxu0
    %v3219 = vadd.f32 0.0, %v3218
    %3220 = vdwg.mxu0
    %3221 = vmatpush.msra.mxu0 %v382
    %3222 = vmatpush.msra.mxu0 %v374
    %3223 = vmatpush.msra.mxu0 %v366
    %3224 = vmatpush.msra.mxu0 %v358
    %3225 = vmatpush.msra.mxu0 %v350
    %3226 = vmatpush.msra.mxu0 %v342
    %3227 = vmatpush.msra.mxu0 %v334
    %3228 = vmatpush.msra.mxu0 %v326
    %3229 = vmatpush.msra.mxu0 %v318
    %3230 = vmatpush.msra.mxu0 %v310
    %3231 = vmatpush.msra.mxu0 %v302
    %3232 = vmatpush.msra.mxu0 %v294
    %3233 = vmatpush.msra.mxu0 %v286
    %3234 = vmatpush.msra.mxu0 %v278
    %3235 = vmatpush.msra.mxu0 %v270
    %3236 = vmatpush.msra.mxu0 %v262
    %3237 = vmatmul.f32.gmra.mxu0 %v2881
    %v3238 = vpop.f32.mrf.mxu0
    %v3239 = vadd.f32 %v3219, %v3238
    %3240 = vdwg.mxu0
    %3241 = vmatpush.msra.mxu0 %v255
    %3242 = vmatpush.msra.mxu0 %v247
    %3243 = vmatpush.msra.mxu0 %v239
    %3244 = vmatpush.msra.mxu0 %v231
    %3245 = vmatpush.msra.mxu0 %v223
    %3246 = vmatpush.msra.mxu0 %v215
    %3247 = vmatpush.msra.mxu0 %v207
    %3248 = vmatpush.msra.mxu0 %v199
    %3249 = vmatpush.msra.mxu0 %v191
    %3250 = vmatpush.msra.mxu0 %v183
    %3251 = vmatpush.msra.mxu0 %v175
    %3252 = vmatpush.msra.mxu0 %v167
    %3253 = vmatpush.msra.mxu0 %v159
    %3254 = vmatpush.msra.mxu0 %v151
    %3255 = vmatpush.msra.mxu0 %v143
    %3256 = vmatpush.msra.mxu0 %v135
    %3257 = vmatmul.f32.gmra.mxu0 %v2960
    %v3258 = vpop.f32.mrf.mxu0
    %v3259 = vadd.f32 0.0, %v3258
    %3260 = vdwg.mxu0
    %3261 = vmatpush.msra.mxu0 %v383
    %3262 = vmatpush.msra.mxu0 %v375
    %3263 = vmatpush.msra.mxu0 %v367
    %3264 = vmatpush.msra.mxu0 %v359
    %3265 = vmatpush.msra.mxu0 %v351
    %3266 = vmatpush.msra.mxu0 %v343
    %3267 = vmatpush.msra.mxu0 %v335
    %3268 = vmatpush.msra.mxu0 %v327
    %3269 = vmatpush.msra.mxu0 %v319
    %3270 = vmatpush.msra.mxu0 %v311
    %3271 = vmatpush.msra.mxu0 %v303
    %3272 = vmatpush.msra.mxu0 %v295
    %3273 = vmatpush.msra.mxu0 %v287
    %3274 = vmatpush.msra.mxu0 %v279
    %3275 = vmatpush.msra.mxu0 %v271
    %3276 = vmatpush.msra.mxu0 %v263
    %3277 = vmatmul.f32.gmra.mxu0 %v2881
    %v3278 = vpop.f32.mrf.mxu0
    %v3279 = vadd.f32 %v3259, %v3278
    %3280 = vdwg.mxu0
    %v3281 = vadd.f32 %v3159, %v943
    %v3282 = vadd.f32 %v3199, %v944
    %v3283 = vadd.f32 %v3239, %v945
    %v3284 = vadd.f32 %v3279, %v946
    %v3285 = vxor.u32 %v3281, 2147483648
    %v3286 = vmul.f32 %v3285, 1.442695
    %v3287 = vpow.pop %v3286
    %v3288 = vadd.f32 %v3287, 1.0
    %v3289 = vrcp.pop %v3288
    %v3290 = vmul.f32 %v3288, %v3289
    %v3291 = vsub.f32 1.0, %v3290
    %v3292 = vmul.f32 %v3289, %v3291
    %v3293 = vadd.f32 %v3289, %v3292
    %vm3294 = vweird.f32 %v3288
    %vm3295 = vweird.f32 %v3289
    %vm3296 = vmor %vm3294, %vm3295
    %v3297 = vsel %vm3296, %v3289, %v3293
    %v3298 = vand.u32 2147483647, %v3288
    %vm3299 = vcmp.eq.f32.partialorder %v3298, 8.507059e+37
    %v3300 = vand.u32 %v3288, 2147483648
    %v3301 = vor.u32 1.1754944e-38, %v3300
    %v3302 = vsel %vm3299, %v3301, %v3297
    %v3303 = vmul.f32 1.0, %v3302
    %v3304 = vxor.u32 %v3282, 2147483648
    %v3305 = vmul.f32 %v3304, 1.442695
    %v3306 = vpow.pop %v3305
    %v3307 = vadd.f32 %v3306, 1.0
    %v3308 = vrcp.pop %v3307
    %v3309 = vmul.f32 %v3307, %v3308
    %v3310 = vsub.f32 1.0, %v3309
    %v3311 = vmul.f32 %v3308, %v3310
    %v3312 = vadd.f32 %v3308, %v3311
    %vm3313 = vweird.f32 %v3307
    %vm3314 = vweird.f32 %v3308
    %vm3315 = vmor %vm3313, %vm3314
    %v3316 = vsel %vm3315, %v3308, %v3312
    %v3317 = vand.u32 2147483647, %v3307
    %vm3318 = vcmp.eq.f32.partialorder %v3317, 8.507059e+37
    %v3319 = vand.u32 %v3307, 2147483648
    %v3320 = vor.u32 1.1754944e-38, %v3319
    %v3321 = vsel %vm3318, %v3320, %v3316
    %v3322 = vmul.f32 1.0, %v3321
    %v3323 = vtanh.pop %v3283
    %v3324 = vxor.u32 %v3284, 2147483648
    %v3325 = vmul.f32 %v3324, 1.442695
    %v3326 = vpow.pop %v3325
    %v3327 = vadd.f32 %v3326, 1.0
    %v3328 = vrcp.pop %v3327
    %v3329 = vmul.f32 %v3327, %v3328
    %v3330 = vsub.f32 1.0, %v3329
    %v3331 = vmul.f32 %v3328, %v3330
    %v3332 = vadd.f32 %v3328, %v3331
    %vm3333 = vweird.f32 %v3327
    %vm3334 = vweird.f32 %v3328
    %vm3335 = vmor %vm3333, %vm3334
    %v3336 = vsel %vm3335, %v3328, %v3332
    %v3337 = vand.u32 2147483647, %v3327
    %vm3338 = vcmp.eq.f32.partialorder %v3337, 8.507059e+37
    %v3339 = vand.u32 %v3327, 2147483648
    %v3340 = vor.u32 1.1754944e-38, %v3339
    %v3341 = vsel %vm3338, %v3340, %v3336
    %v3342 = vmul.f32 1.0, %v3341
    %v3343 = vmul.f32 %v3322, %v2879
    %v3344 = vmul.f32 %v3303, %v3323
    %v3345 = vadd.f32 %v3343, %v3344
    %v3346 = vtanh.pop %v3345
    %v3347 = vmul.f32 %v3342, %v3346
    %s3348 = scalar_lea.vmem [#allocation2], 48
    %v3349 = vld [vmem:[%s3348] sm:$0xff]
    %3351 = vst [vmem:[#allocation1] ss:$4 sm:$0xff] %v3349
    %v3352 = vld.sshfl [vmem:[#allocation1] sm:$0xff pattern:$0x73625140]
    %v3353 = vld.sshfl [vmem:[#allocation1 + $0x8] sm:$0xff pattern:$0x73625140]
    %v3354 = vld.sshfl [vmem:[#allocation1 + $0x10] sm:$0xff pattern:$0x73625140]
    %v3355 = vld.sshfl [vmem:[#allocation1 + $0x18] sm:$0xff pattern:$0x73625140]
    %v3360 = vadd.f32 %v2999, %v3352
    %v3361 = vadd.f32 %v3039, %v3353
    %v3362 = vadd.f32 %v3079, %v3354
    %v3363 = vadd.f32 %v3119, %v3355
    %v3364 = vxor.u32 %v3360, 2147483648
    %v3365 = vmul.f32 %v3364, 1.442695
    %v3366 = vpow.pop %v3365
    %v3367 = vadd.f32 %v3366, 1.0
    %v3368 = vrcp.pop %v3367
    %v3369 = vmul.f32 %v3367, %v3368
    %v3370 = vsub.f32 1.0, %v3369
    %v3371 = vmul.f32 %v3368, %v3370
    %v3372 = vadd.f32 %v3368, %v3371
    %vm3373 = vweird.f32 %v3367
    %vm3374 = vweird.f32 %v3368
    %vm3375 = vmor %vm3373, %vm3374
    %v3376 = vsel %vm3375, %v3368, %v3372
    %v3377 = vand.u32 2147483647, %v3367
    %vm3378 = vcmp.eq.f32.partialorder %v3377, 8.507059e+37
    %v3379 = vand.u32 %v3367, 2147483648
    %v3380 = vor.u32 1.1754944e-38, %v3379
    %v3381 = vsel %vm3378, %v3380, %v3376
    %v3382 = vmul.f32 1.0, %v3381
    %v3383 = vxor.u32 %v3361, 2147483648
    %v3384 = vmul.f32 %v3383, 1.442695
    %v3385 = vpow.pop %v3384
    %v3386 = vadd.f32 %v3385, 1.0
    %v3387 = vrcp.pop %v3386
    %v3388 = vmul.f32 %v3386, %v3387
    %v3389 = vsub.f32 1.0, %v3388
    %v3390 = vmul.f32 %v3387, %v3389
    %v3391 = vadd.f32 %v3387, %v3390
    %vm3392 = vweird.f32 %v3386
    %vm3393 = vweird.f32 %v3387
    %vm3394 = vmor %vm3392, %vm3393
    %v3395 = vsel %vm3394, %v3387, %v3391
    %v3396 = vand.u32 2147483647, %v3386
    %vm3397 = vcmp.eq.f32.partialorder %v3396, 8.507059e+37
    %v3398 = vand.u32 %v3386, 2147483648
    %v3399 = vor.u32 1.1754944e-38, %v3398
    %v3400 = vsel %vm3397, %v3399, %v3395
    %v3401 = vmul.f32 1.0, %v3400
    %v3402 = vtanh.pop %v3362
    %v3403 = vxor.u32 %v3363, 2147483648
    %v3404 = vmul.f32 %v3403, 1.442695
    %v3405 = vpow.pop %v3404
    %v3406 = vadd.f32 %v3405, 1.0
    %v3407 = vrcp.pop %v3406
    %v3408 = vmul.f32 %v3406, %v3407
    %v3409 = vsub.f32 1.0, %v3408
    %v3410 = vmul.f32 %v3407, %v3409
    %v3411 = vadd.f32 %v3407, %v3410
    %vm3412 = vweird.f32 %v3406
    %vm3413 = vweird.f32 %v3407
    %vm3414 = vmor %vm3412, %vm3413
    %v3415 = vsel %vm3414, %v3407, %v3411
    %v3416 = vand.u32 2147483647, %v3406
    %vm3417 = vcmp.eq.f32.partialorder %v3416, 8.507059e+37
    %v3418 = vand.u32 %v3406, 2147483648
    %v3419 = vor.u32 1.1754944e-38, %v3418
    %v3420 = vsel %vm3417, %v3419, %v3415
    %v3421 = vmul.f32 1.0, %v3420
    %v3422 = vmul.f32 %v3401, %v2958
    %v3423 = vmul.f32 %v3382, %v3402
    %v3424 = vadd.f32 %v3422, %v3423
    %v3425 = vtanh.pop %v3424
    %v3426 = vmul.f32 %v3421, %v3425
    %3427 = vmatpush.msra.mxu0 %v248
    %3428 = vmatpush.msra.mxu0 %v240
    %3429 = vmatpush.msra.mxu0 %v232
    %3430 = vmatpush.msra.mxu0 %v224
    %3431 = vmatpush.msra.mxu0 %v216
    %3432 = vmatpush.msra.mxu0 %v208
    %3433 = vmatpush.msra.mxu0 %v200
    %3434 = vmatpush.msra.mxu0 %v192
    %3435 = vmatpush.msra.mxu0 %v184
    %3436 = vmatpush.msra.mxu0 %v176
    %3437 = vmatpush.msra.mxu0 %v168
    %3438 = vmatpush.msra.mxu0 %v160
    %3439 = vmatpush.msra.mxu0 %v152
    %3440 = vmatpush.msra.mxu0 %v144
    %3441 = vmatpush.msra.mxu0 %v136
    %3442 = vmatpush.msra.mxu0 %v128
    %3443 = vmatmul.f32.gmra.mxu0 %v3426
    %v3444 = vpop.f32.mrf.mxu0
    %v3445 = vadd.f32 0.0, %v3444
    %3446 = vdwg.mxu0
    %3447 = vmatpush.msra.mxu0 %v376
    %3448 = vmatpush.msra.mxu0 %v368
    %3449 = vmatpush.msra.mxu0 %v360
    %3450 = vmatpush.msra.mxu0 %v352
    %3451 = vmatpush.msra.mxu0 %v344
    %3452 = vmatpush.msra.mxu0 %v336
    %3453 = vmatpush.msra.mxu0 %v328
    %3454 = vmatpush.msra.mxu0 %v320
    %3455 = vmatpush.msra.mxu0 %v312
    %3456 = vmatpush.msra.mxu0 %v304
    %3457 = vmatpush.msra.mxu0 %v296
    %3458 = vmatpush.msra.mxu0 %v288
    %3459 = vmatpush.msra.mxu0 %v280
    %3460 = vmatpush.msra.mxu0 %v272
    %3461 = vmatpush.msra.mxu0 %v264
    %3462 = vmatpush.msra.mxu0 %v256
    %3463 = vmatmul.f32.gmra.mxu0 %v3347
    %v3464 = vpop.f32.mrf.mxu0
    %v3465 = vadd.f32 %v3445, %v3464
    %3466 = vdwg.mxu0
    %3467 = vmatpush.msra.mxu0 %v249
    %3468 = vmatpush.msra.mxu0 %v241
    %3469 = vmatpush.msra.mxu0 %v233
    %3470 = vmatpush.msra.mxu0 %v225
    %3471 = vmatpush.msra.mxu0 %v217
    %3472 = vmatpush.msra.mxu0 %v209
    %3473 = vmatpush.msra.mxu0 %v201
    %3474 = vmatpush.msra.mxu0 %v193
    %3475 = vmatpush.msra.mxu0 %v185
    %3476 = vmatpush.msra.mxu0 %v177
    %3477 = vmatpush.msra.mxu0 %v169
    %3478 = vmatpush.msra.mxu0 %v161
    %3479 = vmatpush.msra.mxu0 %v153
    %3480 = vmatpush.msra.mxu0 %v145
    %3481 = vmatpush.msra.mxu0 %v137
    %3482 = vmatpush.msra.mxu0 %v129
    %3483 = vmatmul.f32.gmra.mxu0 %v3426
    %v3484 = vpop.f32.mrf.mxu0
    %v3485 = vadd.f32 0.0, %v3484
    %3486 = vdwg.mxu0
    %3487 = vmatpush.msra.mxu0 %v377
    %3488 = vmatpush.msra.mxu0 %v369
    %3489 = vmatpush.msra.mxu0 %v361
    %3490 = vmatpush.msra.mxu0 %v353
    %3491 = vmatpush.msra.mxu0 %v345
    %3492 = vmatpush.msra.mxu0 %v337
    %3493 = vmatpush.msra.mxu0 %v329
    %3494 = vmatpush.msra.mxu0 %v321
    %3495 = vmatpush.msra.mxu0 %v313
    %3496 = vmatpush.msra.mxu0 %v305
    %3497 = vmatpush.msra.mxu0 %v297
    %3498 = vmatpush.msra.mxu0 %v289
    %3499 = vmatpush.msra.mxu0 %v281
    %3500 = vmatpush.msra.mxu0 %v273
    %3501 = vmatpush.msra.mxu0 %v265
    %3502 = vmatpush.msra.mxu0 %v257
    %3503 = vmatmul.f32.gmra.mxu0 %v3347
    %v3504 = vpop.f32.mrf.mxu0
    %v3505 = vadd.f32 %v3485, %v3504
    %3506 = vdwg.mxu0
    %3507 = vmatpush.msra.mxu0 %v250
    %3508 = vmatpush.msra.mxu0 %v242
    %3509 = vmatpush.msra.mxu0 %v234
    %3510 = vmatpush.msra.mxu0 %v226
    %3511 = vmatpush.msra.mxu0 %v218
    %3512 = vmatpush.msra.mxu0 %v210
    %3513 = vmatpush.msra.mxu0 %v202
    %3514 = vmatpush.msra.mxu0 %v194
    %3515 = vmatpush.msra.mxu0 %v186
    %3516 = vmatpush.msra.mxu0 %v178
    %3517 = vmatpush.msra.mxu0 %v170
    %3518 = vmatpush.msra.mxu0 %v162
    %3519 = vmatpush.msra.mxu0 %v154
    %3520 = vmatpush.msra.mxu0 %v146
    %3521 = vmatpush.msra.mxu0 %v138
    %3522 = vmatpush.msra.mxu0 %v130
    %3523 = vmatmul.f32.gmra.mxu0 %v3426
    %v3524 = vpop.f32.mrf.mxu0
    %v3525 = vadd.f32 0.0, %v3524
    %3526 = vdwg.mxu0
    %3527 = vmatpush.msra.mxu0 %v378
    %3528 = vmatpush.msra.mxu0 %v370
    %3529 = vmatpush.msra.mxu0 %v362
    %3530 = vmatpush.msra.mxu0 %v354
    %3531 = vmatpush.msra.mxu0 %v346
    %3532 = vmatpush.msra.mxu0 %v338
    %3533 = vmatpush.msra.mxu0 %v330
    %3534 = vmatpush.msra.mxu0 %v322
    %3535 = vmatpush.msra.mxu0 %v314
    %3536 = vmatpush.msra.mxu0 %v306
    %3537 = vmatpush.msra.mxu0 %v298
    %3538 = vmatpush.msra.mxu0 %v290
    %3539 = vmatpush.msra.mxu0 %v282
    %3540 = vmatpush.msra.mxu0 %v274
    %3541 = vmatpush.msra.mxu0 %v266
    %3542 = vmatpush.msra.mxu0 %v258
    %3543 = vmatmul.f32.gmra.mxu0 %v3347
    %v3544 = vpop.f32.mrf.mxu0
    %v3545 = vadd.f32 %v3525, %v3544
    %3546 = vdwg.mxu0
    %3547 = vmatpush.msra.mxu0 %v251
    %3548 = vmatpush.msra.mxu0 %v243
    %3549 = vmatpush.msra.mxu0 %v235
    %3550 = vmatpush.msra.mxu0 %v227
    %3551 = vmatpush.msra.mxu0 %v219
    %3552 = vmatpush.msra.mxu0 %v211
    %3553 = vmatpush.msra.mxu0 %v203
    %3554 = vmatpush.msra.mxu0 %v195
    %3555 = vmatpush.msra.mxu0 %v187
    %3556 = vmatpush.msra.mxu0 %v179
    %3557 = vmatpush.msra.mxu0 %v171
    %3558 = vmatpush.msra.mxu0 %v163
    %3559 = vmatpush.msra.mxu0 %v155
    %3560 = vmatpush.msra.mxu0 %v147
    %3561 = vmatpush.msra.mxu0 %v139
    %3562 = vmatpush.msra.mxu0 %v131
    %3563 = vmatmul.f32.gmra.mxu0 %v3426
    %v3564 = vpop.f32.mrf.mxu0
    %v3565 = vadd.f32 0.0, %v3564
    %3566 = vdwg.mxu0
    %3567 = vmatpush.msra.mxu0 %v379
    %3568 = vmatpush.msra.mxu0 %v371
    %3569 = vmatpush.msra.mxu0 %v363
    %3570 = vmatpush.msra.mxu0 %v355
    %3571 = vmatpush.msra.mxu0 %v347
    %3572 = vmatpush.msra.mxu0 %v339
    %3573 = vmatpush.msra.mxu0 %v331
    %3574 = vmatpush.msra.mxu0 %v323
    %3575 = vmatpush.msra.mxu0 %v315
    %3576 = vmatpush.msra.mxu0 %v307
    %3577 = vmatpush.msra.mxu0 %v299
    %3578 = vmatpush.msra.mxu0 %v291
    %3579 = vmatpush.msra.mxu0 %v283
    %3580 = vmatpush.msra.mxu0 %v275
    %3581 = vmatpush.msra.mxu0 %v267
    %3582 = vmatpush.msra.mxu0 %v259
    %3583 = vmatmul.f32.gmra.mxu0 %v3347
    %v3584 = vpop.f32.mrf.mxu0
    %v3585 = vadd.f32 %v3565, %v3584
    %3586 = vdwg.mxu0
    %3587 = vmatpush.msra.mxu0 %v252
    %3588 = vmatpush.msra.mxu0 %v244
    %3589 = vmatpush.msra.mxu0 %v236
    %3590 = vmatpush.msra.mxu0 %v228
    %3591 = vmatpush.msra.mxu0 %v220
    %3592 = vmatpush.msra.mxu0 %v212
    %3593 = vmatpush.msra.mxu0 %v204
    %3594 = vmatpush.msra.mxu0 %v196
    %3595 = vmatpush.msra.mxu0 %v188
    %3596 = vmatpush.msra.mxu0 %v180
    %3597 = vmatpush.msra.mxu0 %v172
    %3598 = vmatpush.msra.mxu0 %v164
    %3599 = vmatpush.msra.mxu0 %v156
    %3600 = vmatpush.msra.mxu0 %v148
    %3601 = vmatpush.msra.mxu0 %v140
    %3602 = vmatpush.msra.mxu0 %v132
    %3603 = vmatmul.f32.gmra.mxu0 %v3426
    %v3604 = vpop.f32.mrf.mxu0
    %v3605 = vadd.f32 0.0, %v3604
    %3606 = vdwg.mxu0
    %3607 = vmatpush.msra.mxu0 %v380
    %3608 = vmatpush.msra.mxu0 %v372
    %3609 = vmatpush.msra.mxu0 %v364
    %3610 = vmatpush.msra.mxu0 %v356
    %3611 = vmatpush.msra.mxu0 %v348
    %3612 = vmatpush.msra.mxu0 %v340
    %3613 = vmatpush.msra.mxu0 %v332
    %3614 = vmatpush.msra.mxu0 %v324
    %3615 = vmatpush.msra.mxu0 %v316
    %3616 = vmatpush.msra.mxu0 %v308
    %3617 = vmatpush.msra.mxu0 %v300
    %3618 = vmatpush.msra.mxu0 %v292
    %3619 = vmatpush.msra.mxu0 %v284
    %3620 = vmatpush.msra.mxu0 %v276
    %3621 = vmatpush.msra.mxu0 %v268
    %3622 = vmatpush.msra.mxu0 %v260
    %3623 = vmatmul.f32.gmra.mxu0 %v3347
    %v3624 = vpop.f32.mrf.mxu0
    %v3625 = vadd.f32 %v3605, %v3624
    %3626 = vdwg.mxu0
    %3627 = vmatpush.msra.mxu0 %v253
    %3628 = vmatpush.msra.mxu0 %v245
    %3629 = vmatpush.msra.mxu0 %v237
    %3630 = vmatpush.msra.mxu0 %v229
    %3631 = vmatpush.msra.mxu0 %v221
    %3632 = vmatpush.msra.mxu0 %v213
    %3633 = vmatpush.msra.mxu0 %v205
    %3634 = vmatpush.msra.mxu0 %v197
    %3635 = vmatpush.msra.mxu0 %v189
    %3636 = vmatpush.msra.mxu0 %v181
    %3637 = vmatpush.msra.mxu0 %v173
    %3638 = vmatpush.msra.mxu0 %v165
    %3639 = vmatpush.msra.mxu0 %v157
    %3640 = vmatpush.msra.mxu0 %v149
    %3641 = vmatpush.msra.mxu0 %v141
    %3642 = vmatpush.msra.mxu0 %v133
    %3643 = vmatmul.f32.gmra.mxu0 %v3426
    %v3644 = vpop.f32.mrf.mxu0
    %v3645 = vadd.f32 0.0, %v3644
    %3646 = vdwg.mxu0
    %3647 = vmatpush.msra.mxu0 %v381
    %3648 = vmatpush.msra.mxu0 %v373
    %3649 = vmatpush.msra.mxu0 %v365
    %3650 = vmatpush.msra.mxu0 %v357
    %3651 = vmatpush.msra.mxu0 %v349
    %3652 = vmatpush.msra.mxu0 %v341
    %3653 = vmatpush.msra.mxu0 %v333
    %3654 = vmatpush.msra.mxu0 %v325
    %3655 = vmatpush.msra.mxu0 %v317
    %3656 = vmatpush.msra.mxu0 %v309
    %3657 = vmatpush.msra.mxu0 %v301
    %3658 = vmatpush.msra.mxu0 %v293
    %3659 = vmatpush.msra.mxu0 %v285
    %3660 = vmatpush.msra.mxu0 %v277
    %3661 = vmatpush.msra.mxu0 %v269
    %3662 = vmatpush.msra.mxu0 %v261
    %3663 = vmatmul.f32.gmra.mxu0 %v3347
    %v3664 = vpop.f32.mrf.mxu0
    %v3665 = vadd.f32 %v3645, %v3664
    %3666 = vdwg.mxu0
    %3667 = vmatpush.msra.mxu0 %v254
    %3668 = vmatpush.msra.mxu0 %v246
    %3669 = vmatpush.msra.mxu0 %v238
    %3670 = vmatpush.msra.mxu0 %v230
    %3671 = vmatpush.msra.mxu0 %v222
    %3672 = vmatpush.msra.mxu0 %v214
    %3673 = vmatpush.msra.mxu0 %v206
    %3674 = vmatpush.msra.mxu0 %v198
    %3675 = vmatpush.msra.mxu0 %v190
    %3676 = vmatpush.msra.mxu0 %v182
    %3677 = vmatpush.msra.mxu0 %v174
    %3678 = vmatpush.msra.mxu0 %v166
    %3679 = vmatpush.msra.mxu0 %v158
    %3680 = vmatpush.msra.mxu0 %v150
    %3681 = vmatpush.msra.mxu0 %v142
    %3682 = vmatpush.msra.mxu0 %v134
    %3683 = vmatmul.f32.gmra.mxu0 %v3426
    %v3684 = vpop.f32.mrf.mxu0
    %v3685 = vadd.f32 0.0, %v3684
    %3686 = vdwg.mxu0
    %3687 = vmatpush.msra.mxu0 %v382
    %3688 = vmatpush.msra.mxu0 %v374
    %3689 = vmatpush.msra.mxu0 %v366
    %3690 = vmatpush.msra.mxu0 %v358
    %3691 = vmatpush.msra.mxu0 %v350
    %3692 = vmatpush.msra.mxu0 %v342
    %3693 = vmatpush.msra.mxu0 %v334
    %3694 = vmatpush.msra.mxu0 %v326
    %3695 = vmatpush.msra.mxu0 %v318
    %3696 = vmatpush.msra.mxu0 %v310
    %3697 = vmatpush.msra.mxu0 %v302
    %3698 = vmatpush.msra.mxu0 %v294
    %3699 = vmatpush.msra.mxu0 %v286
    %3700 = vmatpush.msra.mxu0 %v278
    %3701 = vmatpush.msra.mxu0 %v270
    %3702 = vmatpush.msra.mxu0 %v262
    %3703 = vmatmul.f32.gmra.mxu0 %v3347
    %v3704 = vpop.f32.mrf.mxu0
    %v3705 = vadd.f32 %v3685, %v3704
    %3706 = vdwg.mxu0
    %3707 = vmatpush.msra.mxu0 %v255
    %3708 = vmatpush.msra.mxu0 %v247
    %3709 = vmatpush.msra.mxu0 %v239
    %3710 = vmatpush.msra.mxu0 %v231
    %3711 = vmatpush.msra.mxu0 %v223
    %3712 = vmatpush.msra.mxu0 %v215
    %3713 = vmatpush.msra.mxu0 %v207
    %3714 = vmatpush.msra.mxu0 %v199
    %3715 = vmatpush.msra.mxu0 %v191
    %3716 = vmatpush.msra.mxu0 %v183
    %3717 = vmatpush.msra.mxu0 %v175
    %3718 = vmatpush.msra.mxu0 %v167
    %3719 = vmatpush.msra.mxu0 %v159
    %3720 = vmatpush.msra.mxu0 %v151
    %3721 = vmatpush.msra.mxu0 %v143
    %3722 = vmatpush.msra.mxu0 %v135
    %3723 = vmatmul.f32.gmra.mxu0 %v3426
    %v3724 = vpop.f32.mrf.mxu0
    %v3725 = vadd.f32 0.0, %v3724
    %3726 = vdwg.mxu0
    %3727 = vmatpush.msra.mxu0 %v383
    %3728 = vmatpush.msra.mxu0 %v375
    %3729 = vmatpush.msra.mxu0 %v367
    %3730 = vmatpush.msra.mxu0 %v359
    %3731 = vmatpush.msra.mxu0 %v351
    %3732 = vmatpush.msra.mxu0 %v343
    %3733 = vmatpush.msra.mxu0 %v335
    %3734 = vmatpush.msra.mxu0 %v327
    %3735 = vmatpush.msra.mxu0 %v319
    %3736 = vmatpush.msra.mxu0 %v311
    %3737 = vmatpush.msra.mxu0 %v303
    %3738 = vmatpush.msra.mxu0 %v295
    %3739 = vmatpush.msra.mxu0 %v287
    %3740 = vmatpush.msra.mxu0 %v279
    %3741 = vmatpush.msra.mxu0 %v271
    %3742 = vmatpush.msra.mxu0 %v263
    %3743 = vmatmul.f32.gmra.mxu0 %v3347
    %v3744 = vpop.f32.mrf.mxu0
    %v3745 = vadd.f32 %v3725, %v3744
    %3746 = vdwg.mxu0
    %v3747 = vadd.f32 %v3625, %v943
    %v3748 = vadd.f32 %v3665, %v944
    %v3749 = vadd.f32 %v3705, %v945
    %v3750 = vadd.f32 %v3745, %v946
    %v3751 = vxor.u32 %v3747, 2147483648
    %v3752 = vmul.f32 %v3751, 1.442695
    %v3753 = vpow.pop %v3752
    %v3754 = vadd.f32 %v3753, 1.0
    %v3755 = vrcp.pop %v3754
    %v3756 = vmul.f32 %v3754, %v3755
    %v3757 = vsub.f32 1.0, %v3756
    %v3758 = vmul.f32 %v3755, %v3757
    %v3759 = vadd.f32 %v3755, %v3758
    %vm3760 = vweird.f32 %v3754
    %vm3761 = vweird.f32 %v3755
    %vm3762 = vmor %vm3760, %vm3761
    %v3763 = vsel %vm3762, %v3755, %v3759
    %v3764 = vand.u32 2147483647, %v3754
    %vm3765 = vcmp.eq.f32.partialorder %v3764, 8.507059e+37
    %v3766 = vand.u32 %v3754, 2147483648
    %v3767 = vor.u32 1.1754944e-38, %v3766
    %v3768 = vsel %vm3765, %v3767, %v3763
    %v3769 = vmul.f32 1.0, %v3768
    %v3770 = vxor.u32 %v3748, 2147483648
    %v3771 = vmul.f32 %v3770, 1.442695
    %v3772 = vpow.pop %v3771
    %v3773 = vadd.f32 %v3772, 1.0
    %v3774 = vrcp.pop %v3773
    %v3775 = vmul.f32 %v3773, %v3774
    %v3776 = vsub.f32 1.0, %v3775
    %v3777 = vmul.f32 %v3774, %v3776
    %v3778 = vadd.f32 %v3774, %v3777
    %vm3779 = vweird.f32 %v3773
    %vm3780 = vweird.f32 %v3774
    %vm3781 = vmor %vm3779, %vm3780
    %v3782 = vsel %vm3781, %v3774, %v3778
    %v3783 = vand.u32 2147483647, %v3773
    %vm3784 = vcmp.eq.f32.partialorder %v3783, 8.507059e+37
    %v3785 = vand.u32 %v3773, 2147483648
    %v3786 = vor.u32 1.1754944e-38, %v3785
    %v3787 = vsel %vm3784, %v3786, %v3782
    %v3788 = vmul.f32 1.0, %v3787
    %v3789 = vtanh.pop %v3749
    %v3790 = vxor.u32 %v3750, 2147483648
    %v3791 = vmul.f32 %v3790, 1.442695
    %v3792 = vpow.pop %v3791
    %v3793 = vadd.f32 %v3792, 1.0
    %v3794 = vrcp.pop %v3793
    %v3795 = vmul.f32 %v3793, %v3794
    %v3796 = vsub.f32 1.0, %v3795
    %v3797 = vmul.f32 %v3794, %v3796
    %v3798 = vadd.f32 %v3794, %v3797
    %vm3799 = vweird.f32 %v3793
    %vm3800 = vweird.f32 %v3794
    %vm3801 = vmor %vm3799, %vm3800
    %v3802 = vsel %vm3801, %v3794, %v3798
    %v3803 = vand.u32 2147483647, %v3793
    %vm3804 = vcmp.eq.f32.partialorder %v3803, 8.507059e+37
    %v3805 = vand.u32 %v3793, 2147483648
    %v3806 = vor.u32 1.1754944e-38, %v3805
    %v3807 = vsel %vm3804, %v3806, %v3802
    %v3808 = vmul.f32 1.0, %v3807
    %v3809 = vmul.f32 %v3788, %v3345
    %v3810 = vmul.f32 %v3769, %v3789
    %v3811 = vadd.f32 %v3809, %v3810
    %v3812 = vtanh.pop %v3811
    %v3813 = vmul.f32 %v3808, %v3812
    %s3814 = scalar_lea.vmem [#allocation2], 56
    %v3815 = vld [vmem:[%s3814] sm:$0xff]
    %3817 = vst [vmem:[#allocation1] ss:$4 sm:$0xff] %v3815
    %v3818 = vld.sshfl [vmem:[#allocation1] sm:$0xff pattern:$0x73625140]
    %v3819 = vld.sshfl [vmem:[#allocation1 + $0x8] sm:$0xff pattern:$0x73625140]
    %v3820 = vld.sshfl [vmem:[#allocation1 + $0x10] sm:$0xff pattern:$0x73625140]
    %v3821 = vld.sshfl [vmem:[#allocation1 + $0x18] sm:$0xff pattern:$0x73625140]
    %v3826 = vadd.f32 %v3465, %v3818
    %v3827 = vadd.f32 %v3505, %v3819
    %v3828 = vadd.f32 %v3545, %v3820
    %v3829 = vadd.f32 %v3585, %v3821
    %v3830 = vxor.u32 %v3826, 2147483648
    %v3831 = vmul.f32 %v3830, 1.442695
    %v3832 = vpow.pop %v3831
    %v3833 = vadd.f32 %v3832, 1.0
    %v3834 = vrcp.pop %v3833
    %v3835 = vmul.f32 %v3833, %v3834
    %v3836 = vsub.f32 1.0, %v3835
    %v3837 = vmul.f32 %v3834, %v3836
    %v3838 = vadd.f32 %v3834, %v3837
    %vm3839 = vweird.f32 %v3833
    %vm3840 = vweird.f32 %v3834
    %vm3841 = vmor %vm3839, %vm3840
    %v3842 = vsel %vm3841, %v3834, %v3838
    %v3843 = vand.u32 2147483647, %v3833
    %vm3844 = vcmp.eq.f32.partialorder %v3843, 8.507059e+37
    %v3845 = vand.u32 %v3833, 2147483648
    %v3846 = vor.u32 1.1754944e-38, %v3845
    %v3847 = vsel %vm3844, %v3846, %v3842
    %v3848 = vmul.f32 1.0, %v3847
    %v3849 = vxor.u32 %v3827, 2147483648
    %v3850 = vmul.f32 %v3849, 1.442695
    %v3851 = vpow.pop %v3850
    %v3852 = vadd.f32 %v3851, 1.0
    %v3853 = vrcp.pop %v3852
    %v3854 = vmul.f32 %v3852, %v3853
    %v3855 = vsub.f32 1.0, %v3854
    %v3856 = vmul.f32 %v3853, %v3855
    %v3857 = vadd.f32 %v3853, %v3856
    %vm3858 = vweird.f32 %v3852
    %vm3859 = vweird.f32 %v3853
    %vm3860 = vmor %vm3858, %vm3859
    %v3861 = vsel %vm3860, %v3853, %v3857
    %v3862 = vand.u32 2147483647, %v3852
    %vm3863 = vcmp.eq.f32.partialorder %v3862, 8.507059e+37
    %v3864 = vand.u32 %v3852, 2147483648
    %v3865 = vor.u32 1.1754944e-38, %v3864
    %v3866 = vsel %vm3863, %v3865, %v3861
    %v3867 = vmul.f32 1.0, %v3866
    %v3868 = vtanh.pop %v3828
    %v3869 = vxor.u32 %v3829, 2147483648
    %v3870 = vmul.f32 %v3869, 1.442695
    %v3871 = vpow.pop %v3870
    %v3872 = vadd.f32 %v3871, 1.0
    %v3873 = vrcp.pop %v3872
    %v3874 = vmul.f32 %v3872, %v3873
    %v3875 = vsub.f32 1.0, %v3874
    %v3876 = vmul.f32 %v3873, %v3875
    %v3877 = vadd.f32 %v3873, %v3876
    %vm3878 = vweird.f32 %v3872
    %vm3879 = vweird.f32 %v3873
    %vm3880 = vmor %vm3878, %vm3879
    %v3881 = vsel %vm3880, %v3873, %v3877
    %v3882 = vand.u32 2147483647, %v3872
    %vm3883 = vcmp.eq.f32.partialorder %v3882, 8.507059e+37
    %v3884 = vand.u32 %v3872, 2147483648
    %v3885 = vor.u32 1.1754944e-38, %v3884
    %v3886 = vsel %vm3883, %v3885, %v3881
    %v3887 = vmul.f32 1.0, %v3886
    %v3888 = vmul.f32 %v3867, %v3424
    %v3889 = vmul.f32 %v3848, %v3868
    %v3890 = vadd.f32 %v3888, %v3889
    %v3891 = vtanh.pop %v3890
    %v3892 = vmul.f32 %v3887, %v3891
    %3893 = vmatpush.msra.mxu0 %v252
    %3894 = vmatpush.msra.mxu0 %v244
    %3895 = vmatpush.msra.mxu0 %v236
    %3896 = vmatpush.msra.mxu0 %v228
    %3897 = vmatpush.msra.mxu0 %v220
    %3898 = vmatpush.msra.mxu0 %v212
    %3899 = vmatpush.msra.mxu0 %v204
    %3900 = vmatpush.msra.mxu0 %v196
    %3901 = vmatpush.msra.mxu0 %v188
    %3902 = vmatpush.msra.mxu0 %v180
    %3903 = vmatpush.msra.mxu0 %v172
    %3904 = vmatpush.msra.mxu0 %v164
    %3905 = vmatpush.msra.mxu0 %v156
    %3906 = vmatpush.msra.mxu0 %v148
    %3907 = vmatpush.msra.mxu0 %v140
    %3908 = vmatpush.msra.mxu0 %v132
    %3909 = vmatmul.f32.gmra.mxu0 %v3892
    %v3910 = vpop.f32.mrf.mxu0
    %v3911 = vadd.f32 0.0, %v3910
    %3912 = vdwg.mxu0
    %3913 = vmatpush.msra.mxu0 %v380
    %3914 = vmatpush.msra.mxu0 %v372
    %3915 = vmatpush.msra.mxu0 %v364
    %3916 = vmatpush.msra.mxu0 %v356
    %3917 = vmatpush.msra.mxu0 %v348
    %3918 = vmatpush.msra.mxu0 %v340
    %3919 = vmatpush.msra.mxu0 %v332
    %3920 = vmatpush.msra.mxu0 %v324
    %3921 = vmatpush.msra.mxu0 %v316
    %3922 = vmatpush.msra.mxu0 %v308
    %3923 = vmatpush.msra.mxu0 %v300
    %3924 = vmatpush.msra.mxu0 %v292
    %3925 = vmatpush.msra.mxu0 %v284
    %3926 = vmatpush.msra.mxu0 %v276
    %3927 = vmatpush.msra.mxu0 %v268
    %3928 = vmatpush.msra.mxu0 %v260
    %3929 = vmatmul.f32.gmra.mxu0 %v3813
    %v3930 = vpop.f32.mrf.mxu0
    %v3931 = vadd.f32 %v3911, %v3930
    %3932 = vdwg.mxu0
    %3933 = vmatpush.msra.mxu0 %v253
    %3934 = vmatpush.msra.mxu0 %v245
    %3935 = vmatpush.msra.mxu0 %v237
    %3936 = vmatpush.msra.mxu0 %v229
    %3937 = vmatpush.msra.mxu0 %v221
    %3938 = vmatpush.msra.mxu0 %v213
    %3939 = vmatpush.msra.mxu0 %v205
    %3940 = vmatpush.msra.mxu0 %v197
    %3941 = vmatpush.msra.mxu0 %v189
    %3942 = vmatpush.msra.mxu0 %v181
    %3943 = vmatpush.msra.mxu0 %v173
    %3944 = vmatpush.msra.mxu0 %v165
    %3945 = vmatpush.msra.mxu0 %v157
    %3946 = vmatpush.msra.mxu0 %v149
    %3947 = vmatpush.msra.mxu0 %v141
    %3948 = vmatpush.msra.mxu0 %v133
    %3949 = vmatmul.f32.gmra.mxu0 %v3892
    %v3950 = vpop.f32.mrf.mxu0
    %v3951 = vadd.f32 0.0, %v3950
    %3952 = vdwg.mxu0
    %3953 = vmatpush.msra.mxu0 %v381
    %3954 = vmatpush.msra.mxu0 %v373
    %3955 = vmatpush.msra.mxu0 %v365
    %3956 = vmatpush.msra.mxu0 %v357
    %3957 = vmatpush.msra.mxu0 %v349
    %3958 = vmatpush.msra.mxu0 %v341
    %3959 = vmatpush.msra.mxu0 %v333
    %3960 = vmatpush.msra.mxu0 %v325
    %3961 = vmatpush.msra.mxu0 %v317
    %3962 = vmatpush.msra.mxu0 %v309
    %3963 = vmatpush.msra.mxu0 %v301
    %3964 = vmatpush.msra.mxu0 %v293
    %3965 = vmatpush.msra.mxu0 %v285
    %3966 = vmatpush.msra.mxu0 %v277
    %3967 = vmatpush.msra.mxu0 %v269
    %3968 = vmatpush.msra.mxu0 %v261
    %3969 = vmatmul.f32.gmra.mxu0 %v3813
    %v3970 = vpop.f32.mrf.mxu0
    %v3971 = vadd.f32 %v3951, %v3970
    %3972 = vdwg.mxu0
    %3973 = vmatpush.msra.mxu0 %v254
    %3974 = vmatpush.msra.mxu0 %v246
    %3975 = vmatpush.msra.mxu0 %v238
    %3976 = vmatpush.msra.mxu0 %v230
    %3977 = vmatpush.msra.mxu0 %v222
    %3978 = vmatpush.msra.mxu0 %v214
    %3979 = vmatpush.msra.mxu0 %v206
    %3980 = vmatpush.msra.mxu0 %v198
    %3981 = vmatpush.msra.mxu0 %v190
    %3982 = vmatpush.msra.mxu0 %v182
    %3983 = vmatpush.msra.mxu0 %v174
    %3984 = vmatpush.msra.mxu0 %v166
    %3985 = vmatpush.msra.mxu0 %v158
    %3986 = vmatpush.msra.mxu0 %v150
    %3987 = vmatpush.msra.mxu0 %v142
    %3988 = vmatpush.msra.mxu0 %v134
    %3989 = vmatmul.f32.gmra.mxu0 %v3892
    %v3990 = vpop.f32.mrf.mxu0
    %v3991 = vadd.f32 0.0, %v3990
    %3992 = vdwg.mxu0
    %3993 = vmatpush.msra.mxu0 %v382
    %3994 = vmatpush.msra.mxu0 %v374
    %3995 = vmatpush.msra.mxu0 %v366
    %3996 = vmatpush.msra.mxu0 %v358
    %3997 = vmatpush.msra.mxu0 %v350
    %3998 = vmatpush.msra.mxu0 %v342
    %3999 = vmatpush.msra.mxu0 %v334
    %4000 = vmatpush.msra.mxu0 %v326
    %4001 = vmatpush.msra.mxu0 %v318
    %4002 = vmatpush.msra.mxu0 %v310
    %4003 = vmatpush.msra.mxu0 %v302
    %4004 = vmatpush.msra.mxu0 %v294
    %4005 = vmatpush.msra.mxu0 %v286
    %4006 = vmatpush.msra.mxu0 %v278
    %4007 = vmatpush.msra.mxu0 %v270
    %4008 = vmatpush.msra.mxu0 %v262
    %4009 = vmatmul.f32.gmra.mxu0 %v3813
    %v4010 = vpop.f32.mrf.mxu0
    %v4011 = vadd.f32 %v3991, %v4010
    %4012 = vdwg.mxu0
    %4013 = vmatpush.msra.mxu0 %v255
    %4014 = vmatpush.msra.mxu0 %v247
    %4015 = vmatpush.msra.mxu0 %v239
    %4016 = vmatpush.msra.mxu0 %v231
    %4017 = vmatpush.msra.mxu0 %v223
    %4018 = vmatpush.msra.mxu0 %v215
    %4019 = vmatpush.msra.mxu0 %v207
    %4020 = vmatpush.msra.mxu0 %v199
    %4021 = vmatpush.msra.mxu0 %v191
    %4022 = vmatpush.msra.mxu0 %v183
    %4023 = vmatpush.msra.mxu0 %v175
    %4024 = vmatpush.msra.mxu0 %v167
    %4025 = vmatpush.msra.mxu0 %v159
    %4026 = vmatpush.msra.mxu0 %v151
    %4027 = vmatpush.msra.mxu0 %v143
    %4028 = vmatpush.msra.mxu0 %v135
    %4029 = vmatmul.f32.gmra.mxu0 %v3892
    %v4030 = vpop.f32.mrf.mxu0
    %v4031 = vadd.f32 0.0, %v4030
    %4032 = vdwg.mxu0
    %4033 = vmatpush.msra.mxu0 %v383
    %4034 = vmatpush.msra.mxu0 %v375
    %4035 = vmatpush.msra.mxu0 %v367
    %4036 = vmatpush.msra.mxu0 %v359
    %4037 = vmatpush.msra.mxu0 %v351
    %4038 = vmatpush.msra.mxu0 %v343
    %4039 = vmatpush.msra.mxu0 %v335
    %4040 = vmatpush.msra.mxu0 %v327
    %4041 = vmatpush.msra.mxu0 %v319
    %4042 = vmatpush.msra.mxu0 %v311
    %4043 = vmatpush.msra.mxu0 %v303
    %4044 = vmatpush.msra.mxu0 %v295
    %4045 = vmatpush.msra.mxu0 %v287
    %4046 = vmatpush.msra.mxu0 %v279
    %4047 = vmatpush.msra.mxu0 %v271
    %4048 = vmatpush.msra.mxu0 %v263
    %4049 = vmatmul.f32.gmra.mxu0 %v3813
    %v4050 = vpop.f32.mrf.mxu0
    %v4051 = vadd.f32 %v4031, %v4050
    %4052 = vdwg.mxu0
    %v4053 = vadd.f32 %v3931, %v943
    %v4054 = vadd.f32 %v3971, %v944
    %v4055 = vadd.f32 %v4011, %v945
    %v4056 = vadd.f32 %v4051, %v946
    %v4057 = vxor.u32 %v4053, 2147483648
    %v4058 = vmul.f32 %v4057, 1.442695
    %v4059 = vpow.pop %v4058
    %v4060 = vadd.f32 %v4059, 1.0
    %v4061 = vrcp.pop %v4060
    %v4062 = vmul.f32 %v4060, %v4061
    %v4063 = vsub.f32 1.0, %v4062
    %v4064 = vmul.f32 %v4061, %v4063
    %v4065 = vadd.f32 %v4061, %v4064
    %vm4066 = vweird.f32 %v4060
    %vm4067 = vweird.f32 %v4061
    %vm4068 = vmor %vm4066, %vm4067
    %v4069 = vsel %vm4068, %v4061, %v4065
    %v4070 = vand.u32 2147483647, %v4060
    %vm4071 = vcmp.eq.f32.partialorder %v4070, 8.507059e+37
    %v4072 = vand.u32 %v4060, 2147483648
    %v4073 = vor.u32 1.1754944e-38, %v4072
    %v4074 = vsel %vm4071, %v4073, %v4069
    %v4075 = vmul.f32 1.0, %v4074
    %v4076 = vxor.u32 %v4054, 2147483648
    %v4077 = vmul.f32 %v4076, 1.442695
    %v4078 = vpow.pop %v4077
    %v4079 = vadd.f32 %v4078, 1.0
    %v4080 = vrcp.pop %v4079
    %v4081 = vmul.f32 %v4079, %v4080
    %v4082 = vsub.f32 1.0, %v4081
    %v4083 = vmul.f32 %v4080, %v4082
    %v4084 = vadd.f32 %v4080, %v4083
    %vm4085 = vweird.f32 %v4079
    %vm4086 = vweird.f32 %v4080
    %vm4087 = vmor %vm4085, %vm4086
    %v4088 = vsel %vm4087, %v4080, %v4084
    %v4089 = vand.u32 2147483647, %v4079
    %vm4090 = vcmp.eq.f32.partialorder %v4089, 8.507059e+37
    %v4091 = vand.u32 %v4079, 2147483648
    %v4092 = vor.u32 1.1754944e-38, %v4091
    %v4093 = vsel %vm4090, %v4092, %v4088
    %v4094 = vmul.f32 1.0, %v4093
    %v4095 = vtanh.pop %v4055
    %v4096 = vxor.u32 %v4056, 2147483648
    %v4097 = vmul.f32 %v4096, 1.442695
    %v4098 = vpow.pop %v4097
    %v4099 = vadd.f32 %v4098, 1.0
    %v4100 = vrcp.pop %v4099
    %v4101 = vmul.f32 %v4099, %v4100
    %v4102 = vsub.f32 1.0, %v4101
    %v4103 = vmul.f32 %v4100, %v4102
    %v4104 = vadd.f32 %v4100, %v4103
    %vm4105 = vweird.f32 %v4099
    %vm4106 = vweird.f32 %v4100
    %vm4107 = vmor %vm4105, %vm4106
    %v4108 = vsel %vm4107, %v4100, %v4104
    %v4109 = vand.u32 2147483647, %v4099
    %vm4110 = vcmp.eq.f32.partialorder %v4109, 8.507059e+37
    %v4111 = vand.u32 %v4099, 2147483648
    %v4112 = vor.u32 1.1754944e-38, %v4111
    %v4113 = vsel %vm4110, %v4112, %v4108
    %v4114 = vmul.f32 1.0, %v4113
    %v4115 = vmul.f32 %v4094, %v3811
    %v4116 = vmul.f32 %v4075, %v4095
    %v4117 = vadd.f32 %v4115, %v4116
    %v4118 = vtanh.pop %v4117
    %v4119 = vmul.f32 %v4114, %v4118
    %4120 = vst [vmem:[#allocation14] sm:$0x3] %v3892
    %s4121 = scalar_lea.vmem [#allocation14], 2
    %4122 = vst [vmem:[%s4121] sm:$0x3] %v4119
    %4123 = vst [vmem:[#allocation16] sm:$0x3] %v3890
    %s4124 = scalar_lea.vmem [#allocation16], 2
    %4125 = vst [vmem:[%s4124] sm:$0x3] %v4117
    %v4127 = vrot.slane %v1483, 6
    %v4130 = vrot.slane %v1949, 4
    %v4133 = vrot.slane %v2415, 2
    %v4136 = vrot.slane %v3347, 6
    %v4139 = vrot.slane %v3813, 4
    %v4142 = vrot.slane %v4119, 2
    %vm4144 = vcmask 1041408
    %v4145 = vsel %vm4144, %v1017, %v4127
    %vm4146 = vcmask 1043456
    %v4147 = vsel %vm4146, %v4145, %v4130
    %vm4148 = vcmask 1045504
    %v4149 = vsel %vm4148, %v4147, %v4133
    %v4150 = vsel %vm4144, %v2881, %v4136
    %v4151 = vsel %vm4146, %v4150, %v4139
    %v4152 = vsel %vm4148, %v4151, %v4142
    %v4153 = vld [vmem:[#allocation8] sm:$0xff]
    %v4154 = vld [vmem:[#allocation8 + $0x8] sm:$0xff]
    %v4155 = vld [vmem:[#allocation8 + $0x10] sm:$0xff]
    %v4156 = vld [vmem:[#allocation8 + $0x18] sm:$0xff]
    %v4157 = vld [vmem:[#allocation8 + $0x20] sm:$0xff]
    %v4158 = vld [vmem:[#allocation8 + $0x28] sm:$0xff]
    %v4159 = vld [vmem:[#allocation8 + $0x30] sm:$0xff]
    %v4160 = vld [vmem:[#allocation8 + $0x38] sm:$0xff]
    %v4161 = vld [vmem:[#allocation8 + $0x40] sm:$0xff]
    %v4162 = vld [vmem:[#allocation8 + $0x48] sm:$0xff]
    %v4163 = vld [vmem:[#allocation8 + $0x50] sm:$0xff]
    %v4164 = vld [vmem:[#allocation8 + $0x58] sm:$0xff]
    %v4165 = vld [vmem:[#allocation8 + $0x60] sm:$0xff]
    %v4166 = vld [vmem:[#allocation8 + $0x68] sm:$0xff]
    %v4167 = vld [vmem:[#allocation8 + $0x70] sm:$0xff]
    %v4168 = vld [vmem:[#allocation8 + $0x78] sm:$0xff]
    %v4169 = vld [vmem:[#allocation10] sm:$0x1]
    %v4171 = vperm.slane %v4169, 0
    %4173 = vmatpush.msra.mxu0 %v4168
    %4174 = vmatpush.msra.mxu0 %v4167
    %4175 = vmatpush.msra.mxu0 %v4166
    %4176 = vmatpush.msra.mxu0 %v4165
    %4177 = vmatpush.msra.mxu0 %v4164
    %4178 = vmatpush.msra.mxu0 %v4163
    %4179 = vmatpush.msra.mxu0 %v4162
    %4180 = vmatpush.msra.mxu0 %v4161
    %4181 = vmatpush.msra.mxu0 %v4160
    %4182 = vmatpush.msra.mxu0 %v4159
    %4183 = vmatpush.msra.mxu0 %v4158
    %4184 = vmatpush.msra.mxu0 %v4157
    %4185 = vmatpush.msra.mxu0 %v4156
    %4186 = vmatpush.msra.mxu0 %v4155
    %4187 = vmatpush.msra.mxu0 %v4154
    %4188 = vmatpush.msra.mxu0 %v4153
    %4189 = vmatmul.f32.gmra.mxu0 %v4149
    %v4190 = vpop.f32.mrf.mxu0
    %v4191 = vadd.f32 %v4171, %v4190
    %4192 = vmatmul.f32.gmra.mxu0 %v4152
    %v4193 = vpop.f32.mrf.mxu0
    %v4194 = vadd.f32 %v4171, %v4193
    %4195 = vdwg.mxu0
    %4196 = vst [vmem:[#allocation13] sm:$0xff] %v4191
    %4197 = vst [vmem:[#allocation13 + $0x8] sm:$0xff] %v4194
    // Predicated region
    $region54: #{tpu_custom_call.1} parent=1 // pred_check
      _
    $region55: #{tpu_custom_call.1} parent=1 // pred_check_branch
      %4199 = sbr.rel (0) target = $region57
    $region56: #{tpu_custom_call.1} parent=1 // pred_region
      %4201 = vsyncadd [#allocation4], 0
      %s4202 = sshll.u32 [#allocation13], 4
      %s4203 = int_to_ptr.vmem [resolvable:$true] %s4202
      %s4204 = sshll.u32 %s7, 4
      %s4205 = int_to_ptr.hbm [resolvable:$true] %s4204
      %4210 = dma.vmem_to_hbm [thread:$0]  %s4203, 256, %s4205, [#allocation4], 128, 128, 8
    $region57: #{tpu_custom_call.1} parent=1 // pred_fallthru
      _
    // Predicated region
    $region58: #{tpu_custom_call.1} parent=1 // pred_check
      _
    $region59: #{tpu_custom_call.1} parent=1 // pred_check_branch
      %4212 = sbr.rel (0) target = $region61
    $region60: #{tpu_custom_call.1} parent=1 // pred_region
      %4214 = vsyncadd [#allocation15], 0
      %s4215 = sshll.u32 [#allocation14], 4
      %s4216 = int_to_ptr.vmem [resolvable:$true] %s4215
      %s4217 = sshll.u32 %s8, 4
      %s4218 = int_to_ptr.hbm [resolvable:$true] %s4217
      %4223 = dma.vmem_to_hbm [thread:$0]  %s4216, 64, %s4218, [#allocation15], 32, 32, 2
    $region61: #{tpu_custom_call.1} parent=1 // pred_fallthru
      _
    // Predicated region
    $region62: #{tpu_custom_call.1} parent=1 // pred_check
      _
    $region63: #{tpu_custom_call.1} parent=1 // pred_check_branch
      %4225 = sbr.rel (0) target = $region65
    $region64: #{tpu_custom_call.1} parent=1 // pred_region
      %4227 = vsyncadd [#allocation15], 0
      %s4228 = sshll.u32 [#allocation16], 4
      %s4229 = int_to_ptr.vmem [resolvable:$true] %s4228
      %s4230 = sshll.u32 %s9, 4
      %s4231 = int_to_ptr.hbm [resolvable:$true] %s4230
      %4236 = dma.vmem_to_hbm [thread:$0]  %s4229, 64, %s4231, [#allocation15], 32, 32, 2
    $region65: #{tpu_custom_call.1} parent=1 // pred_fallthru
      _
    // Predicated region
    $region66: #{tpu_custom_call.1} parent=1 // pred_check
      _
    $region67: #{tpu_custom_call.1} parent=1 // pred_check_branch
      %4238 = sbr.rel (0) target = $region69
    $region68: #{tpu_custom_call.1} parent=1 // pred_region
      %4240 = dma.done [#allocation4], 256
    $region69: #{tpu_custom_call.1} parent=1 // pred_fallthru
      _
    // Predicated region
    $region70: #{tpu_custom_call.1} parent=1 // pred_check
      _
    $region71: #{tpu_custom_call.1} parent=1 // pred_check_branch
      %4242 = sbr.rel (0) target = $region73
    $region72: #{tpu_custom_call.1} parent=1 // pred_region
      %4244 = dma.done [#allocation15], 64
    $region73: #{tpu_custom_call.1} parent=1 // pred_fallthru
      _
    // Predicated region
    $region74: #{tpu_custom_call.1} parent=1 // pred_check
      _
    $region75: #{tpu_custom_call.1} parent=1 // pred_check_branch
      %4246 = sbr.rel (0) target = $region77
    $region76: #{tpu_custom_call.1} parent=1 // pred_region
      %4248 = dma.done [#allocation15], 64
    $region77: #{tpu_custom_call.1} parent=1 // pred_fallthru
      _
    %4249 = vsyncpa [#allocation3], 1
    %4250 = vsyncpa [#allocation6], 1
    %4251 = vsyncpa [#allocation9], 1
    %4252 = vsyncpa [#allocation12], 1
    %4253 = vsyncpa [#allocation4], 1
    %4254 = vsyncpa [#allocation15], 1

</llo_original>
